<compile_context>
chip_gen: v5e
topology: v5e:2x2
jax: 0.10.0
libtpu: 0.0.40
codegen_flags: <defaults>
</compile_context>

<pallas_src>
import jax
import jax.numpy as jnp
import numpy as np
from jax import lax
from jax.experimental import pallas as pl
from jax.experimental.pallas import tpu as pltpu

IN_CHANNELS = 3
OUT_CHANNELS = (32, 32, 32, 32)
KERNEL_SIZE = (7, 3, 3, 3)
STRIDE = (2, 2, 2, 1)
PADDING = (3, 1, 1, 1)
BN_EPS = 1e-5

LANES = 128       # channel padding -> lane-dense vregs / full MXU N dimension
SUBLANES = 8      # spatial-row padding -> sublane-aligned matmul M/K dims


def _round_up(v, m):
    return (v + m - 1) // m * m


def _tap_selectors(h_in, w_in, h_out, w_out, k, stride, pad, p_in, p_out):
    """0/1 matrices G[t] of shape (p_out, p_in): G[t] @ X gathers tap t's rows.

    Row o = oh*w_out + ow of G[kh*k + kw] holds a single 1 at column
    ih*w_in + iw (ih = oh*stride - pad + kh, iw analogous) and is all-zero
    when the tap falls into the zero-padding.  Rows/cols beyond the real
    spatial sizes (alignment padding) stay zero.
    """
    g = np.zeros((k * k, p_out, p_in), np.float32)
    for kh in range(k):
        for kw in range(k):
            t = kh * k + kw
            for oh in range(h_out):
                ih = oh * stride - pad + kh
                if ih < 0 or ih >= h_in:
                    continue
                for ow in range(w_out):
                    iw = ow * stride - pad + kw
                    if iw < 0 or iw >= w_in:
                        continue
                    g[t, oh * w_out + ow, ih * w_in + iw] = 1.0
    return g


def _im2col_stem(x_nhwc, k, stride, pad, h_out, w_out):
    """XLA-side im2col for the first (7x7/s2) layer only: (N, OH*OW, k*k*Cin)."""
    n = x_nhwc.shape[0]
    xp = jnp.pad(x_nhwc, ((0, 0), (pad, pad), (pad, pad), (0, 0)))
    cols = []
    for kh in range(k):
        for kw in range(k):
            cols.append(xp[:, kh:kh + stride * h_out:stride,
                           kw:kw + stride * w_out:stride, :])
    return jnp.concatenate(cols, axis=-1).reshape(n, h_out * w_out, -1)


def _make_fused_kernel(num_tap_layers):
    """refs = (stem_patches, stem_w, stem_shift,
               [tap_g, tap_w, tap_shift] * num_tap_layers, out)."""

    def kernel(*refs):
        p1_ref, w1_ref, s1_ref = refs[0], refs[1], refs[2]
        o_ref = refs[-1]

        # ---- layer 0: 7x7/s2 stem -> one MXU matmul + folded shift + ReLU --
        x = jnp.maximum(
            jnp.dot(p1_ref[0], w1_ref[...],
                    preferred_element_type=jnp.float32) + s1_ref[...],
            0.0)                                            # (P1, 128) f32

        # ---- layers 1..3: per-tap gather-matmuls, activations stay on-chip -
        for l in range(num_tap_layers):
            g_ref = refs[3 + 3 * l]
            w_ref = refs[4 + 3 * l]
            s_ref = refs[5 + 3 * l]
            x_bf16 = x.astype(jnp.bfloat16)
            taps, p_out, _ = g_ref.shape
            acc = jnp.zeros((p_out, LANES), jnp.float32)
            for t in range(taps):
                # spatial "im2col" of tap t done on the MXU (0/1 gather matrix)
                sel = jnp.dot(g_ref[t], x_bf16,
                              preferred_element_type=jnp.float32)
                acc = acc + jnp.dot(sel.astype(jnp.bfloat16), w_ref[t],
                                    preferred_element_type=jnp.float32)
            x = jnp.maximum(acc + s_ref[...], 0.0)          # BN shift + ReLU

        o_ref[0] = x.astype(o_ref.dtype)

    return kernel


def input_image_encoder_forward(x_nchw, params):
    """Mirrors input_image_encoder.forward: returns (input_image, encoded)."""
    n, cin, h, w = x_nchw.shape
    num_layers = len(params)

    # static per-layer spatial sizes
    sizes = [(h, w)]
    for k, s, p in zip(KERNEL_SIZE, STRIDE, PADDING):
        hh, ww = sizes[-1]
        sizes.append(((hh + 2 * p - k) // s + 1, (ww + 2 * p - k) // s + 1))

    x_nhwc = jnp.transpose(x_nchw, (0, 2, 3, 1))            # NCHW -> NHWC

    # ---------- stem (layer 0): XLA im2col, lane/sublane padded, bf16 -------
    k0, s0, p0 = KERNEL_SIZE[0], STRIDE[0], PADDING[0]
    oh0, ow0 = sizes[1]
    k1 = k0 * k0 * cin
    k1_pad = _round_up(k1, LANES)
    p1 = _round_up(oh0 * ow0, SUBLANES)
    patches = _im2col_stem(x_nhwc, k0, s0, p0, oh0, ow0)
    patches = jnp.pad(patches,
                      ((0, 0), (0, p1 - oh0 * ow0), (0, k1_pad - k1)))
    inputs = [patches.astype(jnp.bfloat16)]
    in_specs = [pl.BlockSpec((1, p1, k1_pad), lambda i: (i, 0, 0))]

    par0 = params[0]
    cout0 = par0["w"].shape[-1]
    inv0 = par0["gamma"] / jnp.sqrt(par0["var"] + BN_EPS)
    w0 = par0["w"].reshape(k1, cout0) * inv0[None, :]       # fold BN scale
    w0 = jnp.pad(w0, ((0, k1_pad - k1), (0, LANES - cout0)))
    sh0 = (par0["b"] - par0["mean"]) * inv0 + par0["beta"]
    sh0 = jnp.pad(sh0, (0, LANES - cout0)).reshape(1, LANES)
    inputs += [w0.astype(jnp.bfloat16), sh0.astype(jnp.float32)]
    in_specs += [pl.BlockSpec((k1_pad, LANES), lambda i: (0, 0)),
                 pl.BlockSpec((1, LANES), lambda i: (0, 0))]

    # ---------- layers 1..: tap-selection matrices + folded weights ---------
    p_prev = p1
    for li in range(1, num_layers):
        par = params[li]
        k, s, p = KERNEL_SIZE[li], STRIDE[li], PADDING[li]
        hin, win = sizes[li]
        hout, wout = sizes[li + 1]
        p_out = _round_up(hout * wout, SUBLANES)
        cin_l, cout_l = par["w"].shape[2], par["w"].shape[3]

        g = _tap_selectors(hin, win, hout, wout, k, s, p, p_prev, p_out)
        inv = par["gamma"] / jnp.sqrt(par["var"] + BN_EPS)
        wt = par["w"].reshape(k * k, cin_l, cout_l) * inv[None, None, :]
        wt = jnp.pad(wt, ((0, 0), (0, LANES - cin_l), (0, LANES - cout_l)))
        sh = (par["b"] - par["mean"]) * inv + par["beta"]
        sh = jnp.pad(sh, (0, LANES - cout_l)).reshape(1, LANES)

        inputs += [jnp.asarray(g, jnp.bfloat16), wt.astype(jnp.bfloat16),
                   sh.astype(jnp.float32)]
        in_specs += [pl.BlockSpec((k * k, p_out, p_prev), lambda i: (0, 0, 0)),
                     pl.BlockSpec((k * k, LANES, LANES), lambda i: (0, 0, 0)),
                     pl.BlockSpec((1, LANES), lambda i: (0, 0))]
        p_prev = p_out

    # ---------- one fused pallas_call, gridded (parallel) over the batch ----
    hout, wout = sizes[-1]
    cout_last = params[-1]["w"].shape[-1]
    out = pl.pallas_call(
        _make_fused_kernel(num_layers - 1),
        out_shape=jax.ShapeDtypeStruct((n, p_prev, LANES), jnp.float32),
        grid=(n,),
        in_specs=in_specs,
        out_specs=pl.BlockSpec((1, p_prev, LANES), lambda i: (i, 0, 0)),
        compiler_params=pltpu.CompilerParams(
            dimension_semantics=("parallel",)),   # v7x megacore over batch
    )(*inputs)

    enc = out[:, :hout * wout, :cout_last].reshape(n, hout, wout, cout_last)
    return x_nchw, jnp.transpose(enc, (0, 3, 1, 2))         # NHWC -> NCHW


def init_params(key):
    """Deterministic synthetic parameters matching the PyTorch module shapes."""
    params = []
    cin = IN_CHANNELS
    for i, (cout, k) in enumerate(zip(OUT_CHANNELS, KERNEL_SIZE)):
        ki = jax.random.fold_in(key, i)
        k1, k2, k3, k4, k5, k6 = jax.random.split(ki, 6)
        fan_in = k * k * cin
        params.append(dict(
            w=jax.random.normal(k1, (k, k, cin, cout), jnp.float32)
              * (1.0 / fan_in ** 0.5),
            b=0.1 * jax.random.normal(k2, (cout,), jnp.float32),
            gamma=1.0 + 0.1 * jax.random.normal(k3, (cout,), jnp.float32),
            beta=0.1 * jax.random.normal(k4, (cout,), jnp.float32),
            mean=0.1 * jax.random.normal(k5, (cout,), jnp.float32),
            var=0.5 + jax.random.uniform(k6, (cout,), jnp.float32),
        ))
        cin = cout
    return params


def _reference_forward(x_nchw, params):
    """Pure-JAX reference (lax.conv, f32) for the correctness check."""
    x = x_nchw
    for p, s, pad in zip(params, STRIDE, PADDING):
        w_oihw = jnp.transpose(p["w"], (3, 2, 0, 1))
        y = lax.conv_general_dilated(
            x, w_oihw, (s, s), [(pad, pad), (pad, pad)],
            dimension_numbers=("NCHW", "OIHW", "NCHW"))
        y = y + p["b"].reshape(1, -1, 1, 1)
        inv = (p["gamma"] / jnp.sqrt(p["var"] + BN_EPS)).reshape(1, -1, 1, 1)
        y = (y - p["mean"].reshape(1, -1, 1, 1)) * inv \
            + p["beta"].reshape(1, -1, 1, 1)
        x = jnp.maximum(y, 0.0)
    return x


if __name__ == "__main__":
    key = jax.random.PRNGKey(0)
    kx, kp = jax.random.split(key)

    # Small input consistent with the module: [Batch, Channels, Height, Width]
    x = jax.random.normal(kx, (2, 3, 16, 16), jnp.float32)
    params = init_params(kp)

    orig, encoded = jax.jit(input_image_encoder_forward)(x, params)
    encoded = jax.block_until_ready(encoded)

    assert orig.shape == (2, 3, 16, 16)
    assert encoded.shape == (2, 32, 2, 2)     # 16 -> 8 -> 4 -> 2 -> 2

    ref = _reference_forward(x, params)
    # bf16 MXU operands (f32 accumulation) -> compare with a bf16-level tolerance
    if not jnp.allclose(encoded, ref, rtol=5e-2, atol=5e-2):
        raise AssertionError("Pallas output mismatches pure-JAX reference")

    print("KERNEL_OK")
</pallas_src>

<mosaic_0001>
module attributes {stable_mosaic.version = 11 : i64} {
  func.func @kernel(%arg0: i32, %arg1: memref<1x64x256xbf16, #tpu.memory_space<vmem>>, %arg2: memref<256x128xbf16, #tpu.memory_space<vmem>>, %arg3: memref<1x128xf32, #tpu.memory_space<vmem>>, %arg4: memref<9x16x64xbf16, #tpu.memory_space<vmem>>, %arg5: memref<9x128x128xbf16, #tpu.memory_space<vmem>>, %arg6: memref<1x128xf32, #tpu.memory_space<vmem>>, %arg7: memref<9x8x16xbf16, #tpu.memory_space<vmem>>, %arg8: memref<9x128x128xbf16, #tpu.memory_space<vmem>>, %arg9: memref<1x128xf32, #tpu.memory_space<vmem>>, %arg10: memref<9x8x8xbf16, #tpu.memory_space<vmem>>, %arg11: memref<9x128x128xbf16, #tpu.memory_space<vmem>>, %arg12: memref<1x128xf32, #tpu.memory_space<vmem>>, %arg13: memref<1x8x128xf32, #tpu.memory_space<vmem>>) attributes {dimension_semantics = [#tpu.dimension_semantics<parallel>], iteration_bounds = array<i64: 2>, scalar_prefetch = 0 : i64, scratch_operands = 0 : i64, tpu.core_type = #tpu.core_type<tc>, window_params = [{transform_indices = @transform_0, window_bounds = array<i64: 1, 64, 256>}, {pipeline_mode = #tpu.pipeline_mode<synchronous>, transform_indices = @transform_1, window_bounds = array<i64: 256, 128>}, {pipeline_mode = #tpu.pipeline_mode<synchronous>, transform_indices = @transform_2, window_bounds = array<i64: 1, 128>}, {pipeline_mode = #tpu.pipeline_mode<synchronous>, transform_indices = @transform_3, window_bounds = array<i64: 9, 16, 64>}, {pipeline_mode = #tpu.pipeline_mode<synchronous>, transform_indices = @transform_4, window_bounds = array<i64: 9, 128, 128>}, {pipeline_mode = #tpu.pipeline_mode<synchronous>, transform_indices = @transform_5, window_bounds = array<i64: 1, 128>}, {pipeline_mode = #tpu.pipeline_mode<synchronous>, transform_indices = @transform_6, window_bounds = array<i64: 9, 8, 16>}, {pipeline_mode = #tpu.pipeline_mode<synchronous>, transform_indices = @transform_7, window_bounds = array<i64: 9, 128, 128>}, {pipeline_mode = #tpu.pipeline_mode<synchronous>, transform_indices = @transform_8, window_bounds = array<i64: 1, 128>}, {pipeline_mode = #tpu.pipeline_mode<synchronous>, transform_indices = @transform_9, window_bounds = array<i64: 9, 8, 8>}, {pipeline_mode = #tpu.pipeline_mode<synchronous>, transform_indices = @transform_10, window_bounds = array<i64: 9, 128, 128>}, {pipeline_mode = #tpu.pipeline_mode<synchronous>, transform_indices = @transform_11, window_bounds = array<i64: 1, 128>}, {transform_indices = @transform_12, window_bounds = array<i64: 1, 8, 128>}]} {
    %c0 = arith.constant 0 : index
    %c0_0 = arith.constant 0 : index
    %c0_1 = arith.constant 0 : index
    %0 = vector.load %arg1[%c0, %c0_0, %c0_1] : memref<1x64x256xbf16, #tpu.memory_space<vmem>>, vector<1x64x256xbf16>
    %1 = vector.shape_cast %0 : vector<1x64x256xbf16> to vector<64x256xbf16>
    %c0_2 = arith.constant 0 : index
    %c0_3 = arith.constant 0 : index
    %2 = vector.load %arg2[%c0_2, %c0_3] : memref<256x128xbf16, #tpu.memory_space<vmem>>, vector<256x128xbf16>
    %cst = arith.constant dense<0.000000e+00> : vector<64x128xf32>
    %3 = tpu.matmul %1, %2, %cst {dimension_numbers = #tpu.dot_dimension_numbers<[1], [0], [0], [1], [0, 0, 1, 1], [], []>} : vector<64x256xbf16>, vector<256x128xbf16>, vector<64x128xf32> -> vector<64x128xf32>
    %c0_4 = arith.constant 0 : index
    %c0_5 = arith.constant 0 : index
    %4 = vector.load %arg3[%c0_4, %c0_5] : memref<1x128xf32, #tpu.memory_space<vmem>>, vector<1x128xf32>
    %5 = vector.broadcast %4 : vector<1x128xf32> to vector<64x128xf32>
    %6 = arith.addf %3, %5 : vector<64x128xf32>
    %cst_6 = arith.constant 0.000000e+00 : f32
    %7 = vector.broadcast %cst_6 : f32 to vector<64x128xf32>
    %8 = arith.maximumf %6, %7 : vector<64x128xf32>
    %9 = arith.truncf %8 : vector<64x128xf32> to vector<64x128xbf16>
    %cst_7 = arith.constant 0.000000e+00 : f32
    %10 = vector.broadcast %cst_7 : f32 to vector<16x128xf32>
    %c0_8 = arith.constant 0 : index
    %c0_9 = arith.constant 0 : index
    %c0_10 = arith.constant 0 : index
    %11 = vector.load %arg4[%c0_8, %c0_9, %c0_10] : memref<9x16x64xbf16, #tpu.memory_space<vmem>>, vector<1x16x64xbf16>
    %12 = vector.shape_cast %11 : vector<1x16x64xbf16> to vector<16x64xbf16>
    %cst_11 = arith.constant dense<0.000000e+00> : vector<16x128xf32>
    %13 = tpu.matmul %12, %9, %cst_11 {dimension_numbers = #tpu.dot_dimension_numbers<[1], [0], [0], [1], [0, 0, 1, 1], [], []>} : vector<16x64xbf16>, vector<64x128xbf16>, vector<16x128xf32> -> vector<16x128xf32>
    %14 = arith.truncf %13 : vector<16x128xf32> to vector<16x128xbf16>
    %c0_12 = arith.constant 0 : index
    %c0_13 = arith.constant 0 : index
    %c0_14 = arith.constant 0 : index
    %15 = vector.load %arg5[%c0_12, %c0_13, %c0_14] : memref<9x128x128xbf16, #tpu.memory_space<vmem>>, vector<1x128x128xbf16>
    %16 = vector.shape_cast %15 : vector<1x128x128xbf16> to vector<128x128xbf16>
    %cst_15 = arith.constant dense<0.000000e+00> : vector<16x128xf32>
    %17 = tpu.matmul %14, %16, %cst_15 {dimension_numbers = #tpu.dot_dimension_numbers<[1], [0], [0], [1], [0, 0, 1, 1], [], []>} : vector<16x128xbf16>, vector<128x128xbf16>, vector<16x128xf32> -> vector<16x128xf32>
    %18 = arith.addf %10, %17 : vector<16x128xf32>
    %c1 = arith.constant 1 : index
    %c0_16 = arith.constant 0 : index
    %c0_17 = arith.constant 0 : index
    %19 = vector.load %arg4[%c1, %c0_16, %c0_17] : memref<9x16x64xbf16, #tpu.memory_space<vmem>>, vector<1x16x64xbf16>
    %20 = vector.shape_cast %19 : vector<1x16x64xbf16> to vector<16x64xbf16>
    %cst_18 = arith.constant dense<0.000000e+00> : vector<16x128xf32>
    %21 = tpu.matmul %20, %9, %cst_18 {dimension_numbers = #tpu.dot_dimension_numbers<[1], [0], [0], [1], [0, 0, 1, 1], [], []>} : vector<16x64xbf16>, vector<64x128xbf16>, vector<16x128xf32> -> vector<16x128xf32>
    %22 = arith.truncf %21 : vector<16x128xf32> to vector<16x128xbf16>
    %c1_19 = arith.constant 1 : index
    %c0_20 = arith.constant 0 : index
    %c0_21 = arith.constant 0 : index
    %23 = vector.load %arg5[%c1_19, %c0_20, %c0_21] : memref<9x128x128xbf16, #tpu.memory_space<vmem>>, vector<1x128x128xbf16>
    %24 = vector.shape_cast %23 : vector<1x128x128xbf16> to vector<128x128xbf16>
    %cst_22 = arith.constant dense<0.000000e+00> : vector<16x128xf32>
    %25 = tpu.matmul %22, %24, %cst_22 {dimension_numbers = #tpu.dot_dimension_numbers<[1], [0], [0], [1], [0, 0, 1, 1], [], []>} : vector<16x128xbf16>, vector<128x128xbf16>, vector<16x128xf32> -> vector<16x128xf32>
    %26 = arith.addf %18, %25 : vector<16x128xf32>
    %c2 = arith.constant 2 : index
    %c0_23 = arith.constant 0 : index
    %c0_24 = arith.constant 0 : index
    %27 = vector.load %arg4[%c2, %c0_23, %c0_24] : memref<9x16x64xbf16, #tpu.memory_space<vmem>>, vector<1x16x64xbf16>
    %28 = vector.shape_cast %27 : vector<1x16x64xbf16> to vector<16x64xbf16>
    %cst_25 = arith.constant dense<0.000000e+00> : vector<16x128xf32>
    %29 = tpu.matmul %28, %9, %cst_25 {dimension_numbers = #tpu.dot_dimension_numbers<[1], [0], [0], [1], [0, 0, 1, 1], [], []>} : vector<16x64xbf16>, vector<64x128xbf16>, vector<16x128xf32> -> vector<16x128xf32>
    %30 = arith.truncf %29 : vector<16x128xf32> to vector<16x128xbf16>
    %c2_26 = arith.constant 2 : index
    %c0_27 = arith.constant 0 : index
    %c0_28 = arith.constant 0 : index
    %31 = vector.load %arg5[%c2_26, %c0_27, %c0_28] : memref<9x128x128xbf16, #tpu.memory_space<vmem>>, vector<1x128x128xbf16>
    %32 = vector.shape_cast %31 : vector<1x128x128xbf16> to vector<128x128xbf16>
    %cst_29 = arith.constant dense<0.000000e+00> : vector<16x128xf32>
    %33 = tpu.matmul %30, %32, %cst_29 {dimension_numbers = #tpu.dot_dimension_numbers<[1], [0], [0], [1], [0, 0, 1, 1], [], []>} : vector<16x128xbf16>, vector<128x128xbf16>, vector<16x128xf32> -> vector<16x128xf32>
    %34 = arith.addf %26, %33 : vector<16x128xf32>
    %c3 = arith.constant 3 : index
    %c0_30 = arith.constant 0 : index
    %c0_31 = arith.constant 0 : index
    %35 = vector.load %arg4[%c3, %c0_30, %c0_31] : memref<9x16x64xbf16, #tpu.memory_space<vmem>>, vector<1x16x64xbf16>
    %36 = vector.shape_cast %35 : vector<1x16x64xbf16> to vector<16x64xbf16>
    %cst_32 = arith.constant dense<0.000000e+00> : vector<16x128xf32>
    %37 = tpu.matmul %36, %9, %cst_32 {dimension_numbers = #tpu.dot_dimension_numbers<[1], [0], [0], [1], [0, 0, 1, 1], [], []>} : vector<16x64xbf16>, vector<64x128xbf16>, vector<16x128xf32> -> vector<16x128xf32>
    %38 = arith.truncf %37 : vector<16x128xf32> to vector<16x128xbf16>
    %c3_33 = arith.constant 3 : index
    %c0_34 = arith.constant 0 : index
    %c0_35 = arith.constant 0 : index
    %39 = vector.load %arg5[%c3_33, %c0_34, %c0_35] : memref<9x128x128xbf16, #tpu.memory_space<vmem>>, vector<1x128x128xbf16>
    %40 = vector.shape_cast %39 : vector<1x128x128xbf16> to vector<128x128xbf16>
    %cst_36 = arith.constant dense<0.000000e+00> : vector<16x128xf32>
    %41 = tpu.matmul %38, %40, %cst_36 {dimension_numbers = #tpu.dot_dimension_numbers<[1], [0], [0], [1], [0, 0, 1, 1], [], []>} : vector<16x128xbf16>, vector<128x128xbf16>, vector<16x128xf32> -> vector<16x128xf32>
    %42 = arith.addf %34, %41 : vector<16x128xf32>
    %c4 = arith.constant 4 : index
    %c0_37 = arith.constant 0 : index
    %c0_38 = arith.constant 0 : index
    %43 = vector.load %arg4[%c4, %c0_37, %c0_38] : memref<9x16x64xbf16, #tpu.memory_space<vmem>>, vector<1x16x64xbf16>
    %44 = vector.shape_cast %43 : vector<1x16x64xbf16> to vector<16x64xbf16>
    %cst_39 = arith.constant dense<0.000000e+00> : vector<16x128xf32>
    %45 = tpu.matmul %44, %9, %cst_39 {dimension_numbers = #tpu.dot_dimension_numbers<[1], [0], [0], [1], [0, 0, 1, 1], [], []>} : vector<16x64xbf16>, vector<64x128xbf16>, vector<16x128xf32> -> vector<16x128xf32>
    %46 = arith.truncf %45 : vector<16x128xf32> to vector<16x128xbf16>
    %c4_40 = arith.constant 4 : index
    %c0_41 = arith.constant 0 : index
    %c0_42 = arith.constant 0 : index
    %47 = vector.load %arg5[%c4_40, %c0_41, %c0_42] : memref<9x128x128xbf16, #tpu.memory_space<vmem>>, vector<1x128x128xbf16>
    %48 = vector.shape_cast %47 : vector<1x128x128xbf16> to vector<128x128xbf16>
    %cst_43 = arith.constant dense<0.000000e+00> : vector<16x128xf32>
    %49 = tpu.matmul %46, %48, %cst_43 {dimension_numbers = #tpu.dot_dimension_numbers<[1], [0], [0], [1], [0, 0, 1, 1], [], []>} : vector<16x128xbf16>, vector<128x128xbf16>, vector<16x128xf32> -> vector<16x128xf32>
    %50 = arith.addf %42, %49 : vector<16x128xf32>
    %c5 = arith.constant 5 : index
    %c0_44 = arith.constant 0 : index
    %c0_45 = arith.constant 0 : index
    %51 = vector.load %arg4[%c5, %c0_44, %c0_45] : memref<9x16x64xbf16, #tpu.memory_space<vmem>>, vector<1x16x64xbf16>
    %52 = vector.shape_cast %51 : vector<1x16x64xbf16> to vector<16x64xbf16>
    %cst_46 = arith.constant dense<0.000000e+00> : vector<16x128xf32>
    %53 = tpu.matmul %52, %9, %cst_46 {dimension_numbers = #tpu.dot_dimension_numbers<[1], [0], [0], [1], [0, 0, 1, 1], [], []>} : vector<16x64xbf16>, vector<64x128xbf16>, vector<16x128xf32> -> vector<16x128xf32>
    %54 = arith.truncf %53 : vector<16x128xf32> to vector<16x128xbf16>
    %c5_47 = arith.constant 5 : index
    %c0_48 = arith.constant 0 : index
    %c0_49 = arith.constant 0 : index
    %55 = vector.load %arg5[%c5_47, %c0_48, %c0_49] : memref<9x128x128xbf16, #tpu.memory_space<vmem>>, vector<1x128x128xbf16>
    %56 = vector.shape_cast %55 : vector<1x128x128xbf16> to vector<128x128xbf16>
    %cst_50 = arith.constant dense<0.000000e+00> : vector<16x128xf32>
    %57 = tpu.matmul %54, %56, %cst_50 {dimension_numbers = #tpu.dot_dimension_numbers<[1], [0], [0], [1], [0, 0, 1, 1], [], []>} : vector<16x128xbf16>, vector<128x128xbf16>, vector<16x128xf32> -> vector<16x128xf32>
    %58 = arith.addf %50, %57 : vector<16x128xf32>
    %c6 = arith.constant 6 : index
    %c0_51 = arith.constant 0 : index
    %c0_52 = arith.constant 0 : index
    %59 = vector.load %arg4[%c6, %c0_51, %c0_52] : memref<9x16x64xbf16, #tpu.memory_space<vmem>>, vector<1x16x64xbf16>
    %60 = vector.shape_cast %59 : vector<1x16x64xbf16> to vector<16x64xbf16>
    %cst_53 = arith.constant dense<0.000000e+00> : vector<16x128xf32>
    %61 = tpu.matmul %60, %9, %cst_53 {dimension_numbers = #tpu.dot_dimension_numbers<[1], [0], [0], [1], [0, 0, 1, 1], [], []>} : vector<16x64xbf16>, vector<64x128xbf16>, vector<16x128xf32> -> vector<16x128xf32>
    %62 = arith.truncf %61 : vector<16x128xf32> to vector<16x128xbf16>
    %c6_54 = arith.constant 6 : index
    %c0_55 = arith.constant 0 : index
    %c0_56 = arith.constant 0 : index
    %63 = vector.load %arg5[%c6_54, %c0_55, %c0_56] : memref<9x128x128xbf16, #tpu.memory_space<vmem>>, vector<1x128x128xbf16>
    %64 = vector.shape_cast %63 : vector<1x128x128xbf16> to vector<128x128xbf16>
    %cst_57 = arith.constant dense<0.000000e+00> : vector<16x128xf32>
    %65 = tpu.matmul %62, %64, %cst_57 {dimension_numbers = #tpu.dot_dimension_numbers<[1], [0], [0], [1], [0, 0, 1, 1], [], []>} : vector<16x128xbf16>, vector<128x128xbf16>, vector<16x128xf32> -> vector<16x128xf32>
    %66 = arith.addf %58, %65 : vector<16x128xf32>
    %c7 = arith.constant 7 : index
    %c0_58 = arith.constant 0 : index
    %c0_59 = arith.constant 0 : index
    %67 = vector.load %arg4[%c7, %c0_58, %c0_59] : memref<9x16x64xbf16, #tpu.memory_space<vmem>>, vector<1x16x64xbf16>
    %68 = vector.shape_cast %67 : vector<1x16x64xbf16> to vector<16x64xbf16>
    %cst_60 = arith.constant dense<0.000000e+00> : vector<16x128xf32>
    %69 = tpu.matmul %68, %9, %cst_60 {dimension_numbers = #tpu.dot_dimension_numbers<[1], [0], [0], [1], [0, 0, 1, 1], [], []>} : vector<16x64xbf16>, vector<64x128xbf16>, vector<16x128xf32> -> vector<16x128xf32>
    %70 = arith.truncf %69 : vector<16x128xf32> to vector<16x128xbf16>
    %c7_61 = arith.constant 7 : index
    %c0_62 = arith.constant 0 : index
    %c0_63 = arith.constant 0 : index
    %71 = vector.load %arg5[%c7_61, %c0_62, %c0_63] : memref<9x128x128xbf16, #tpu.memory_space<vmem>>, vector<1x128x128xbf16>
    %72 = vector.shape_cast %71 : vector<1x128x128xbf16> to vector<128x128xbf16>
    %cst_64 = arith.constant dense<0.000000e+00> : vector<16x128xf32>
    %73 = tpu.matmul %70, %72, %cst_64 {dimension_numbers = #tpu.dot_dimension_numbers<[1], [0], [0], [1], [0, 0, 1, 1], [], []>} : vector<16x128xbf16>, vector<128x128xbf16>, vector<16x128xf32> -> vector<16x128xf32>
    %74 = arith.addf %66, %73 : vector<16x128xf32>
    %c8 = arith.constant 8 : index
    %c0_65 = arith.constant 0 : index
    %c0_66 = arith.constant 0 : index
    %75 = vector.load %arg4[%c8, %c0_65, %c0_66] : memref<9x16x64xbf16, #tpu.memory_space<vmem>>, vector<1x16x64xbf16>
    %76 = vector.shape_cast %75 : vector<1x16x64xbf16> to vector<16x64xbf16>
    %cst_67 = arith.constant dense<0.000000e+00> : vector<16x128xf32>
    %77 = tpu.matmul %76, %9, %cst_67 {dimension_numbers = #tpu.dot_dimension_numbers<[1], [0], [0], [1], [0, 0, 1, 1], [], []>} : vector<16x64xbf16>, vector<64x128xbf16>, vector<16x128xf32> -> vector<16x128xf32>
    %78 = arith.truncf %77 : vector<16x128xf32> to vector<16x128xbf16>
    %c8_68 = arith.constant 8 : index
    %c0_69 = arith.constant 0 : index
    %c0_70 = arith.constant 0 : index
    %79 = vector.load %arg5[%c8_68, %c0_69, %c0_70] : memref<9x128x128xbf16, #tpu.memory_space<vmem>>, vector<1x128x128xbf16>
    %80 = vector.shape_cast %79 : vector<1x128x128xbf16> to vector<128x128xbf16>
    %cst_71 = arith.constant dense<0.000000e+00> : vector<16x128xf32>
    %81 = tpu.matmul %78, %80, %cst_71 {dimension_numbers = #tpu.dot_dimension_numbers<[1], [0], [0], [1], [0, 0, 1, 1], [], []>} : vector<16x128xbf16>, vector<128x128xbf16>, vector<16x128xf32> -> vector<16x128xf32>
    %82 = arith.addf %74, %81 : vector<16x128xf32>
    %c0_72 = arith.constant 0 : index
    %c0_73 = arith.constant 0 : index
    %83 = vector.load %arg6[%c0_72, %c0_73] : memref<1x128xf32, #tpu.memory_space<vmem>>, vector<1x128xf32>
    %84 = vector.broadcast %83 : vector<1x128xf32> to vector<16x128xf32>
    %85 = arith.addf %82, %84 : vector<16x128xf32>
    %cst_74 = arith.constant 0.000000e+00 : f32
    %86 = vector.broadcast %cst_74 : f32 to vector<16x128xf32>
    %87 = arith.maximumf %85, %86 : vector<16x128xf32>
    %88 = arith.truncf %87 : vector<16x128xf32> to vector<16x128xbf16>
    %cst_75 = arith.constant 0.000000e+00 : f32
    %89 = vector.broadcast %cst_75 : f32 to vector<8x128xf32>
    %c0_76 = arith.constant 0 : index
    %c0_77 = arith.constant 0 : index
    %c0_78 = arith.constant 0 : index
    %90 = vector.load %arg7[%c0_76, %c0_77, %c0_78] : memref<9x8x16xbf16, #tpu.memory_space<vmem>>, vector<1x8x16xbf16>
    %91 = vector.shape_cast %90 : vector<1x8x16xbf16> to vector<8x16xbf16>
    %cst_79 = arith.constant dense<0.000000e+00> : vector<8x128xf32>
    %92 = tpu.matmul %91, %88, %cst_79 {dimension_numbers = #tpu.dot_dimension_numbers<[1], [0], [0], [1], [0, 0, 1, 1], [], []>} : vector<8x16xbf16>, vector<16x128xbf16>, vector<8x128xf32> -> vector<8x128xf32>
    %93 = arith.truncf %92 : vector<8x128xf32> to vector<8x128xbf16>
    %c0_80 = arith.constant 0 : index
    %c0_81 = arith.constant 0 : index
    %c0_82 = arith.constant 0 : index
    %94 = vector.load %arg8[%c0_80, %c0_81, %c0_82] : memref<9x128x128xbf16, #tpu.memory_space<vmem>>, vector<1x128x128xbf16>
    %95 = vector.shape_cast %94 : vector<1x128x128xbf16> to vector<128x128xbf16>
    %cst_83 = arith.constant dense<0.000000e+00> : vector<8x128xf32>
    %96 = tpu.matmul %93, %95, %cst_83 {dimension_numbers = #tpu.dot_dimension_numbers<[1], [0], [0], [1], [0, 0, 1, 1], [], []>} : vector<8x128xbf16>, vector<128x128xbf16>, vector<8x128xf32> -> vector<8x128xf32>
    %97 = arith.addf %89, %96 : vector<8x128xf32>
    %c1_84 = arith.constant 1 : index
    %c0_85 = arith.constant 0 : index
    %c0_86 = arith.constant 0 : index
    %98 = vector.load %arg7[%c1_84, %c0_85, %c0_86] : memref<9x8x16xbf16, #tpu.memory_space<vmem>>, vector<1x8x16xbf16>
    %99 = vector.shape_cast %98 : vector<1x8x16xbf16> to vector<8x16xbf16>
    %cst_87 = arith.constant dense<0.000000e+00> : vector<8x128xf32>
    %100 = tpu.matmul %99, %88, %cst_87 {dimension_numbers = #tpu.dot_dimension_numbers<[1], [0], [0], [1], [0, 0, 1, 1], [], []>} : vector<8x16xbf16>, vector<16x128xbf16>, vector<8x128xf32> -> vector<8x128xf32>
    %101 = arith.truncf %100 : vector<8x128xf32> to vector<8x128xbf16>
    %c1_88 = arith.constant 1 : index
    %c0_89 = arith.constant 0 : index
    %c0_90 = arith.constant 0 : index
    %102 = vector.load %arg8[%c1_88, %c0_89, %c0_90] : memref<9x128x128xbf16, #tpu.memory_space<vmem>>, vector<1x128x128xbf16>
    %103 = vector.shape_cast %102 : vector<1x128x128xbf16> to vector<128x128xbf16>
    %cst_91 = arith.constant dense<0.000000e+00> : vector<8x128xf32>
    %104 = tpu.matmul %101, %103, %cst_91 {dimension_numbers = #tpu.dot_dimension_numbers<[1], [0], [0], [1], [0, 0, 1, 1], [], []>} : vector<8x128xbf16>, vector<128x128xbf16>, vector<8x128xf32> -> vector<8x128xf32>
    %105 = arith.addf %97, %104 : vector<8x128xf32>
    %c2_92 = arith.constant 2 : index
    %c0_93 = arith.constant 0 : index
    %c0_94 = arith.constant 0 : index
    %106 = vector.load %arg7[%c2_92, %c0_93, %c0_94] : memref<9x8x16xbf16, #tpu.memory_space<vmem>>, vector<1x8x16xbf16>
    %107 = vector.shape_cast %106 : vector<1x8x16xbf16> to vector<8x16xbf16>
    %cst_95 = arith.constant dense<0.000000e+00> : vector<8x128xf32>
    %108 = tpu.matmul %107, %88, %cst_95 {dimension_numbers = #tpu.dot_dimension_numbers<[1], [0], [0], [1], [0, 0, 1, 1], [], []>} : vector<8x16xbf16>, vector<16x128xbf16>, vector<8x128xf32> -> vector<8x128xf32>
    %109 = arith.truncf %108 : vector<8x128xf32> to vector<8x128xbf16>
    %c2_96 = arith.constant 2 : index
    %c0_97 = arith.constant 0 : index
    %c0_98 = arith.constant 0 : index
    %110 = vector.load %arg8[%c2_96, %c0_97, %c0_98] : memref<9x128x128xbf16, #tpu.memory_space<vmem>>, vector<1x128x128xbf16>
    %111 = vector.shape_cast %110 : vector<1x128x128xbf16> to vector<128x128xbf16>
    %cst_99 = arith.constant dense<0.000000e+00> : vector<8x128xf32>
    %112 = tpu.matmul %109, %111, %cst_99 {dimension_numbers = #tpu.dot_dimension_numbers<[1], [0], [0], [1], [0, 0, 1, 1], [], []>} : vector<8x128xbf16>, vector<128x128xbf16>, vector<8x128xf32> -> vector<8x128xf32>
    %113 = arith.addf %105, %112 : vector<8x128xf32>
    %c3_100 = arith.constant 3 : index
    %c0_101 = arith.constant 0 : index
    %c0_102 = arith.constant 0 : index
    %114 = vector.load %arg7[%c3_100, %c0_101, %c0_102] : memref<9x8x16xbf16, #tpu.memory_space<vmem>>, vector<1x8x16xbf16>
    %115 = vector.shape_cast %114 : vector<1x8x16xbf16> to vector<8x16xbf16>
    %cst_103 = arith.constant dense<0.000000e+00> : vector<8x128xf32>
    %116 = tpu.matmul %115, %88, %cst_103 {dimension_numbers = #tpu.dot_dimension_numbers<[1], [0], [0], [1], [0, 0, 1, 1], [], []>} : vector<8x16xbf16>, vector<16x128xbf16>, vector<8x128xf32> -> vector<8x128xf32>
    %117 = arith.truncf %116 : vector<8x128xf32> to vector<8x128xbf16>
    %c3_104 = arith.constant 3 : index
    %c0_105 = arith.constant 0 : index
    %c0_106 = arith.constant 0 : index
    %118 = vector.load %arg8[%c3_104, %c0_105, %c0_106] : memref<9x128x128xbf16, #tpu.memory_space<vmem>>, vector<1x128x128xbf16>
    %119 = vector.shape_cast %118 : vector<1x128x128xbf16> to vector<128x128xbf16>
    %cst_107 = arith.constant dense<0.000000e+00> : vector<8x128xf32>
    %120 = tpu.matmul %117, %119, %cst_107 {dimension_numbers = #tpu.dot_dimension_numbers<[1], [0], [0], [1], [0, 0, 1, 1], [], []>} : vector<8x128xbf16>, vector<128x128xbf16>, vector<8x128xf32> -> vector<8x128xf32>
    %121 = arith.addf %113, %120 : vector<8x128xf32>
    %c4_108 = arith.constant 4 : index
    %c0_109 = arith.constant 0 : index
    %c0_110 = arith.constant 0 : index
    %122 = vector.load %arg7[%c4_108, %c0_109, %c0_110] : memref<9x8x16xbf16, #tpu.memory_space<vmem>>, vector<1x8x16xbf16>
    %123 = vector.shape_cast %122 : vector<1x8x16xbf16> to vector<8x16xbf16>
    %cst_111 = arith.constant dense<0.000000e+00> : vector<8x128xf32>
    %124 = tpu.matmul %123, %88, %cst_111 {dimension_numbers = #tpu.dot_dimension_numbers<[1], [0], [0], [1], [0, 0, 1, 1], [], []>} : vector<8x16xbf16>, vector<16x128xbf16>, vector<8x128xf32> -> vector<8x128xf32>
    %125 = arith.truncf %124 : vector<8x128xf32> to vector<8x128xbf16>
    %c4_112 = arith.constant 4 : index
    %c0_113 = arith.constant 0 : index
    %c0_114 = arith.constant 0 : index
    %126 = vector.load %arg8[%c4_112, %c0_113, %c0_114] : memref<9x128x128xbf16, #tpu.memory_space<vmem>>, vector<1x128x128xbf16>
    %127 = vector.shape_cast %126 : vector<1x128x128xbf16> to vector<128x128xbf16>
    %cst_115 = arith.constant dense<0.000000e+00> : vector<8x128xf32>
    %128 = tpu.matmul %125, %127, %cst_115 {dimension_numbers = #tpu.dot_dimension_numbers<[1], [0], [0], [1], [0, 0, 1, 1], [], []>} : vector<8x128xbf16>, vector<128x128xbf16>, vector<8x128xf32> -> vector<8x128xf32>
    %129 = arith.addf %121, %128 : vector<8x128xf32>
    %c5_116 = arith.constant 5 : index
    %c0_117 = arith.constant 0 : index
    %c0_118 = arith.constant 0 : index
    %130 = vector.load %arg7[%c5_116, %c0_117, %c0_118] : memref<9x8x16xbf16, #tpu.memory_space<vmem>>, vector<1x8x16xbf16>
    %131 = vector.shape_cast %130 : vector<1x8x16xbf16> to vector<8x16xbf16>
    %cst_119 = arith.constant dense<0.000000e+00> : vector<8x128xf32>
    %132 = tpu.matmul %131, %88, %cst_119 {dimension_numbers = #tpu.dot_dimension_numbers<[1], [0], [0], [1], [0, 0, 1, 1], [], []>} : vector<8x16xbf16>, vector<16x128xbf16>, vector<8x128xf32> -> vector<8x128xf32>
    %133 = arith.truncf %132 : vector<8x128xf32> to vector<8x128xbf16>
    %c5_120 = arith.constant 5 : index
    %c0_121 = arith.constant 0 : index
    %c0_122 = arith.constant 0 : index
    %134 = vector.load %arg8[%c5_120, %c0_121, %c0_122] : memref<9x128x128xbf16, #tpu.memory_space<vmem>>, vector<1x128x128xbf16>
    %135 = vector.shape_cast %134 : vector<1x128x128xbf16> to vector<128x128xbf16>
    %cst_123 = arith.constant dense<0.000000e+00> : vector<8x128xf32>
    %136 = tpu.matmul %133, %135, %cst_123 {dimension_numbers = #tpu.dot_dimension_numbers<[1], [0], [0], [1], [0, 0, 1, 1], [], []>} : vector<8x128xbf16>, vector<128x128xbf16>, vector<8x128xf32> -> vector<8x128xf32>
    %137 = arith.addf %129, %136 : vector<8x128xf32>
    %c6_124 = arith.constant 6 : index
    %c0_125 = arith.constant 0 : index
    %c0_126 = arith.constant 0 : index
    %138 = vector.load %arg7[%c6_124, %c0_125, %c0_126] : memref<9x8x16xbf16, #tpu.memory_space<vmem>>, vector<1x8x16xbf16>
    %139 = vector.shape_cast %138 : vector<1x8x16xbf16> to vector<8x16xbf16>
    %cst_127 = arith.constant dense<0.000000e+00> : vector<8x128xf32>
    %140 = tpu.matmul %139, %88, %cst_127 {dimension_numbers = #tpu.dot_dimension_numbers<[1], [0], [0], [1], [0, 0, 1, 1], [], []>} : vector<8x16xbf16>, vector<16x128xbf16>, vector<8x128xf32> -> vector<8x128xf32>
    %141 = arith.truncf %140 : vector<8x128xf32> to vector<8x128xbf16>
    %c6_128 = arith.constant 6 : index
    %c0_129 = arith.constant 0 : index
    %c0_130 = arith.constant 0 : index
    %142 = vector.load %arg8[%c6_128, %c0_129, %c0_130] : memref<9x128x128xbf16, #tpu.memory_space<vmem>>, vector<1x128x128xbf16>
    %143 = vector.shape_cast %142 : vector<1x128x128xbf16> to vector<128x128xbf16>
    %cst_131 = arith.constant dense<0.000000e+00> : vector<8x128xf32>
    %144 = tpu.matmul %141, %143, %cst_131 {dimension_numbers = #tpu.dot_dimension_numbers<[1], [0], [0], [1], [0, 0, 1, 1], [], []>} : vector<8x128xbf16>, vector<128x128xbf16>, vector<8x128xf32> -> vector<8x128xf32>
    %145 = arith.addf %137, %144 : vector<8x128xf32>
    %c7_132 = arith.constant 7 : index
    %c0_133 = arith.constant 0 : index
    %c0_134 = arith.constant 0 : index
    %146 = vector.load %arg7[%c7_132, %c0_133, %c0_134] : memref<9x8x16xbf16, #tpu.memory_space<vmem>>, vector<1x8x16xbf16>
    %147 = vector.shape_cast %146 : vector<1x8x16xbf16> to vector<8x16xbf16>
    %cst_135 = arith.constant dense<0.000000e+00> : vector<8x128xf32>
    %148 = tpu.matmul %147, %88, %cst_135 {dimension_numbers = #tpu.dot_dimension_numbers<[1], [0], [0], [1], [0, 0, 1, 1], [], []>} : vector<8x16xbf16>, vector<16x128xbf16>, vector<8x128xf32> -> vector<8x128xf32>
    %149 = arith.truncf %148 : vector<8x128xf32> to vector<8x128xbf16>
    %c7_136 = arith.constant 7 : index
    %c0_137 = arith.constant 0 : index
    %c0_138 = arith.constant 0 : index
    %150 = vector.load %arg8[%c7_136, %c0_137, %c0_138] : memref<9x128x128xbf16, #tpu.memory_space<vmem>>, vector<1x128x128xbf16>
    %151 = vector.shape_cast %150 : vector<1x128x128xbf16> to vector<128x128xbf16>
    %cst_139 = arith.constant dense<0.000000e+00> : vector<8x128xf32>
    %152 = tpu.matmul %149, %151, %cst_139 {dimension_numbers = #tpu.dot_dimension_numbers<[1], [0], [0], [1], [0, 0, 1, 1], [], []>} : vector<8x128xbf16>, vector<128x128xbf16>, vector<8x128xf32> -> vector<8x128xf32>
    %153 = arith.addf %145, %152 : vector<8x128xf32>
    %c8_140 = arith.constant 8 : index
    %c0_141 = arith.constant 0 : index
    %c0_142 = arith.constant 0 : index
    %154 = vector.load %arg7[%c8_140, %c0_141, %c0_142] : memref<9x8x16xbf16, #tpu.memory_space<vmem>>, vector<1x8x16xbf16>
    %155 = vector.shape_cast %154 : vector<1x8x16xbf16> to vector<8x16xbf16>
    %cst_143 = arith.constant dense<0.000000e+00> : vector<8x128xf32>
    %156 = tpu.matmul %155, %88, %cst_143 {dimension_numbers = #tpu.dot_dimension_numbers<[1], [0], [0], [1], [0, 0, 1, 1], [], []>} : vector<8x16xbf16>, vector<16x128xbf16>, vector<8x128xf32> -> vector<8x128xf32>
    %157 = arith.truncf %156 : vector<8x128xf32> to vector<8x128xbf16>
    %c8_144 = arith.constant 8 : index
    %c0_145 = arith.constant 0 : index
    %c0_146 = arith.constant 0 : index
    %158 = vector.load %arg8[%c8_144, %c0_145, %c0_146] : memref<9x128x128xbf16, #tpu.memory_space<vmem>>, vector<1x128x128xbf16>
    %159 = vector.shape_cast %158 : vector<1x128x128xbf16> to vector<128x128xbf16>
    %cst_147 = arith.constant dense<0.000000e+00> : vector<8x128xf32>
    %160 = tpu.matmul %157, %159, %cst_147 {dimension_numbers = #tpu.dot_dimension_numbers<[1], [0], [0], [1], [0, 0, 1, 1], [], []>} : vector<8x128xbf16>, vector<128x128xbf16>, vector<8x128xf32> -> vector<8x128xf32>
    %161 = arith.addf %153, %160 : vector<8x128xf32>
    %c0_148 = arith.constant 0 : index
    %c0_149 = arith.constant 0 : index
    %162 = vector.load %arg9[%c0_148, %c0_149] : memref<1x128xf32, #tpu.memory_space<vmem>>, vector<1x128xf32>
    %163 = vector.broadcast %162 : vector<1x128xf32> to vector<8x128xf32>
    %164 = arith.addf %161, %163 : vector<8x128xf32>
    %cst_150 = arith.constant 0.000000e+00 : f32
    %165 = vector.broadcast %cst_150 : f32 to vector<8x128xf32>
    %166 = arith.maximumf %164, %165 : vector<8x128xf32>
    %167 = arith.truncf %166 : vector<8x128xf32> to vector<8x128xbf16>
    %cst_151 = arith.constant 0.000000e+00 : f32
    %168 = vector.broadcast %cst_151 : f32 to vector<8x128xf32>
    %c0_152 = arith.constant 0 : index
    %c0_153 = arith.constant 0 : index
    %c0_154 = arith.constant 0 : index
    %169 = vector.load %arg10[%c0_152, %c0_153, %c0_154] : memref<9x8x8xbf16, #tpu.memory_space<vmem>>, vector<1x8x8xbf16>
    %170 = vector.shape_cast %169 : vector<1x8x8xbf16> to vector<8x8xbf16>
    %cst_155 = arith.constant dense<0.000000e+00> : vector<8x128xf32>
    %171 = tpu.matmul %170, %167, %cst_155 {dimension_numbers = #tpu.dot_dimension_numbers<[1], [0], [0], [1], [0, 0, 1, 1], [], []>} : vector<8x8xbf16>, vector<8x128xbf16>, vector<8x128xf32> -> vector<8x128xf32>
    %172 = arith.truncf %171 : vector<8x128xf32> to vector<8x128xbf16>
    %c0_156 = arith.constant 0 : index
    %c0_157 = arith.constant 0 : index
    %c0_158 = arith.constant 0 : index
    %173 = vector.load %arg11[%c0_156, %c0_157, %c0_158] : memref<9x128x128xbf16, #tpu.memory_space<vmem>>, vector<1x128x128xbf16>
    %174 = vector.shape_cast %173 : vector<1x128x128xbf16> to vector<128x128xbf16>
    %cst_159 = arith.constant dense<0.000000e+00> : vector<8x128xf32>
    %175 = tpu.matmul %172, %174, %cst_159 {dimension_numbers = #tpu.dot_dimension_numbers<[1], [0], [0], [1], [0, 0, 1, 1], [], []>} : vector<8x128xbf16>, vector<128x128xbf16>, vector<8x128xf32> -> vector<8x128xf32>
    %176 = arith.addf %168, %175 : vector<8x128xf32>
    %c1_160 = arith.constant 1 : index
    %c0_161 = arith.constant 0 : index
    %c0_162 = arith.constant 0 : index
    %177 = vector.load %arg10[%c1_160, %c0_161, %c0_162] : memref<9x8x8xbf16, #tpu.memory_space<vmem>>, vector<1x8x8xbf16>
    %178 = vector.shape_cast %177 : vector<1x8x8xbf16> to vector<8x8xbf16>
    %cst_163 = arith.constant dense<0.000000e+00> : vector<8x128xf32>
    %179 = tpu.matmul %178, %167, %cst_163 {dimension_numbers = #tpu.dot_dimension_numbers<[1], [0], [0], [1], [0, 0, 1, 1], [], []>} : vector<8x8xbf16>, vector<8x128xbf16>, vector<8x128xf32> -> vector<8x128xf32>
    %180 = arith.truncf %179 : vector<8x128xf32> to vector<8x128xbf16>
    %c1_164 = arith.constant 1 : index
    %c0_165 = arith.constant 0 : index
    %c0_166 = arith.constant 0 : index
    %181 = vector.load %arg11[%c1_164, %c0_165, %c0_166] : memref<9x128x128xbf16, #tpu.memory_space<vmem>>, vector<1x128x128xbf16>
    %182 = vector.shape_cast %181 : vector<1x128x128xbf16> to vector<128x128xbf16>
    %cst_167 = arith.constant dense<0.000000e+00> : vector<8x128xf32>
    %183 = tpu.matmul %180, %182, %cst_167 {dimension_numbers = #tpu.dot_dimension_numbers<[1], [0], [0], [1], [0, 0, 1, 1], [], []>} : vector<8x128xbf16>, vector<128x128xbf16>, vector<8x128xf32> -> vector<8x128xf32>
    %184 = arith.addf %176, %183 : vector<8x128xf32>
    %c2_168 = arith.constant 2 : index
    %c0_169 = arith.constant 0 : index
    %c0_170 = arith.constant 0 : index
    %185 = vector.load %arg10[%c2_168, %c0_169, %c0_170] : memref<9x8x8xbf16, #tpu.memory_space<vmem>>, vector<1x8x8xbf16>
    %186 = vector.shape_cast %185 : vector<1x8x8xbf16> to vector<8x8xbf16>
    %cst_171 = arith.constant dense<0.000000e+00> : vector<8x128xf32>
    %187 = tpu.matmul %186, %167, %cst_171 {dimension_numbers = #tpu.dot_dimension_numbers<[1], [0], [0], [1], [0, 0, 1, 1], [], []>} : vector<8x8xbf16>, vector<8x128xbf16>, vector<8x128xf32> -> vector<8x128xf32>
    %188 = arith.truncf %187 : vector<8x128xf32> to vector<8x128xbf16>
    %c2_172 = arith.constant 2 : index
    %c0_173 = arith.constant 0 : index
    %c0_174 = arith.constant 0 : index
    %189 = vector.load %arg11[%c2_172, %c0_173, %c0_174] : memref<9x128x128xbf16, #tpu.memory_space<vmem>>, vector<1x128x128xbf16>
    %190 = vector.shape_cast %189 : vector<1x128x128xbf16> to vector<128x128xbf16>
    %cst_175 = arith.constant dense<0.000000e+00> : vector<8x128xf32>
    %191 = tpu.matmul %188, %190, %cst_175 {dimension_numbers = #tpu.dot_dimension_numbers<[1], [0], [0], [1], [0, 0, 1, 1], [], []>} : vector<8x128xbf16>, vector<128x128xbf16>, vector<8x128xf32> -> vector<8x128xf32>
    %192 = arith.addf %184, %191 : vector<8x128xf32>
    %c3_176 = arith.constant 3 : index
    %c0_177 = arith.constant 0 : index
    %c0_178 = arith.constant 0 : index
    %193 = vector.load %arg10[%c3_176, %c0_177, %c0_178] : memref<9x8x8xbf16, #tpu.memory_space<vmem>>, vector<1x8x8xbf16>
    %194 = vector.shape_cast %193 : vector<1x8x8xbf16> to vector<8x8xbf16>
    %cst_179 = arith.constant dense<0.000000e+00> : vector<8x128xf32>
    %195 = tpu.matmul %194, %167, %cst_179 {dimension_numbers = #tpu.dot_dimension_numbers<[1], [0], [0], [1], [0, 0, 1, 1], [], []>} : vector<8x8xbf16>, vector<8x128xbf16>, vector<8x128xf32> -> vector<8x128xf32>
    %196 = arith.truncf %195 : vector<8x128xf32> to vector<8x128xbf16>
    %c3_180 = arith.constant 3 : index
    %c0_181 = arith.constant 0 : index
    %c0_182 = arith.constant 0 : index
    %197 = vector.load %arg11[%c3_180, %c0_181, %c0_182] : memref<9x128x128xbf16, #tpu.memory_space<vmem>>, vector<1x128x128xbf16>
    %198 = vector.shape_cast %197 : vector<1x128x128xbf16> to vector<128x128xbf16>
    %cst_183 = arith.constant dense<0.000000e+00> : vector<8x128xf32>
    %199 = tpu.matmul %196, %198, %cst_183 {dimension_numbers = #tpu.dot_dimension_numbers<[1], [0], [0], [1], [0, 0, 1, 1], [], []>} : vector<8x128xbf16>, vector<128x128xbf16>, vector<8x128xf32> -> vector<8x128xf32>
    %200 = arith.addf %192, %199 : vector<8x128xf32>
    %c4_184 = arith.constant 4 : index
    %c0_185 = arith.constant 0 : index
    %c0_186 = arith.constant 0 : index
    %201 = vector.load %arg10[%c4_184, %c0_185, %c0_186] : memref<9x8x8xbf16, #tpu.memory_space<vmem>>, vector<1x8x8xbf16>
    %202 = vector.shape_cast %201 : vector<1x8x8xbf16> to vector<8x8xbf16>
    %cst_187 = arith.constant dense<0.000000e+00> : vector<8x128xf32>
    %203 = tpu.matmul %202, %167, %cst_187 {dimension_numbers = #tpu.dot_dimension_numbers<[1], [0], [0], [1], [0, 0, 1, 1], [], []>} : vector<8x8xbf16>, vector<8x128xbf16>, vector<8x128xf32> -> vector<8x128xf32>
    %204 = arith.truncf %203 : vector<8x128xf32> to vector<8x128xbf16>
    %c4_188 = arith.constant 4 : index
    %c0_189 = arith.constant 0 : index
    %c0_190 = arith.constant 0 : index
    %205 = vector.load %arg11[%c4_188, %c0_189, %c0_190] : memref<9x128x128xbf16, #tpu.memory_space<vmem>>, vector<1x128x128xbf16>
    %206 = vector.shape_cast %205 : vector<1x128x128xbf16> to vector<128x128xbf16>
    %cst_191 = arith.constant dense<0.000000e+00> : vector<8x128xf32>
    %207 = tpu.matmul %204, %206, %cst_191 {dimension_numbers = #tpu.dot_dimension_numbers<[1], [0], [0], [1], [0, 0, 1, 1], [], []>} : vector<8x128xbf16>, vector<128x128xbf16>, vector<8x128xf32> -> vector<8x128xf32>
    %208 = arith.addf %200, %207 : vector<8x128xf32>
    %c5_192 = arith.constant 5 : index
    %c0_193 = arith.constant 0 : index
    %c0_194 = arith.constant 0 : index
    %209 = vector.load %arg10[%c5_192, %c0_193, %c0_194] : memref<9x8x8xbf16, #tpu.memory_space<vmem>>, vector<1x8x8xbf16>
    %210 = vector.shape_cast %209 : vector<1x8x8xbf16> to vector<8x8xbf16>
    %cst_195 = arith.constant dense<0.000000e+00> : vector<8x128xf32>
    %211 = tpu.matmul %210, %167, %cst_195 {dimension_numbers = #tpu.dot_dimension_numbers<[1], [0], [0], [1], [0, 0, 1, 1], [], []>} : vector<8x8xbf16>, vector<8x128xbf16>, vector<8x128xf32> -> vector<8x128xf32>
    %212 = arith.truncf %211 : vector<8x128xf32> to vector<8x128xbf16>
    %c5_196 = arith.constant 5 : index
    %c0_197 = arith.constant 0 : index
    %c0_198 = arith.constant 0 : index
    %213 = vector.load %arg11[%c5_196, %c0_197, %c0_198] : memref<9x128x128xbf16, #tpu.memory_space<vmem>>, vector<1x128x128xbf16>
    %214 = vector.shape_cast %213 : vector<1x128x128xbf16> to vector<128x128xbf16>
    %cst_199 = arith.constant dense<0.000000e+00> : vector<8x128xf32>
    %215 = tpu.matmul %212, %214, %cst_199 {dimension_numbers = #tpu.dot_dimension_numbers<[1], [0], [0], [1], [0, 0, 1, 1], [], []>} : vector<8x128xbf16>, vector<128x128xbf16>, vector<8x128xf32> -> vector<8x128xf32>
    %216 = arith.addf %208, %215 : vector<8x128xf32>
    %c6_200 = arith.constant 6 : index
    %c0_201 = arith.constant 0 : index
    %c0_202 = arith.constant 0 : index
    %217 = vector.load %arg10[%c6_200, %c0_201, %c0_202] : memref<9x8x8xbf16, #tpu.memory_space<vmem>>, vector<1x8x8xbf16>
    %218 = vector.shape_cast %217 : vector<1x8x8xbf16> to vector<8x8xbf16>
    %cst_203 = arith.constant dense<0.000000e+00> : vector<8x128xf32>
    %219 = tpu.matmul %218, %167, %cst_203 {dimension_numbers = #tpu.dot_dimension_numbers<[1], [0], [0], [1], [0, 0, 1, 1], [], []>} : vector<8x8xbf16>, vector<8x128xbf16>, vector<8x128xf32> -> vector<8x128xf32>
    %220 = arith.truncf %219 : vector<8x128xf32> to vector<8x128xbf16>
    %c6_204 = arith.constant 6 : index
    %c0_205 = arith.constant 0 : index
    %c0_206 = arith.constant 0 : index
    %221 = vector.load %arg11[%c6_204, %c0_205, %c0_206] : memref<9x128x128xbf16, #tpu.memory_space<vmem>>, vector<1x128x128xbf16>
    %222 = vector.shape_cast %221 : vector<1x128x128xbf16> to vector<128x128xbf16>
    %cst_207 = arith.constant dense<0.000000e+00> : vector<8x128xf32>
    %223 = tpu.matmul %220, %222, %cst_207 {dimension_numbers = #tpu.dot_dimension_numbers<[1], [0], [0], [1], [0, 0, 1, 1], [], []>} : vector<8x128xbf16>, vector<128x128xbf16>, vector<8x128xf32> -> vector<8x128xf32>
    %224 = arith.addf %216, %223 : vector<8x128xf32>
    %c7_208 = arith.constant 7 : index
    %c0_209 = arith.constant 0 : index
    %c0_210 = arith.constant 0 : index
    %225 = vector.load %arg10[%c7_208, %c0_209, %c0_210] : memref<9x8x8xbf16, #tpu.memory_space<vmem>>, vector<1x8x8xbf16>
    %226 = vector.shape_cast %225 : vector<1x8x8xbf16> to vector<8x8xbf16>
    %cst_211 = arith.constant dense<0.000000e+00> : vector<8x128xf32>
    %227 = tpu.matmul %226, %167, %cst_211 {dimension_numbers = #tpu.dot_dimension_numbers<[1], [0], [0], [1], [0, 0, 1, 1], [], []>} : vector<8x8xbf16>, vector<8x128xbf16>, vector<8x128xf32> -> vector<8x128xf32>
    %228 = arith.truncf %227 : vector<8x128xf32> to vector<8x128xbf16>
    %c7_212 = arith.constant 7 : index
    %c0_213 = arith.constant 0 : index
    %c0_214 = arith.constant 0 : index
    %229 = vector.load %arg11[%c7_212, %c0_213, %c0_214] : memref<9x128x128xbf16, #tpu.memory_space<vmem>>, vector<1x128x128xbf16>
    %230 = vector.shape_cast %229 : vector<1x128x128xbf16> to vector<128x128xbf16>
    %cst_215 = arith.constant dense<0.000000e+00> : vector<8x128xf32>
    %231 = tpu.matmul %228, %230, %cst_215 {dimension_numbers = #tpu.dot_dimension_numbers<[1], [0], [0], [1], [0, 0, 1, 1], [], []>} : vector<8x128xbf16>, vector<128x128xbf16>, vector<8x128xf32> -> vector<8x128xf32>
    %232 = arith.addf %224, %231 : vector<8x128xf32>
    %c8_216 = arith.constant 8 : index
    %c0_217 = arith.constant 0 : index
    %c0_218 = arith.constant 0 : index
    %233 = vector.load %arg10[%c8_216, %c0_217, %c0_218] : memref<9x8x8xbf16, #tpu.memory_space<vmem>>, vector<1x8x8xbf16>
    %234 = vector.shape_cast %233 : vector<1x8x8xbf16> to vector<8x8xbf16>
    %cst_219 = arith.constant dense<0.000000e+00> : vector<8x128xf32>
    %235 = tpu.matmul %234, %167, %cst_219 {dimension_numbers = #tpu.dot_dimension_numbers<[1], [0], [0], [1], [0, 0, 1, 1], [], []>} : vector<8x8xbf16>, vector<8x128xbf16>, vector<8x128xf32> -> vector<8x128xf32>
    %236 = arith.truncf %235 : vector<8x128xf32> to vector<8x128xbf16>
    %c8_220 = arith.constant 8 : index
    %c0_221 = arith.constant 0 : index
    %c0_222 = arith.constant 0 : index
    %237 = vector.load %arg11[%c8_220, %c0_221, %c0_222] : memref<9x128x128xbf16, #tpu.memory_space<vmem>>, vector<1x128x128xbf16>
    %238 = vector.shape_cast %237 : vector<1x128x128xbf16> to vector<128x128xbf16>
    %cst_223 = arith.constant dense<0.000000e+00> : vector<8x128xf32>
    %239 = tpu.matmul %236, %238, %cst_223 {dimension_numbers = #tpu.dot_dimension_numbers<[1], [0], [0], [1], [0, 0, 1, 1], [], []>} : vector<8x128xbf16>, vector<128x128xbf16>, vector<8x128xf32> -> vector<8x128xf32>
    %240 = arith.addf %232, %239 : vector<8x128xf32>
    %c0_224 = arith.constant 0 : index
    %c0_225 = arith.constant 0 : index
    %241 = vector.load %arg12[%c0_224, %c0_225] : memref<1x128xf32, #tpu.memory_space<vmem>>, vector<1x128xf32>
    %242 = vector.broadcast %241 : vector<1x128xf32> to vector<8x128xf32>
    %243 = arith.addf %240, %242 : vector<8x128xf32>
    %cst_226 = arith.constant 0.000000e+00 : f32
    %244 = vector.broadcast %cst_226 : f32 to vector<8x128xf32>
    %245 = arith.maximumf %243, %244 : vector<8x128xf32>
    %c0_227 = arith.constant 0 : index
    %c0_228 = arith.constant 0 : index
    %c0_229 = arith.constant 0 : index
    %246 = vector.load %arg13[%c0_227, %c0_228, %c0_229] : memref<1x8x128xf32, #tpu.memory_space<vmem>>, vector<1x8x128xf32>
    %247 = vector.shape_cast %246 : vector<1x8x128xf32> to vector<8x128xf32>
    %248 = vector.shape_cast %245 : vector<8x128xf32> to vector<1x8x128xf32>
    tpu.vector_store %arg13[%c0_227, %c0_228, %c0_229], %248 {strides = array<i32>} : memref<1x8x128xf32, #tpu.memory_space<vmem>>, vector<1x8x128xf32>,
    return
  }
  func.func @transform_0(%arg0: i32) -> (i32, i32, i32) {
    %c0_i32 = arith.constant 0 : i32
    %c0_i32_0 = arith.constant 0 : i32
    %c0_i32_1 = arith.constant 0 : i32
    return %arg0, %c0_i32, %c0_i32_0 : i32, i32, i32
  }
  func.func @transform_1(%arg0: i32) -> (i32, i32) {
    %c0_i32 = arith.constant 0 : i32
    %c0_i32_0 = arith.constant 0 : i32
    %c0_i32_1 = arith.constant 0 : i32
    return %c0_i32, %c0_i32_0 : i32, i32
  }
  func.func @transform_2(%arg0: i32) -> (i32, i32) {
    %c0_i32 = arith.constant 0 : i32
    %c0_i32_0 = arith.constant 0 : i32
    %c0_i32_1 = arith.constant 0 : i32
    return %c0_i32, %c0_i32_0 : i32, i32
  }
  func.func @transform_3(%arg0: i32) -> (i32, i32, i32) {
    %c0_i32 = arith.constant 0 : i32
    %c0_i32_0 = arith.constant 0 : i32
    %c0_i32_1 = arith.constant 0 : i32
    %c0_i32_2 = arith.constant 0 : i32
    return %c0_i32, %c0_i32_0, %c0_i32_1 : i32, i32, i32
  }
  func.func @transform_4(%arg0: i32) -> (i32, i32, i32) {
    %c0_i32 = arith.constant 0 : i32
    %c0_i32_0 = arith.constant 0 : i32
    %c0_i32_1 = arith.constant 0 : i32
    %c0_i32_2 = arith.constant 0 : i32
    return %c0_i32, %c0_i32_0, %c0_i32_1 : i32, i32, i32
  }
  func.func @transform_5(%arg0: i32) -> (i32, i32) {
    %c0_i32 = arith.constant 0 : i32
    %c0_i32_0 = arith.constant 0 : i32
    %c0_i32_1 = arith.constant 0 : i32
    return %c0_i32, %c0_i32_0 : i32, i32
  }
  func.func @transform_6(%arg0: i32) -> (i32, i32, i32) {
    %c0_i32 = arith.constant 0 : i32
    %c0_i32_0 = arith.constant 0 : i32
    %c0_i32_1 = arith.constant 0 : i32
    %c0_i32_2 = arith.constant 0 : i32
    return %c0_i32, %c0_i32_0, %c0_i32_1 : i32, i32, i32
  }
  func.func @transform_7(%arg0: i32) -> (i32, i32, i32) {
    %c0_i32 = arith.constant 0 : i32
    %c0_i32_0 = arith.constant 0 : i32
    %c0_i32_1 = arith.constant 0 : i32
    %c0_i32_2 = arith.constant 0 : i32
    return %c0_i32, %c0_i32_0, %c0_i32_1 : i32, i32, i32
  }
  func.func @transform_8(%arg0: i32) -> (i32, i32) {
    %c0_i32 = arith.constant 0 : i32
    %c0_i32_0 = arith.constant 0 : i32
    %c0_i32_1 = arith.constant 0 : i32
    return %c0_i32, %c0_i32_0 : i32, i32
  }
  func.func @transform_9(%arg0: i32) -> (i32, i32, i32) {
    %c0_i32 = arith.constant 0 : i32
    %c0_i32_0 = arith.constant 0 : i32
    %c0_i32_1 = arith.constant 0 : i32
    %c0_i32_2 = arith.constant 0 : i32
    return %c0_i32, %c0_i32_0, %c0_i32_1 : i32, i32, i32
  }
  func.func @transform_10(%arg0: i32) -> (i32, i32, i32) {
    %c0_i32 = arith.constant 0 : i32
    %c0_i32_0 = arith.constant 0 : i32
    %c0_i32_1 = arith.constant 0 : i32
    %c0_i32_2 = arith.constant 0 : i32
    return %c0_i32, %c0_i32_0, %c0_i32_1 : i32, i32, i32
  }
  func.func @transform_11(%arg0: i32) -> (i32, i32) {
    %c0_i32 = arith.constant 0 : i32
    %c0_i32_0 = arith.constant 0 : i32
    %c0_i32_1 = arith.constant 0 : i32
    return %c0_i32, %c0_i32_0 : i32, i32
  }
  func.func @transform_12(%arg0: i32) -> (i32, i32, i32) {
    %c0_i32 = arith.constant 0 : i32
    %c0_i32_0 = arith.constant 0 : i32
    %c0_i32_1 = arith.constant 0 : i32
    return %arg0, %c0_i32, %c0_i32_0 : i32, i32, i32
  }
}

</mosaic_0001>

<llo_original>
// kernel: input_image_encoder_forward.1
$region0: #{input_image_encoder_forward.1}
  #allocation0 [shape = 'u32[]', space=smem, size = 0x4, offset = 0x4, fixed_abs, tag = 'smem constant byte address 0x4 - core index']
  #allocation1 [shape = 'u32[72,128]{1,0:T(1,128)}', space=vmem, size = 0x9000, scoped, tag = 'internal scratch']
  %s0 = inlined_call_operand.vmem [shape: bf16[2,64,256], index: 0, kind: input, shape index: {}]
  %s1 = inlined_call_operand.vmem [shape: bf16[256,128], index: 1, kind: input, shape index: {}]
  %s2 = inlined_call_operand.vmem [shape: f32[1,128], index: 2, kind: input, shape index: {}]
  %s3 = inlined_call_operand.vmem [shape: bf16[9,16,64], index: 3, kind: input, shape index: {}]
  %s4 = inlined_call_operand.vmem [shape: bf16[9,128,128], index: 4, kind: input, shape index: {}]
  %s5 = inlined_call_operand.vmem [shape: f32[1,128], index: 5, kind: input, shape index: {}]
  %s6 = inlined_call_operand.vmem [shape: bf16[9,8,16], index: 6, kind: input, shape index: {}]
  %s7 = inlined_call_operand.vmem [shape: bf16[9,128,128], index: 7, kind: input, shape index: {}]
  %s8 = inlined_call_operand.vmem [shape: f32[1,128], index: 8, kind: input, shape index: {}]
  %s9 = inlined_call_operand.vmem [shape: bf16[9,8,8], index: 9, kind: input, shape index: {}]
  %s10 = inlined_call_operand.vmem [shape: bf16[9,128,128], index: 10, kind: input, shape index: {}]
  %s11 = inlined_call_operand.vmem [shape: f32[1,128], index: 11, kind: input, shape index: {}]
  %s12 = inlined_call_operand.vmem [shape: f32[2,8,128], index: 12, kind: output, shape index: {}]
  %s13 = sld [smem:[#allocation0]]
  $region81: #{input_image_encoder_forward.1} parent=0
    _
  %s15 = ssub.s32 1, %s13
  %s16 = scalar_select 0, %s15, %s13
  loop: start=0, step=1, limit=4
  $region2: #{input_image_encoder_forward.1} parent=0 // loop_pre_header
    _
  $region3: #{input_image_encoder_forward.1} parent=0 // loop_header
    %s18 = sphi 0, %s22
    %p19 = scmp.ge.s32.totalorder %s18, 4
    %s28 = sphi 0, %s30
    %s31 = sphi 0, %s28
    %s32 = sphi 0, %s31
    %s48 = sphi 0, %s32
    %s52 = sphi 0, %s52
    %s54 = sphi 0, %s52
    %s55 = sphi 0, %s54
    %s69 = sphi 0, %s55
    %s73 = sphi 0, %s73
    %s75 = sphi 0, %s73
    %s76 = sphi 0, %s75
    %s90 = sphi 0, %s76
    %s94 = sphi 0, %s94
    %s96 = sphi 0, %s94
    %s97 = sphi 0, %s96
    %s111 = sphi 0, %s97
    %s115 = sphi 0, %s115
    %s117 = sphi 0, %s115
    %s118 = sphi 0, %s117
    %s132 = sphi 0, %s118
    %s136 = sphi 0, %s136
    %s138 = sphi 0, %s136
    %s139 = sphi 0, %s138
    %s153 = sphi 0, %s139
    %s157 = sphi 0, %s157
    %s159 = sphi 0, %s157
    %s160 = sphi 0, %s159
    %s174 = sphi 0, %s160
    %s178 = sphi 0, %s178
    %s180 = sphi 0, %s178
    %s181 = sphi 0, %s180
    %s195 = sphi 0, %s181
    %s199 = sphi 0, %s199
    %s201 = sphi 0, %s199
    %s202 = sphi 0, %s201
    %s216 = sphi 0, %s202
    %s220 = sphi 0, %s220
    %s222 = sphi 0, %s220
    %s223 = sphi 0, %s222
    %s237 = sphi 0, %s223
    %s241 = sphi 0, %s241
    %s243 = sphi 0, %s241
    %s244 = sphi 0, %s243
    %s258 = sphi 0, %s244
    %s262 = sphi 0, %s262
    %s264 = sphi 0, %s262
    %s265 = sphi 0, %s264
    %s279 = sphi 0, %s265
    %s285 = sphi 0, %s287
    %s288 = sphi 0, %s285
    %s289 = sphi 0, %s288
    %s305 = sphi 0, %s289
  $region4: #{input_image_encoder_forward.1} parent=0 // loop_header_branch
    %21 = sbr.rel (%p19) target = $region8
  $region5: #{input_image_encoder_forward.1} parent=0 // loop_body
    %s23 = ssub.s32 %s18, 1
    %s24 = ssub.s32 %s18, 2
    %s25 = sadd.s32 %s18, 1
    %s26 = ssub.s32 %s18, %s25
    %p27 = scmp.eq.s32.totalorder %s26, 0
    %s29 = sadd.s32 %s28, 1
    %s30 = scalar_select %p27, %s28, %s29
    %p33 = pneg %p27
    %p34 = scmp.eq.s32.totalorder %s18, 1
    %p35 = por %p33, %p34
    %p36 = scmp.ne.s32.totalorder %s28, %s31
    %p37 = scmp.eq.s32.totalorder %s18, 0
    %p38 = por %p36, %p37
    %p39 = scmp.ne.s32.totalorder %s28, %s31
    %p40 = scmp.eq.s32.totalorder %s23, 1
    %p41 = por %p39, %p40
    %p42 = scmp.ne.s32.totalorder %s31, %s32
    %p43 = scmp.eq.s32.totalorder %s23, 0
    %p44 = por %p42, %p43
    %p45 = scmp.ne.s32.totalorder %s31, %s32
    %p46 = scmp.eq.s32.totalorder %s24, 1
    %p47 = por %p45, %p46
    %p49 = scmp.ne.s32.totalorder %s32, %s48
    %p50 = scmp.eq.s32.totalorder %s24, 0
    %p51 = por %p49, %p50
    %s53 = sadd.s32 %s52, 1
    %p56 = scmp.eq.s32.totalorder %s18, 1
    %p57 = scmp.ne.s32.totalorder %s52, %s54
    %p58 = scmp.eq.s32.totalorder %s18, 0
    %p59 = por %p57, %p58
    %p60 = scmp.ne.s32.totalorder %s52, %s54
    %p61 = scmp.eq.s32.totalorder %s23, 1
    %p62 = por %p60, %p61
    %p63 = scmp.ne.s32.totalorder %s54, %s55
    %p64 = scmp.eq.s32.totalorder %s23, 0
    %p65 = por %p63, %p64
    %p66 = scmp.ne.s32.totalorder %s54, %s55
    %p67 = scmp.eq.s32.totalorder %s24, 1
    %p68 = por %p66, %p67
    %p70 = scmp.ne.s32.totalorder %s55, %s69
    %p71 = scmp.eq.s32.totalorder %s24, 0
    %p72 = por %p70, %p71
    %s74 = sadd.s32 %s73, 1
    %p77 = scmp.eq.s32.totalorder %s18, 1
    %p78 = scmp.ne.s32.totalorder %s73, %s75
    %p79 = scmp.eq.s32.totalorder %s18, 0
    %p80 = por %p78, %p79
    %p81 = scmp.ne.s32.totalorder %s73, %s75
    %p82 = scmp.eq.s32.totalorder %s23, 1
    %p83 = por %p81, %p82
    %p84 = scmp.ne.s32.totalorder %s75, %s76
    %p85 = scmp.eq.s32.totalorder %s23, 0
    %p86 = por %p84, %p85
    %p87 = scmp.ne.s32.totalorder %s75, %s76
    %p88 = scmp.eq.s32.totalorder %s24, 1
    %p89 = por %p87, %p88
    %p91 = scmp.ne.s32.totalorder %s76, %s90
    %p92 = scmp.eq.s32.totalorder %s24, 0
    %p93 = por %p91, %p92
    %s95 = sadd.s32 %s94, 1
    %p98 = scmp.eq.s32.totalorder %s18, 1
    %p99 = scmp.ne.s32.totalorder %s94, %s96
    %p100 = scmp.eq.s32.totalorder %s18, 0
    %p101 = por %p99, %p100
    %p102 = scmp.ne.s32.totalorder %s94, %s96
    %p103 = scmp.eq.s32.totalorder %s23, 1
    %p104 = por %p102, %p103
    %p105 = scmp.ne.s32.totalorder %s96, %s97
    %p106 = scmp.eq.s32.totalorder %s23, 0
    %p107 = por %p105, %p106
    %p108 = scmp.ne.s32.totalorder %s96, %s97
    %p109 = scmp.eq.s32.totalorder %s24, 1
    %p110 = por %p108, %p109
    %p112 = scmp.ne.s32.totalorder %s97, %s111
    %p113 = scmp.eq.s32.totalorder %s24, 0
    %p114 = por %p112, %p113
    %s116 = sadd.s32 %s115, 1
    %p119 = scmp.eq.s32.totalorder %s18, 1
    %p120 = scmp.ne.s32.totalorder %s115, %s117
    %p121 = scmp.eq.s32.totalorder %s18, 0
    %p122 = por %p120, %p121
    %p123 = scmp.ne.s32.totalorder %s115, %s117
    %p124 = scmp.eq.s32.totalorder %s23, 1
    %p125 = por %p123, %p124
    %p126 = scmp.ne.s32.totalorder %s117, %s118
    %p127 = scmp.eq.s32.totalorder %s23, 0
    %p128 = por %p126, %p127
    %p129 = scmp.ne.s32.totalorder %s117, %s118
    %p130 = scmp.eq.s32.totalorder %s24, 1
    %p131 = por %p129, %p130
    %p133 = scmp.ne.s32.totalorder %s118, %s132
    %p134 = scmp.eq.s32.totalorder %s24, 0
    %p135 = por %p133, %p134
    %s137 = sadd.s32 %s136, 1
    %p140 = scmp.eq.s32.totalorder %s18, 1
    %p141 = scmp.ne.s32.totalorder %s136, %s138
    %p142 = scmp.eq.s32.totalorder %s18, 0
    %p143 = por %p141, %p142
    %p144 = scmp.ne.s32.totalorder %s136, %s138
    %p145 = scmp.eq.s32.totalorder %s23, 1
    %p146 = por %p144, %p145
    %p147 = scmp.ne.s32.totalorder %s138, %s139
    %p148 = scmp.eq.s32.totalorder %s23, 0
    %p149 = por %p147, %p148
    %p150 = scmp.ne.s32.totalorder %s138, %s139
    %p151 = scmp.eq.s32.totalorder %s24, 1
    %p152 = por %p150, %p151
    %p154 = scmp.ne.s32.totalorder %s139, %s153
    %p155 = scmp.eq.s32.totalorder %s24, 0
    %p156 = por %p154, %p155
    %s158 = sadd.s32 %s157, 1
    %p161 = scmp.eq.s32.totalorder %s18, 1
    %p162 = scmp.ne.s32.totalorder %s157, %s159
    %p163 = scmp.eq.s32.totalorder %s18, 0
    %p164 = por %p162, %p163
    %p165 = scmp.ne.s32.totalorder %s157, %s159
    %p166 = scmp.eq.s32.totalorder %s23, 1
    %p167 = por %p165, %p166
    %p168 = scmp.ne.s32.totalorder %s159, %s160
    %p169 = scmp.eq.s32.totalorder %s23, 0
    %p170 = por %p168, %p169
    %p171 = scmp.ne.s32.totalorder %s159, %s160
    %p172 = scmp.eq.s32.totalorder %s24, 1
    %p173 = por %p171, %p172
    %p175 = scmp.ne.s32.totalorder %s160, %s174
    %p176 = scmp.eq.s32.totalorder %s24, 0
    %p177 = por %p175, %p176
    %s179 = sadd.s32 %s178, 1
    %p182 = scmp.eq.s32.totalorder %s18, 1
    %p183 = scmp.ne.s32.totalorder %s178, %s180
    %p184 = scmp.eq.s32.totalorder %s18, 0
    %p185 = por %p183, %p184
    %p186 = scmp.ne.s32.totalorder %s178, %s180
    %p187 = scmp.eq.s32.totalorder %s23, 1
    %p188 = por %p186, %p187
    %p189 = scmp.ne.s32.totalorder %s180, %s181
    %p190 = scmp.eq.s32.totalorder %s23, 0
    %p191 = por %p189, %p190
    %p192 = scmp.ne.s32.totalorder %s180, %s181
    %p193 = scmp.eq.s32.totalorder %s24, 1
    %p194 = por %p192, %p193
    %p196 = scmp.ne.s32.totalorder %s181, %s195
    %p197 = scmp.eq.s32.totalorder %s24, 0
    %p198 = por %p196, %p197
    %s200 = sadd.s32 %s199, 1
    %p203 = scmp.eq.s32.totalorder %s18, 1
    %p204 = scmp.ne.s32.totalorder %s199, %s201
    %p205 = scmp.eq.s32.totalorder %s18, 0
    %p206 = por %p204, %p205
    %p207 = scmp.ne.s32.totalorder %s199, %s201
    %p208 = scmp.eq.s32.totalorder %s23, 1
    %p209 = por %p207, %p208
    %p210 = scmp.ne.s32.totalorder %s201, %s202
    %p211 = scmp.eq.s32.totalorder %s23, 0
    %p212 = por %p210, %p211
    %p213 = scmp.ne.s32.totalorder %s201, %s202
    %p214 = scmp.eq.s32.totalorder %s24, 1
    %p215 = por %p213, %p214
    %p217 = scmp.ne.s32.totalorder %s202, %s216
    %p218 = scmp.eq.s32.totalorder %s24, 0
    %p219 = por %p217, %p218
    %s221 = sadd.s32 %s220, 1
    %p224 = scmp.eq.s32.totalorder %s18, 1
    %p225 = scmp.ne.s32.totalorder %s220, %s222
    %p226 = scmp.eq.s32.totalorder %s18, 0
    %p227 = por %p225, %p226
    %p228 = scmp.ne.s32.totalorder %s220, %s222
    %p229 = scmp.eq.s32.totalorder %s23, 1
    %p230 = por %p228, %p229
    %p231 = scmp.ne.s32.totalorder %s222, %s223
    %p232 = scmp.eq.s32.totalorder %s23, 0
    %p233 = por %p231, %p232
    %p234 = scmp.ne.s32.totalorder %s222, %s223
    %p235 = scmp.eq.s32.totalorder %s24, 1
    %p236 = por %p234, %p235
    %p238 = scmp.ne.s32.totalorder %s223, %s237
    %p239 = scmp.eq.s32.totalorder %s24, 0
    %p240 = por %p238, %p239
    %s242 = sadd.s32 %s241, 1
    %p245 = scmp.eq.s32.totalorder %s18, 1
    %p246 = scmp.ne.s32.totalorder %s241, %s243
    %p247 = scmp.eq.s32.totalorder %s18, 0
    %p248 = por %p246, %p247
    %p249 = scmp.ne.s32.totalorder %s241, %s243
    %p250 = scmp.eq.s32.totalorder %s23, 1
    %p251 = por %p249, %p250
    %p252 = scmp.ne.s32.totalorder %s243, %s244
    %p253 = scmp.eq.s32.totalorder %s23, 0
    %p254 = por %p252, %p253
    %p255 = scmp.ne.s32.totalorder %s243, %s244
    %p256 = scmp.eq.s32.totalorder %s24, 1
    %p257 = por %p255, %p256
    %p259 = scmp.ne.s32.totalorder %s244, %s258
    %p260 = scmp.eq.s32.totalorder %s24, 0
    %p261 = por %p259, %p260
    %s263 = sadd.s32 %s262, 1
    %p266 = scmp.eq.s32.totalorder %s18, 1
    %p267 = scmp.ne.s32.totalorder %s262, %s264
    %p268 = scmp.eq.s32.totalorder %s18, 0
    %p269 = por %p267, %p268
    %p270 = scmp.ne.s32.totalorder %s262, %s264
    %p271 = scmp.eq.s32.totalorder %s23, 1
    %p272 = por %p270, %p271
    %p273 = scmp.ne.s32.totalorder %s264, %s265
    %p274 = scmp.eq.s32.totalorder %s23, 0
    %p275 = por %p273, %p274
    %p276 = scmp.ne.s32.totalorder %s264, %s265
    %p277 = scmp.eq.s32.totalorder %s24, 1
    %p278 = por %p276, %p277
    %p280 = scmp.ne.s32.totalorder %s265, %s279
    %p281 = scmp.eq.s32.totalorder %s24, 0
    %p282 = por %p280, %p281
    %s283 = ssub.s32 %s18, %s25
    %p284 = scmp.eq.s32.totalorder %s283, 0
    %s286 = sadd.s32 %s285, 1
    %s287 = scalar_select %p284, %s285, %s286
    %p290 = pneg %p284
    %p291 = scmp.eq.s32.totalorder %s18, 1
    %p292 = por %p290, %p291
    %p293 = scmp.ne.s32.totalorder %s285, %s288
    %p294 = scmp.eq.s32.totalorder %s18, 0
    %p295 = por %p293, %p294
    %p296 = scmp.ne.s32.totalorder %s285, %s288
    %p297 = scmp.eq.s32.totalorder %s23, 1
    %p298 = por %p296, %p297
    %p299 = scmp.ne.s32.totalorder %s288, %s289
    %p300 = scmp.eq.s32.totalorder %s23, 0
    %p301 = por %p299, %p300
    %p302 = scmp.ne.s32.totalorder %s288, %s289
    %p303 = scmp.eq.s32.totalorder %s24, 1
    %p304 = por %p302, %p303
    %p306 = scmp.ne.s32.totalorder %s289, %s305
    %p307 = scmp.eq.s32.totalorder %s24, 0
    %p308 = por %p306, %p307
    %p309 = scmp.le.s32.totalorder 1, %s18
    %p310 = scmp.lt.s32.totalorder %s18, 3
    %p311 = pnand %p309, %p310
    %p312 = pneg %p311
    // Predicated region
    $region9: #{input_image_encoder_forward.1} parent=5 // pred_check
      _
    $region10: #{input_image_encoder_forward.1} parent=5 // pred_check_branch
      %314 = sbr.rel (%p311) target = $region12
    $region11: #{input_image_encoder_forward.1} parent=5 // pred_region
      %s315 = ssub.s32 %s18, 1
      // Predicated region
      $region13: #{input_image_encoder_forward.1} parent=11 // pred_check
        %p316 = pneg %p65
      $region14: #{input_image_encoder_forward.1} parent=11 // pred_check_branch
        %318 = sbr.rel (%p316) target = $region16
      $region15: #{input_image_encoder_forward.1} parent=11 // pred_region
        _
      $region16: #{input_image_encoder_forward.1} parent=11 // pred_fallthru
        _
      // Predicated region
      $region17: #{input_image_encoder_forward.1} parent=11 // pred_check
        %p319 = pneg %p86
      $region18: #{input_image_encoder_forward.1} parent=11 // pred_check_branch
        %321 = sbr.rel (%p319) target = $region20
      $region19: #{input_image_encoder_forward.1} parent=11 // pred_region
        _
      $region20: #{input_image_encoder_forward.1} parent=11 // pred_fallthru
        _
      // Predicated region
      $region21: #{input_image_encoder_forward.1} parent=11 // pred_check
        %p322 = pneg %p107
      $region22: #{input_image_encoder_forward.1} parent=11 // pred_check_branch
        %324 = sbr.rel (%p322) target = $region24
      $region23: #{input_image_encoder_forward.1} parent=11 // pred_region
        _
      $region24: #{input_image_encoder_forward.1} parent=11 // pred_fallthru
        _
      // Predicated region
      $region25: #{input_image_encoder_forward.1} parent=11 // pred_check
        %p325 = pneg %p128
      $region26: #{input_image_encoder_forward.1} parent=11 // pred_check_branch
        %327 = sbr.rel (%p325) target = $region28
      $region27: #{input_image_encoder_forward.1} parent=11 // pred_region
        _
      $region28: #{input_image_encoder_forward.1} parent=11 // pred_fallthru
        _
      // Predicated region
      $region29: #{input_image_encoder_forward.1} parent=11 // pred_check
        %p328 = pneg %p149
      $region30: #{input_image_encoder_forward.1} parent=11 // pred_check_branch
        %330 = sbr.rel (%p328) target = $region32
      $region31: #{input_image_encoder_forward.1} parent=11 // pred_region
        _
      $region32: #{input_image_encoder_forward.1} parent=11 // pred_fallthru
        _
      // Predicated region
      $region33: #{input_image_encoder_forward.1} parent=11 // pred_check
        %p331 = pneg %p170
      $region34: #{input_image_encoder_forward.1} parent=11 // pred_check_branch
        %333 = sbr.rel (%p331) target = $region36
      $region35: #{input_image_encoder_forward.1} parent=11 // pred_region
        _
      $region36: #{input_image_encoder_forward.1} parent=11 // pred_fallthru
        _
      // Predicated region
      $region37: #{input_image_encoder_forward.1} parent=11 // pred_check
        %p334 = pneg %p191
      $region38: #{input_image_encoder_forward.1} parent=11 // pred_check_branch
        %336 = sbr.rel (%p334) target = $region40
      $region39: #{input_image_encoder_forward.1} parent=11 // pred_region
        _
      $region40: #{input_image_encoder_forward.1} parent=11 // pred_fallthru
        _
      // Predicated region
      $region41: #{input_image_encoder_forward.1} parent=11 // pred_check
        %p337 = pneg %p212
      $region42: #{input_image_encoder_forward.1} parent=11 // pred_check_branch
        %339 = sbr.rel (%p337) target = $region44
      $region43: #{input_image_encoder_forward.1} parent=11 // pred_region
        _
      $region44: #{input_image_encoder_forward.1} parent=11 // pred_fallthru
        _
      // Predicated region
      $region45: #{input_image_encoder_forward.1} parent=11 // pred_check
        %p340 = pneg %p233
      $region46: #{input_image_encoder_forward.1} parent=11 // pred_check_branch
        %342 = sbr.rel (%p340) target = $region48
      $region47: #{input_image_encoder_forward.1} parent=11 // pred_region
        _
      $region48: #{input_image_encoder_forward.1} parent=11 // pred_fallthru
        _
      // Predicated region
      $region49: #{input_image_encoder_forward.1} parent=11 // pred_check
        %p343 = pneg %p254
      $region50: #{input_image_encoder_forward.1} parent=11 // pred_check_branch
        %345 = sbr.rel (%p343) target = $region52
      $region51: #{input_image_encoder_forward.1} parent=11 // pred_region
        _
      $region52: #{input_image_encoder_forward.1} parent=11 // pred_fallthru
        _
      // Predicated region
      $region53: #{input_image_encoder_forward.1} parent=11 // pred_check
        %p346 = pneg %p275
      $region54: #{input_image_encoder_forward.1} parent=11 // pred_check_branch
        %348 = sbr.rel (%p346) target = $region56
      $region55: #{input_image_encoder_forward.1} parent=11 // pred_region
        _
      $region56: #{input_image_encoder_forward.1} parent=11 // pred_fallthru
        _
    $region12: #{input_image_encoder_forward.1} parent=5 // pred_fallthru
      _
    %p349 = scmp.lt.s32.totalorder %s18, 2
    // Predicated region
    $region57: #{input_image_encoder_forward.1} parent=5 // pred_check
      %p350 = pneg %p349
    $region58: #{input_image_encoder_forward.1} parent=5 // pred_check_branch
      %352 = sbr.rel (%p350) target = $region60
    $region59: #{input_image_encoder_forward.1} parent=5 // pred_region
      // Predicated region
      $region61: #{input_image_encoder_forward.1} parent=59 // pred_check
        %p353 = pneg %p38
      $region62: #{input_image_encoder_forward.1} parent=59 // pred_check_branch
        %355 = sbr.rel (%p353) target = $region64
      $region63: #{input_image_encoder_forward.1} parent=59 // pred_region
        %p356 = scmp.lt.s32.totalorder %s18, 1
        %s357 = scalar_select %p356, %s18, 1
        %s358 = smul.addr %s357, 16
        %s359 = smul.addr %s358, 4
        %s360 = scalar_lea.vmem %s0, %s359
      $region64: #{input_image_encoder_forward.1} parent=59 // pred_fallthru
        _
    $region60: #{input_image_encoder_forward.1} parent=5 // pred_fallthru
      _
    %p361 = scmp.le.s32.totalorder 1, %s18
    %p362 = scmp.lt.s32.totalorder %s18, 3
    %p363 = pnand %p361, %p362
    %p364 = pneg %p363
    // Predicated region
    $region65: #{input_image_encoder_forward.1} parent=5 // pred_check
      _
    $region66: #{input_image_encoder_forward.1} parent=5 // pred_check_branch
      %366 = sbr.rel (%p363) target = $region68
    $region67: #{input_image_encoder_forward.1} parent=5 // pred_region
      %s367 = ssub.s32 %s18, 1
      %p368 = scmp.lt.s32.totalorder %s23, 1
      %s369 = scalar_select %p368, %s23, 1
      %s370 = smul.addr %s369, 16
      %s371 = smul.addr %s370, 4
      %s372 = scalar_lea.vmem %s0, %s371
      %p373 = pneg %p44
      %p374 = pneg %p41
      %p375 = pneg %p65
      %p376 = pneg %p62
      %p377 = pneg %p86
      %p378 = pneg %p83
      %p379 = pneg %p107
      %p380 = pneg %p104
      %p381 = pneg %p128
      %p382 = pneg %p125
      %p383 = pneg %p149
      %p384 = pneg %p146
      %p385 = pneg %p170
      %p386 = pneg %p167
      %p387 = pneg %p191
      %p388 = pneg %p188
      %p389 = pneg %p212
      %p390 = pneg %p209
      %p391 = pneg %p233
      %p392 = pneg %p230
      %p393 = pneg %p254
      %p394 = pneg %p251
      %p395 = pneg %p275
      %p396 = pneg %p272
      %p397 = pneg %p301
      %p398 = pneg %p298
      %p399 = scmp.lt.s32.totalorder %s23, 1
      %s400 = scalar_select %p399, %s23, 1
      %s401 = smul.addr %s400, 8
      %s402 = scalar_lea.vmem %s12, %s401
      %p403 = scmp.lt.s32.totalorder %s23, 1
      %s404 = scalar_select %p403, %s23, 1
      %s405 = smul.addr %s404, 16
      %s406 = smul.addr %s405, 4
      %s407 = scalar_lea.vmem %s0, %s406
      %p408 = scmp.lt.s32.totalorder %s23, 1
      %s409 = scalar_select %p408, %s23, 1
      %s410 = smul.addr %s409, 8
      %s411 = scalar_lea.vmem %s12, %s410
      %v413 = vld [vmem:[%s407] sm:$0xff]
      %v414 = vld [vmem:[%s407 + $0x8] sm:$0xff]
      %v415 = vld [vmem:[%s407 + $0x10] sm:$0xff]
      %v416 = vld [vmem:[%s407 + $0x18] sm:$0xff]
      %v417 = vld [vmem:[%s407 + $0x20] sm:$0xff]
      %v418 = vld [vmem:[%s407 + $0x28] sm:$0xff]
      %v419 = vld [vmem:[%s407 + $0x30] sm:$0xff]
      %v420 = vld [vmem:[%s407 + $0x38] sm:$0xff]
      %v421 = vld [vmem:[%s1] sm:$0xf]
      %v422 = vld [vmem:[%s1 + $0x4] sm:$0xf]
      %v423 = vld [vmem:[%s1 + $0x8] sm:$0xf]
      %v424 = vld [vmem:[%s1 + $0xc] sm:$0xf]
      %v425 = vld [vmem:[%s1 + $0x10] sm:$0xf]
      %v426 = vld [vmem:[%s1 + $0x14] sm:$0xf]
      %v427 = vld [vmem:[%s1 + $0x18] sm:$0xf]
      %v428 = vld [vmem:[%s1 + $0x1c] sm:$0xf]
      %v429 = vld [vmem:[%s1 + $0x20] sm:$0xf]
      %v430 = vld [vmem:[%s1 + $0x24] sm:$0xf]
      %v431 = vld [vmem:[%s1 + $0x28] sm:$0xf]
      %v432 = vld [vmem:[%s1 + $0x2c] sm:$0xf]
      %v433 = vld [vmem:[%s1 + $0x30] sm:$0xf]
      %v434 = vld [vmem:[%s1 + $0x34] sm:$0xf]
      %v435 = vld [vmem:[%s1 + $0x38] sm:$0xf]
      %v436 = vld [vmem:[%s1 + $0x3c] sm:$0xf]
      %v437 = vld [vmem:[%s1 + $0x40] sm:$0xf]
      %v438 = vld [vmem:[%s1 + $0x44] sm:$0xf]
      %v439 = vld [vmem:[%s1 + $0x48] sm:$0xf]
      %v440 = vld [vmem:[%s1 + $0x4c] sm:$0xf]
      %v441 = vld [vmem:[%s1 + $0x50] sm:$0xf]
      %v442 = vld [vmem:[%s1 + $0x54] sm:$0xf]
      %v443 = vld [vmem:[%s1 + $0x58] sm:$0xf]
      %v444 = vld [vmem:[%s1 + $0x5c] sm:$0xf]
      %v445 = vld [vmem:[%s1 + $0x60] sm:$0xf]
      %v446 = vld [vmem:[%s1 + $0x64] sm:$0xf]
      %v447 = vld [vmem:[%s1 + $0x68] sm:$0xf]
      %v448 = vld [vmem:[%s1 + $0x6c] sm:$0xf]
      %v449 = vld [vmem:[%s1 + $0x70] sm:$0xf]
      %v450 = vld [vmem:[%s1 + $0x74] sm:$0xf]
      %v451 = vld [vmem:[%s1 + $0x78] sm:$0xf]
      %v452 = vld [vmem:[%s1 + $0x7c] sm:$0xf]
      %v453 = vld [vmem:[%s2] sm:$0x1]
      %v455 = vperm.slane %v453, 0
      %v465 = vunpack.c.l.b16 %v413
      %v466 = vunpack.c.h.b16 %v413
      %v467 = vunpack.c.l.b16 %v414
      %v468 = vunpack.c.h.b16 %v414
      %v469 = vunpack.c.l.b16 %v415
      %v470 = vunpack.c.h.b16 %v415
      %v471 = vunpack.c.l.b16 %v416
      %v472 = vunpack.c.h.b16 %v416
      %v473 = vunpack.c.l.b16 %v417
      %v474 = vunpack.c.h.b16 %v417
      %v475 = vunpack.c.l.b16 %v418
      %v476 = vunpack.c.h.b16 %v418
      %v477 = vunpack.c.l.b16 %v419
      %v478 = vunpack.c.h.b16 %v419
      %v479 = vunpack.c.l.b16 %v420
      %v480 = vunpack.c.h.b16 %v420
      %v481 = vpack.c.b16 %v467, %v465
      %v482 = vpack.c.b16 %v468, %v466
      %v483 = vpack.c.b16 %v471, %v469
      %v484 = vpack.c.b16 %v472, %v470
      %v485 = vpack.c.b16 %v475, %v473
      %v486 = vpack.c.b16 %v476, %v474
      %v487 = vpack.c.b16 %v479, %v477
      %v488 = vpack.c.b16 %v480, %v478
      %v529 = vunpack.c.l.b16 %v421
      %v530 = vunpack.c.l.b16 %v422
      %v531 = vunpack.c.l.b16 %v423
      %v532 = vunpack.c.l.b16 %v424
      %v533 = vunpack.c.l.b16 %v425
      %v534 = vunpack.c.l.b16 %v426
      %v535 = vunpack.c.l.b16 %v427
      %v536 = vunpack.c.l.b16 %v428
      %v537 = vunpack.c.l.b16 %v429
      %v538 = vunpack.c.l.b16 %v430
      %v539 = vunpack.c.l.b16 %v431
      %v540 = vunpack.c.l.b16 %v432
      %v541 = vunpack.c.l.b16 %v433
      %v542 = vunpack.c.l.b16 %v434
      %v543 = vunpack.c.l.b16 %v435
      %v544 = vunpack.c.l.b16 %v436
      %v545 = vunpack.c.l.b16 %v437
      %v546 = vunpack.c.l.b16 %v438
      %v547 = vunpack.c.l.b16 %v439
      %v548 = vunpack.c.l.b16 %v440
      %v549 = vunpack.c.l.b16 %v441
      %v550 = vunpack.c.l.b16 %v442
      %v551 = vunpack.c.l.b16 %v443
      %v552 = vunpack.c.l.b16 %v444
      %v553 = vunpack.c.l.b16 %v445
      %v554 = vunpack.c.l.b16 %v446
      %v555 = vunpack.c.l.b16 %v447
      %v556 = vunpack.c.l.b16 %v448
      %v557 = vunpack.c.l.b16 %v449
      %v558 = vunpack.c.l.b16 %v450
      %v559 = vunpack.c.l.b16 %v451
      %v560 = vunpack.c.l.b16 %v452
      %v561 = vpack.c.b16 %v530, %v529
      %v562 = vpack.c.b16 %v532, %v531
      %v563 = vpack.c.b16 %v534, %v533
      %v564 = vpack.c.b16 %v536, %v535
      %v565 = vpack.c.b16 %v538, %v537
      %v566 = vpack.c.b16 %v540, %v539
      %v567 = vpack.c.b16 %v542, %v541
      %v568 = vpack.c.b16 %v544, %v543
      %v569 = vpack.c.b16 %v546, %v545
      %v570 = vpack.c.b16 %v548, %v547
      %v571 = vpack.c.b16 %v550, %v549
      %v572 = vpack.c.b16 %v552, %v551
      %v573 = vpack.c.b16 %v554, %v553
      %v574 = vpack.c.b16 %v556, %v555
      %v575 = vpack.c.b16 %v558, %v557
      %v576 = vpack.c.b16 %v560, %v559
      %593 = vmatpush.bf16.msra.mxu0 %v568
      %594 = vmatpush.bf16.msra.mxu0 %v567
      %595 = vmatpush.bf16.msra.mxu0 %v566
      %596 = vmatpush.bf16.msra.mxu0 %v565
      %597 = vmatpush.bf16.msra.mxu0 %v564
      %598 = vmatpush.bf16.msra.mxu0 %v563
      %599 = vmatpush.bf16.msra.mxu0 %v562
      %600 = vmatpush.bf16.msra.mxu0 %v561
      %601 = vmatmul.bf16.gmra.mxu0 %v481
      %v602 = vpop.f32.mrf.mxu0
      %v603 = vadd.f32 %v455, %v602
      %v604 = vpop.f32.mrf.mxu0
      %v605 = vadd.f32 %v455, %v604
      %606 = vmatmul.bf16.gmra.mxu0 %v483
      %v607 = vpop.f32.mrf.mxu0
      %v608 = vadd.f32 %v455, %v607
      %v609 = vpop.f32.mrf.mxu0
      %v610 = vadd.f32 %v455, %v609
      %611 = vmatmul.bf16.gmra.mxu0 %v485
      %v612 = vpop.f32.mrf.mxu0
      %v613 = vadd.f32 %v455, %v612
      %v614 = vpop.f32.mrf.mxu0
      %v615 = vadd.f32 %v455, %v614
      %616 = vmatmul.bf16.gmra.mxu0 %v487
      %v617 = vpop.f32.mrf.mxu0
      %v618 = vadd.f32 %v455, %v617
      %v619 = vpop.f32.mrf.mxu0
      %v620 = vadd.f32 %v455, %v619
      %621 = vdwg.mxu0
      %622 = vmatpush.bf16.msra.mxu0 %v576
      %623 = vmatpush.bf16.msra.mxu0 %v575
      %624 = vmatpush.bf16.msra.mxu0 %v574
      %625 = vmatpush.bf16.msra.mxu0 %v573
      %626 = vmatpush.bf16.msra.mxu0 %v572
      %627 = vmatpush.bf16.msra.mxu0 %v571
      %628 = vmatpush.bf16.msra.mxu0 %v570
      %629 = vmatpush.bf16.msra.mxu0 %v569
      %630 = vmatmul.bf16.gmra.mxu0 %v482
      %v631 = vpop.f32.mrf.mxu0
      %v632 = vadd.f32 %v603, %v631
      %v633 = vpop.f32.mrf.mxu0
      %v634 = vadd.f32 %v605, %v633
      %635 = vmatmul.bf16.gmra.mxu0 %v484
      %v636 = vpop.f32.mrf.mxu0
      %v637 = vadd.f32 %v608, %v636
      %v638 = vpop.f32.mrf.mxu0
      %v639 = vadd.f32 %v610, %v638
      %640 = vmatmul.bf16.gmra.mxu0 %v486
      %v641 = vpop.f32.mrf.mxu0
      %v642 = vadd.f32 %v613, %v641
      %v643 = vpop.f32.mrf.mxu0
      %v644 = vadd.f32 %v615, %v643
      %645 = vmatmul.bf16.gmra.mxu0 %v488
      %v646 = vpop.f32.mrf.mxu0
      %v647 = vadd.f32 %v618, %v646
      %v648 = vpop.f32.mrf.mxu0
      %v649 = vadd.f32 %v620, %v648
      %650 = vdwg.mxu0
      %v651 = vmax.f32 %v632, 0.0
      %v652 = vmax.f32 %v634, 0.0
      %v653 = vmax.f32 %v637, 0.0
      %v654 = vmax.f32 %v639, 0.0
      %v655 = vmax.f32 %v642, 0.0
      %v656 = vmax.f32 %v644, 0.0
      %v657 = vmax.f32 %v647, 0.0
      %v658 = vmax.f32 %v649, 0.0
      %v659 = vpack.c.bf16 %v652, %v651
      %v660 = vpack.c.bf16 %v654, %v653
      %v661 = vpack.c.bf16 %v656, %v655
      %v662 = vpack.c.bf16 %v658, %v657
      %v663 = vld [vmem:[%s3] sm:$0xf]
      %v664 = vld [vmem:[%s3 + $0x4] sm:$0xf]
      %v667 = vunpack.c.l.b16 %v663
      %v668 = vunpack.c.l.b16 %v664
      %v669 = vpack.c.b16 %v668, %v667
      %vm670 = vcmask 523264
      %v672 = vsel %vm670, %v669, 0
      %674 = vmatpush.bf16.msra.mxu0 0
      %675 = vmatpush.bf16.msra.mxu0 0
      %676 = vmatpush.bf16.msra.mxu0 0
      %677 = vmatpush.bf16.msra.mxu0 0
      %678 = vmatpush.bf16.msra.mxu0 %v662
      %679 = vmatpush.bf16.msra.mxu0 %v661
      %680 = vmatpush.bf16.msra.mxu0 %v660
      %681 = vmatpush.bf16.msra.mxu0 %v659
      %682 = vmatmul.bf16.gmra.mxu0 %v672
      %v683 = vpop.f32.mrf.mxu0
      %v684 = vadd.f32 0.0, %v683
      %v685 = vpop.f32.mrf.mxu0
      %v686 = vadd.f32 0.0, %v685
      %687 = vdwg.mxu0
      %v688 = vpack.c.bf16 %v686, %v684
      %v689 = vld [vmem:[%s4] sm:$0xf]
      %v690 = vld [vmem:[%s4 + $0x4] sm:$0xf]
      %v691 = vld [vmem:[%s4 + $0x8] sm:$0xf]
      %v692 = vld [vmem:[%s4 + $0xc] sm:$0xf]
      %v693 = vld [vmem:[%s4 + $0x10] sm:$0xf]
      %v694 = vld [vmem:[%s4 + $0x14] sm:$0xf]
      %v695 = vld [vmem:[%s4 + $0x18] sm:$0xf]
      %v696 = vld [vmem:[%s4 + $0x1c] sm:$0xf]
      %v697 = vld [vmem:[%s4 + $0x20] sm:$0xf]
      %v698 = vld [vmem:[%s4 + $0x24] sm:$0xf]
      %v699 = vld [vmem:[%s4 + $0x28] sm:$0xf]
      %v700 = vld [vmem:[%s4 + $0x2c] sm:$0xf]
      %v701 = vld [vmem:[%s4 + $0x30] sm:$0xf]
      %v702 = vld [vmem:[%s4 + $0x34] sm:$0xf]
      %v703 = vld [vmem:[%s4 + $0x38] sm:$0xf]
      %v704 = vld [vmem:[%s4 + $0x3c] sm:$0xf]
      %s705 = scalar_lea.vmem %s3, 8
      %v706 = vld [vmem:[%s705] sm:$0xf]
      %v707 = vld [vmem:[%s705 + $0x4] sm:$0xf]
      %v710 = vunpack.c.l.b16 %v706
      %v711 = vunpack.c.l.b16 %v707
      %v712 = vpack.c.b16 %v711, %v710
      %v714 = vsel %vm670, %v712, 0
      %716 = vmatpush.bf16.msra.mxu0 0
      %717 = vmatpush.bf16.msra.mxu0 0
      %718 = vmatpush.bf16.msra.mxu0 0
      %719 = vmatpush.bf16.msra.mxu0 0
      %720 = vmatpush.bf16.msra.mxu0 %v662
      %721 = vmatpush.bf16.msra.mxu0 %v661
      %722 = vmatpush.bf16.msra.mxu0 %v660
      %723 = vmatpush.bf16.msra.mxu0 %v659
      %724 = vmatmul.bf16.gmra.mxu0 %v714
      %v725 = vpop.f32.mrf.mxu0
      %v726 = vadd.f32 0.0, %v725
      %v727 = vpop.f32.mrf.mxu0
      %v728 = vadd.f32 0.0, %v727
      %729 = vdwg.mxu0
      %v730 = vpack.c.bf16 %v728, %v726
      %s731 = scalar_lea.vmem %s4, 64
      %v732 = vld [vmem:[%s731] sm:$0xf]
      %v733 = vld [vmem:[%s731 + $0x4] sm:$0xf]
      %v734 = vld [vmem:[%s731 + $0x8] sm:$0xf]
      %v735 = vld [vmem:[%s731 + $0xc] sm:$0xf]
      %v736 = vld [vmem:[%s731 + $0x10] sm:$0xf]
      %v737 = vld [vmem:[%s731 + $0x14] sm:$0xf]
      %v738 = vld [vmem:[%s731 + $0x18] sm:$0xf]
      %v739 = vld [vmem:[%s731 + $0x1c] sm:$0xf]
      %v740 = vld [vmem:[%s731 + $0x20] sm:$0xf]
      %v741 = vld [vmem:[%s731 + $0x24] sm:$0xf]
      %v742 = vld [vmem:[%s731 + $0x28] sm:$0xf]
      %v743 = vld [vmem:[%s731 + $0x2c] sm:$0xf]
      %v744 = vld [vmem:[%s731 + $0x30] sm:$0xf]
      %v745 = vld [vmem:[%s731 + $0x34] sm:$0xf]
      %v746 = vld [vmem:[%s731 + $0x38] sm:$0xf]
      %v747 = vld [vmem:[%s731 + $0x3c] sm:$0xf]
      %v764 = vunpack.c.l.b16 %v732
      %v765 = vunpack.c.l.b16 %v733
      %v766 = vunpack.c.l.b16 %v734
      %v767 = vunpack.c.l.b16 %v735
      %v768 = vunpack.c.l.b16 %v736
      %v769 = vunpack.c.l.b16 %v737
      %v770 = vunpack.c.l.b16 %v738
      %v771 = vunpack.c.l.b16 %v739
      %v772 = vunpack.c.l.b16 %v740
      %v773 = vunpack.c.l.b16 %v741
      %v774 = vunpack.c.l.b16 %v742
      %v775 = vunpack.c.l.b16 %v743
      %v776 = vunpack.c.l.b16 %v744
      %v777 = vunpack.c.l.b16 %v745
      %v778 = vunpack.c.l.b16 %v746
      %v779 = vunpack.c.l.b16 %v747
      %v780 = vpack.c.b16 %v765, %v764
      %v781 = vpack.c.b16 %v767, %v766
      %v782 = vpack.c.b16 %v769, %v768
      %v783 = vpack.c.b16 %v771, %v770
      %v784 = vpack.c.b16 %v773, %v772
      %v785 = vpack.c.b16 %v775, %v774
      %v786 = vpack.c.b16 %v777, %v776
      %v787 = vpack.c.b16 %v779, %v778
      %796 = vmatpush.bf16.msra.mxu0 %v787
      %797 = vmatpush.bf16.msra.mxu0 %v786
      %798 = vmatpush.bf16.msra.mxu0 %v785
      %799 = vmatpush.bf16.msra.mxu0 %v784
      %800 = vmatpush.bf16.msra.mxu0 %v783
      %801 = vmatpush.bf16.msra.mxu0 %v782
      %802 = vmatpush.bf16.msra.mxu0 %v781
      %803 = vmatpush.bf16.msra.mxu0 %v780
      %804 = vmatmul.bf16.gmra.mxu0 %v730
      %v805 = vpop.f32.mrf.mxu0
      %v806 = vadd.f32 0.0, %v805
      %v807 = vpop.f32.mrf.mxu0
      %v808 = vadd.f32 0.0, %v807
      %809 = vdwg.mxu0
      %v826 = vunpack.c.l.b16 %v689
      %v827 = vunpack.c.l.b16 %v690
      %v828 = vunpack.c.l.b16 %v691
      %v829 = vunpack.c.l.b16 %v692
      %v830 = vunpack.c.l.b16 %v693
      %v831 = vunpack.c.l.b16 %v694
      %v832 = vunpack.c.l.b16 %v695
      %v833 = vunpack.c.l.b16 %v696
      %v834 = vunpack.c.l.b16 %v697
      %v835 = vunpack.c.l.b16 %v698
      %v836 = vunpack.c.l.b16 %v699
      %v837 = vunpack.c.l.b16 %v700
      %v838 = vunpack.c.l.b16 %v701
      %v839 = vunpack.c.l.b16 %v702
      %v840 = vunpack.c.l.b16 %v703
      %v841 = vunpack.c.l.b16 %v704
      %v842 = vpack.c.b16 %v827, %v826
      %v843 = vpack.c.b16 %v829, %v828
      %v844 = vpack.c.b16 %v831, %v830
      %v845 = vpack.c.b16 %v833, %v832
      %v846 = vpack.c.b16 %v835, %v834
      %v847 = vpack.c.b16 %v837, %v836
      %v848 = vpack.c.b16 %v839, %v838
      %v849 = vpack.c.b16 %v841, %v840
      %858 = vmatpush.bf16.msra.mxu0 %v849
      %859 = vmatpush.bf16.msra.mxu0 %v848
      %860 = vmatpush.bf16.msra.mxu0 %v847
      %861 = vmatpush.bf16.msra.mxu0 %v846
      %862 = vmatpush.bf16.msra.mxu0 %v845
      %863 = vmatpush.bf16.msra.mxu0 %v844
      %864 = vmatpush.bf16.msra.mxu0 %v843
      %865 = vmatpush.bf16.msra.mxu0 %v842
      %866 = vmatmul.bf16.gmra.mxu0 %v688
      %v867 = vpop.f32.mrf.mxu0
      %v868 = vadd.f32 %v806, %v867
      %v869 = vpop.f32.mrf.mxu0
      %v870 = vadd.f32 %v808, %v869
      %871 = vdwg.mxu0
      %s872 = scalar_lea.vmem %s3, 16
      %v873 = vld [vmem:[%s872] sm:$0xf]
      %v874 = vld [vmem:[%s872 + $0x4] sm:$0xf]
      %v877 = vunpack.c.l.b16 %v873
      %v878 = vunpack.c.l.b16 %v874
      %v879 = vpack.c.b16 %v878, %v877
      %v881 = vsel %vm670, %v879, 0
      %883 = vmatpush.bf16.msra.mxu0 0
      %884 = vmatpush.bf16.msra.mxu0 0
      %885 = vmatpush.bf16.msra.mxu0 0
      %886 = vmatpush.bf16.msra.mxu0 0
      %887 = vmatpush.bf16.msra.mxu0 %v662
      %888 = vmatpush.bf16.msra.mxu0 %v661
      %889 = vmatpush.bf16.msra.mxu0 %v660
      %890 = vmatpush.bf16.msra.mxu0 %v659
      %891 = vmatmul.bf16.gmra.mxu0 %v881
      %v892 = vpop.f32.mrf.mxu0
      %v893 = vadd.f32 0.0, %v892
      %v894 = vpop.f32.mrf.mxu0
      %v895 = vadd.f32 0.0, %v894
      %896 = vdwg.mxu0
      %v897 = vpack.c.bf16 %v895, %v893
      %s898 = scalar_lea.vmem %s4, 128
      %v899 = vld [vmem:[%s898] sm:$0xf]
      %v900 = vld [vmem:[%s898 + $0x4] sm:$0xf]
      %v901 = vld [vmem:[%s898 + $0x8] sm:$0xf]
      %v902 = vld [vmem:[%s898 + $0xc] sm:$0xf]
      %v903 = vld [vmem:[%s898 + $0x10] sm:$0xf]
      %v904 = vld [vmem:[%s898 + $0x14] sm:$0xf]
      %v905 = vld [vmem:[%s898 + $0x18] sm:$0xf]
      %v906 = vld [vmem:[%s898 + $0x1c] sm:$0xf]
      %v907 = vld [vmem:[%s898 + $0x20] sm:$0xf]
      %v908 = vld [vmem:[%s898 + $0x24] sm:$0xf]
      %v909 = vld [vmem:[%s898 + $0x28] sm:$0xf]
      %v910 = vld [vmem:[%s898 + $0x2c] sm:$0xf]
      %v911 = vld [vmem:[%s898 + $0x30] sm:$0xf]
      %v912 = vld [vmem:[%s898 + $0x34] sm:$0xf]
      %v913 = vld [vmem:[%s898 + $0x38] sm:$0xf]
      %v914 = vld [vmem:[%s898 + $0x3c] sm:$0xf]
      %v931 = vunpack.c.l.b16 %v899
      %v932 = vunpack.c.l.b16 %v900
      %v933 = vunpack.c.l.b16 %v901
      %v934 = vunpack.c.l.b16 %v902
      %v935 = vunpack.c.l.b16 %v903
      %v936 = vunpack.c.l.b16 %v904
      %v937 = vunpack.c.l.b16 %v905
      %v938 = vunpack.c.l.b16 %v906
      %v939 = vunpack.c.l.b16 %v907
      %v940 = vunpack.c.l.b16 %v908
      %v941 = vunpack.c.l.b16 %v909
      %v942 = vunpack.c.l.b16 %v910
      %v943 = vunpack.c.l.b16 %v911
      %v944 = vunpack.c.l.b16 %v912
      %v945 = vunpack.c.l.b16 %v913
      %v946 = vunpack.c.l.b16 %v914
      %v947 = vpack.c.b16 %v932, %v931
      %v948 = vpack.c.b16 %v934, %v933
      %v949 = vpack.c.b16 %v936, %v935
      %v950 = vpack.c.b16 %v938, %v937
      %v951 = vpack.c.b16 %v940, %v939
      %v952 = vpack.c.b16 %v942, %v941
      %v953 = vpack.c.b16 %v944, %v943
      %v954 = vpack.c.b16 %v946, %v945
      %963 = vmatpush.bf16.msra.mxu0 %v954
      %964 = vmatpush.bf16.msra.mxu0 %v953
      %965 = vmatpush.bf16.msra.mxu0 %v952
      %966 = vmatpush.bf16.msra.mxu0 %v951
      %967 = vmatpush.bf16.msra.mxu0 %v950
      %968 = vmatpush.bf16.msra.mxu0 %v949
      %969 = vmatpush.bf16.msra.mxu0 %v948
      %970 = vmatpush.bf16.msra.mxu0 %v947
      %971 = vmatmul.bf16.gmra.mxu0 %v897
      %v972 = vpop.f32.mrf.mxu0
      %v973 = vadd.f32 0.0, %v972
      %v974 = vpop.f32.mrf.mxu0
      %v975 = vadd.f32 0.0, %v974
      %976 = vdwg.mxu0
      %v977 = vadd.f32 %v868, %v973
      %v978 = vadd.f32 %v870, %v975
      %s979 = scalar_lea.vmem %s3, 24
      %v980 = vld [vmem:[%s979] sm:$0xf]
      %v981 = vld [vmem:[%s979 + $0x4] sm:$0xf]
      %v984 = vunpack.c.l.b16 %v980
      %v985 = vunpack.c.l.b16 %v981
      %v986 = vpack.c.b16 %v985, %v984
      %v988 = vsel %vm670, %v986, 0
      %990 = vmatpush.bf16.msra.mxu0 0
      %991 = vmatpush.bf16.msra.mxu0 0
      %992 = vmatpush.bf16.msra.mxu0 0
      %993 = vmatpush.bf16.msra.mxu0 0
      %994 = vmatpush.bf16.msra.mxu0 %v662
      %995 = vmatpush.bf16.msra.mxu0 %v661
      %996 = vmatpush.bf16.msra.mxu0 %v660
      %997 = vmatpush.bf16.msra.mxu0 %v659
      %998 = vmatmul.bf16.gmra.mxu0 %v988
      %v999 = vpop.f32.mrf.mxu0
      %v1000 = vadd.f32 0.0, %v999
      %v1001 = vpop.f32.mrf.mxu0
      %v1002 = vadd.f32 0.0, %v1001
      %1003 = vdwg.mxu0
      %v1004 = vpack.c.bf16 %v1002, %v1000
      %s1005 = scalar_lea.vmem %s4, 192
      %v1006 = vld [vmem:[%s1005] sm:$0xf]
      %v1007 = vld [vmem:[%s1005 + $0x4] sm:$0xf]
      %v1008 = vld [vmem:[%s1005 + $0x8] sm:$0xf]
      %v1009 = vld [vmem:[%s1005 + $0xc] sm:$0xf]
      %v1010 = vld [vmem:[%s1005 + $0x10] sm:$0xf]
      %v1011 = vld [vmem:[%s1005 + $0x14] sm:$0xf]
      %v1012 = vld [vmem:[%s1005 + $0x18] sm:$0xf]
      %v1013 = vld [vmem:[%s1005 + $0x1c] sm:$0xf]
      %v1014 = vld [vmem:[%s1005 + $0x20] sm:$0xf]
      %v1015 = vld [vmem:[%s1005 + $0x24] sm:$0xf]
      %v1016 = vld [vmem:[%s1005 + $0x28] sm:$0xf]
      %v1017 = vld [vmem:[%s1005 + $0x2c] sm:$0xf]
      %v1018 = vld [vmem:[%s1005 + $0x30] sm:$0xf]
      %v1019 = vld [vmem:[%s1005 + $0x34] sm:$0xf]
      %v1020 = vld [vmem:[%s1005 + $0x38] sm:$0xf]
      %v1021 = vld [vmem:[%s1005 + $0x3c] sm:$0xf]
      %v1038 = vunpack.c.l.b16 %v1006
      %v1039 = vunpack.c.l.b16 %v1007
      %v1040 = vunpack.c.l.b16 %v1008
      %v1041 = vunpack.c.l.b16 %v1009
      %v1042 = vunpack.c.l.b16 %v1010
      %v1043 = vunpack.c.l.b16 %v1011
      %v1044 = vunpack.c.l.b16 %v1012
      %v1045 = vunpack.c.l.b16 %v1013
      %v1046 = vunpack.c.l.b16 %v1014
      %v1047 = vunpack.c.l.b16 %v1015
      %v1048 = vunpack.c.l.b16 %v1016
      %v1049 = vunpack.c.l.b16 %v1017
      %v1050 = vunpack.c.l.b16 %v1018
      %v1051 = vunpack.c.l.b16 %v1019
      %v1052 = vunpack.c.l.b16 %v1020
      %v1053 = vunpack.c.l.b16 %v1021
      %v1054 = vpack.c.b16 %v1039, %v1038
      %v1055 = vpack.c.b16 %v1041, %v1040
      %v1056 = vpack.c.b16 %v1043, %v1042
      %v1057 = vpack.c.b16 %v1045, %v1044
      %v1058 = vpack.c.b16 %v1047, %v1046
      %v1059 = vpack.c.b16 %v1049, %v1048
      %v1060 = vpack.c.b16 %v1051, %v1050
      %v1061 = vpack.c.b16 %v1053, %v1052
      %1070 = vmatpush.bf16.msra.mxu0 %v1061
      %1071 = vmatpush.bf16.msra.mxu0 %v1060
      %1072 = vmatpush.bf16.msra.mxu0 %v1059
      %1073 = vmatpush.bf16.msra.mxu0 %v1058
      %1074 = vmatpush.bf16.msra.mxu0 %v1057
      %1075 = vmatpush.bf16.msra.mxu0 %v1056
      %1076 = vmatpush.bf16.msra.mxu0 %v1055
      %1077 = vmatpush.bf16.msra.mxu0 %v1054
      %1078 = vmatmul.bf16.gmra.mxu0 %v1004
      %v1079 = vpop.f32.mrf.mxu0
      %v1080 = vadd.f32 0.0, %v1079
      %v1081 = vpop.f32.mrf.mxu0
      %v1082 = vadd.f32 0.0, %v1081
      %1083 = vdwg.mxu0
      %v1084 = vadd.f32 %v977, %v1080
      %v1085 = vadd.f32 %v978, %v1082
      %s1086 = scalar_lea.vmem %s3, 32
      %v1087 = vld [vmem:[%s1086] sm:$0xf]
      %v1088 = vld [vmem:[%s1086 + $0x4] sm:$0xf]
      %v1091 = vunpack.c.l.b16 %v1087
      %v1092 = vunpack.c.l.b16 %v1088
      %v1093 = vpack.c.b16 %v1092, %v1091
      %v1095 = vsel %vm670, %v1093, 0
      %1097 = vmatpush.bf16.msra.mxu0 0
      %1098 = vmatpush.bf16.msra.mxu0 0
      %1099 = vmatpush.bf16.msra.mxu0 0
      %1100 = vmatpush.bf16.msra.mxu0 0
      %1101 = vmatpush.bf16.msra.mxu0 %v662
      %1102 = vmatpush.bf16.msra.mxu0 %v661
      %1103 = vmatpush.bf16.msra.mxu0 %v660
      %1104 = vmatpush.bf16.msra.mxu0 %v659
      %1105 = vmatmul.bf16.gmra.mxu0 %v1095
      %v1106 = vpop.f32.mrf.mxu0
      %v1107 = vadd.f32 0.0, %v1106
      %v1108 = vpop.f32.mrf.mxu0
      %v1109 = vadd.f32 0.0, %v1108
      %1110 = vdwg.mxu0
      %v1111 = vpack.c.bf16 %v1109, %v1107
      %s1112 = scalar_lea.vmem %s4, 256
      %v1113 = vld [vmem:[%s1112] sm:$0xf]
      %v1114 = vld [vmem:[%s1112 + $0x4] sm:$0xf]
      %v1115 = vld [vmem:[%s1112 + $0x8] sm:$0xf]
      %v1116 = vld [vmem:[%s1112 + $0xc] sm:$0xf]
      %v1117 = vld [vmem:[%s1112 + $0x10] sm:$0xf]
      %v1118 = vld [vmem:[%s1112 + $0x14] sm:$0xf]
      %v1119 = vld [vmem:[%s1112 + $0x18] sm:$0xf]
      %v1120 = vld [vmem:[%s1112 + $0x1c] sm:$0xf]
      %v1121 = vld [vmem:[%s1112 + $0x20] sm:$0xf]
      %v1122 = vld [vmem:[%s1112 + $0x24] sm:$0xf]
      %v1123 = vld [vmem:[%s1112 + $0x28] sm:$0xf]
      %v1124 = vld [vmem:[%s1112 + $0x2c] sm:$0xf]
      %v1125 = vld [vmem:[%s1112 + $0x30] sm:$0xf]
      %v1126 = vld [vmem:[%s1112 + $0x34] sm:$0xf]
      %v1127 = vld [vmem:[%s1112 + $0x38] sm:$0xf]
      %v1128 = vld [vmem:[%s1112 + $0x3c] sm:$0xf]
      %v1145 = vunpack.c.l.b16 %v1113
      %v1146 = vunpack.c.l.b16 %v1114
      %v1147 = vunpack.c.l.b16 %v1115
      %v1148 = vunpack.c.l.b16 %v1116
      %v1149 = vunpack.c.l.b16 %v1117
      %v1150 = vunpack.c.l.b16 %v1118
      %v1151 = vunpack.c.l.b16 %v1119
      %v1152 = vunpack.c.l.b16 %v1120
      %v1153 = vunpack.c.l.b16 %v1121
      %v1154 = vunpack.c.l.b16 %v1122
      %v1155 = vunpack.c.l.b16 %v1123
      %v1156 = vunpack.c.l.b16 %v1124
      %v1157 = vunpack.c.l.b16 %v1125
      %v1158 = vunpack.c.l.b16 %v1126
      %v1159 = vunpack.c.l.b16 %v1127
      %v1160 = vunpack.c.l.b16 %v1128
      %v1161 = vpack.c.b16 %v1146, %v1145
      %v1162 = vpack.c.b16 %v1148, %v1147
      %v1163 = vpack.c.b16 %v1150, %v1149
      %v1164 = vpack.c.b16 %v1152, %v1151
      %v1165 = vpack.c.b16 %v1154, %v1153
      %v1166 = vpack.c.b16 %v1156, %v1155
      %v1167 = vpack.c.b16 %v1158, %v1157
      %v1168 = vpack.c.b16 %v1160, %v1159
      %1177 = vmatpush.bf16.msra.mxu0 %v1168
      %1178 = vmatpush.bf16.msra.mxu0 %v1167
      %1179 = vmatpush.bf16.msra.mxu0 %v1166
      %1180 = vmatpush.bf16.msra.mxu0 %v1165
      %1181 = vmatpush.bf16.msra.mxu0 %v1164
      %1182 = vmatpush.bf16.msra.mxu0 %v1163
      %1183 = vmatpush.bf16.msra.mxu0 %v1162
      %1184 = vmatpush.bf16.msra.mxu0 %v1161
      %1185 = vmatmul.bf16.gmra.mxu0 %v1111
      %v1186 = vpop.f32.mrf.mxu0
      %v1187 = vadd.f32 0.0, %v1186
      %v1188 = vpop.f32.mrf.mxu0
      %v1189 = vadd.f32 0.0, %v1188
      %1190 = vdwg.mxu0
      %v1191 = vadd.f32 %v1084, %v1187
      %v1192 = vadd.f32 %v1085, %v1189
      %s1193 = scalar_lea.vmem %s3, 40
      %v1194 = vld [vmem:[%s1193] sm:$0xf]
      %v1195 = vld [vmem:[%s1193 + $0x4] sm:$0xf]
      %v1198 = vunpack.c.l.b16 %v1194
      %v1199 = vunpack.c.l.b16 %v1195
      %v1200 = vpack.c.b16 %v1199, %v1198
      %v1202 = vsel %vm670, %v1200, 0
      %1204 = vmatpush.bf16.msra.mxu0 0
      %1205 = vmatpush.bf16.msra.mxu0 0
      %1206 = vmatpush.bf16.msra.mxu0 0
      %1207 = vmatpush.bf16.msra.mxu0 0
      %1208 = vmatpush.bf16.msra.mxu0 %v662
      %1209 = vmatpush.bf16.msra.mxu0 %v661
      %1210 = vmatpush.bf16.msra.mxu0 %v660
      %1211 = vmatpush.bf16.msra.mxu0 %v659
      %1212 = vmatmul.bf16.gmra.mxu0 %v1202
      %v1213 = vpop.f32.mrf.mxu0
      %v1214 = vadd.f32 0.0, %v1213
      %v1215 = vpop.f32.mrf.mxu0
      %v1216 = vadd.f32 0.0, %v1215
      %1217 = vdwg.mxu0
      %v1218 = vpack.c.bf16 %v1216, %v1214
      %s1219 = scalar_lea.vmem %s4, 320
      %v1220 = vld [vmem:[%s1219] sm:$0xf]
      %v1221 = vld [vmem:[%s1219 + $0x4] sm:$0xf]
      %v1222 = vld [vmem:[%s1219 + $0x8] sm:$0xf]
      %v1223 = vld [vmem:[%s1219 + $0xc] sm:$0xf]
      %v1224 = vld [vmem:[%s1219 + $0x10] sm:$0xf]
      %v1225 = vld [vmem:[%s1219 + $0x14] sm:$0xf]
      %v1226 = vld [vmem:[%s1219 + $0x18] sm:$0xf]
      %v1227 = vld [vmem:[%s1219 + $0x1c] sm:$0xf]
      %v1228 = vld [vmem:[%s1219 + $0x20] sm:$0xf]
      %v1229 = vld [vmem:[%s1219 + $0x24] sm:$0xf]
      %v1230 = vld [vmem:[%s1219 + $0x28] sm:$0xf]
      %v1231 = vld [vmem:[%s1219 + $0x2c] sm:$0xf]
      %v1232 = vld [vmem:[%s1219 + $0x30] sm:$0xf]
      %v1233 = vld [vmem:[%s1219 + $0x34] sm:$0xf]
      %v1234 = vld [vmem:[%s1219 + $0x38] sm:$0xf]
      %v1235 = vld [vmem:[%s1219 + $0x3c] sm:$0xf]
      %v1252 = vunpack.c.l.b16 %v1220
      %v1253 = vunpack.c.l.b16 %v1221
      %v1254 = vunpack.c.l.b16 %v1222
      %v1255 = vunpack.c.l.b16 %v1223
      %v1256 = vunpack.c.l.b16 %v1224
      %v1257 = vunpack.c.l.b16 %v1225
      %v1258 = vunpack.c.l.b16 %v1226
      %v1259 = vunpack.c.l.b16 %v1227
      %v1260 = vunpack.c.l.b16 %v1228
      %v1261 = vunpack.c.l.b16 %v1229
      %v1262 = vunpack.c.l.b16 %v1230
      %v1263 = vunpack.c.l.b16 %v1231
      %v1264 = vunpack.c.l.b16 %v1232
      %v1265 = vunpack.c.l.b16 %v1233
      %v1266 = vunpack.c.l.b16 %v1234
      %v1267 = vunpack.c.l.b16 %v1235
      %v1268 = vpack.c.b16 %v1253, %v1252
      %v1269 = vpack.c.b16 %v1255, %v1254
      %v1270 = vpack.c.b16 %v1257, %v1256
      %v1271 = vpack.c.b16 %v1259, %v1258
      %v1272 = vpack.c.b16 %v1261, %v1260
      %v1273 = vpack.c.b16 %v1263, %v1262
      %v1274 = vpack.c.b16 %v1265, %v1264
      %v1275 = vpack.c.b16 %v1267, %v1266
      %1284 = vmatpush.bf16.msra.mxu0 %v1275
      %1285 = vmatpush.bf16.msra.mxu0 %v1274
      %1286 = vmatpush.bf16.msra.mxu0 %v1273
      %1287 = vmatpush.bf16.msra.mxu0 %v1272
      %1288 = vmatpush.bf16.msra.mxu0 %v1271
      %1289 = vmatpush.bf16.msra.mxu0 %v1270
      %1290 = vmatpush.bf16.msra.mxu0 %v1269
      %1291 = vmatpush.bf16.msra.mxu0 %v1268
      %1292 = vmatmul.bf16.gmra.mxu0 %v1218
      %v1293 = vpop.f32.mrf.mxu0
      %v1294 = vadd.f32 0.0, %v1293
      %v1295 = vpop.f32.mrf.mxu0
      %v1296 = vadd.f32 0.0, %v1295
      %1297 = vdwg.mxu0
      %v1298 = vadd.f32 %v1191, %v1294
      %v1299 = vadd.f32 %v1192, %v1296
      %s1300 = scalar_lea.vmem %s3, 48
      %v1301 = vld [vmem:[%s1300] sm:$0xf]
      %v1302 = vld [vmem:[%s1300 + $0x4] sm:$0xf]
      %v1305 = vunpack.c.l.b16 %v1301
      %v1306 = vunpack.c.l.b16 %v1302
      %v1307 = vpack.c.b16 %v1306, %v1305
      %v1309 = vsel %vm670, %v1307, 0
      %1311 = vmatpush.bf16.msra.mxu0 0
      %1312 = vmatpush.bf16.msra.mxu0 0
      %1313 = vmatpush.bf16.msra.mxu0 0
      %1314 = vmatpush.bf16.msra.mxu0 0
      %1315 = vmatpush.bf16.msra.mxu0 %v662
      %1316 = vmatpush.bf16.msra.mxu0 %v661
      %1317 = vmatpush.bf16.msra.mxu0 %v660
      %1318 = vmatpush.bf16.msra.mxu0 %v659
      %1319 = vmatmul.bf16.gmra.mxu0 %v1309
      %v1320 = vpop.f32.mrf.mxu0
      %v1321 = vadd.f32 0.0, %v1320
      %v1322 = vpop.f32.mrf.mxu0
      %v1323 = vadd.f32 0.0, %v1322
      %1324 = vdwg.mxu0
      %v1325 = vpack.c.bf16 %v1323, %v1321
      %s1326 = scalar_lea.vmem %s4, 384
      %v1327 = vld [vmem:[%s1326] sm:$0xf]
      %v1328 = vld [vmem:[%s1326 + $0x4] sm:$0xf]
      %v1329 = vld [vmem:[%s1326 + $0x8] sm:$0xf]
      %v1330 = vld [vmem:[%s1326 + $0xc] sm:$0xf]
      %v1331 = vld [vmem:[%s1326 + $0x10] sm:$0xf]
      %v1332 = vld [vmem:[%s1326 + $0x14] sm:$0xf]
      %v1333 = vld [vmem:[%s1326 + $0x18] sm:$0xf]
      %v1334 = vld [vmem:[%s1326 + $0x1c] sm:$0xf]
      %v1335 = vld [vmem:[%s1326 + $0x20] sm:$0xf]
      %v1336 = vld [vmem:[%s1326 + $0x24] sm:$0xf]
      %v1337 = vld [vmem:[%s1326 + $0x28] sm:$0xf]
      %v1338 = vld [vmem:[%s1326 + $0x2c] sm:$0xf]
      %v1339 = vld [vmem:[%s1326 + $0x30] sm:$0xf]
      %v1340 = vld [vmem:[%s1326 + $0x34] sm:$0xf]
      %v1341 = vld [vmem:[%s1326 + $0x38] sm:$0xf]
      %v1342 = vld [vmem:[%s1326 + $0x3c] sm:$0xf]
      %v1359 = vunpack.c.l.b16 %v1327
      %v1360 = vunpack.c.l.b16 %v1328
      %v1361 = vunpack.c.l.b16 %v1329
      %v1362 = vunpack.c.l.b16 %v1330
      %v1363 = vunpack.c.l.b16 %v1331
      %v1364 = vunpack.c.l.b16 %v1332
      %v1365 = vunpack.c.l.b16 %v1333
      %v1366 = vunpack.c.l.b16 %v1334
      %v1367 = vunpack.c.l.b16 %v1335
      %v1368 = vunpack.c.l.b16 %v1336
      %v1369 = vunpack.c.l.b16 %v1337
      %v1370 = vunpack.c.l.b16 %v1338
      %v1371 = vunpack.c.l.b16 %v1339
      %v1372 = vunpack.c.l.b16 %v1340
      %v1373 = vunpack.c.l.b16 %v1341
      %v1374 = vunpack.c.l.b16 %v1342
      %v1375 = vpack.c.b16 %v1360, %v1359
      %v1376 = vpack.c.b16 %v1362, %v1361
      %v1377 = vpack.c.b16 %v1364, %v1363
      %v1378 = vpack.c.b16 %v1366, %v1365
      %v1379 = vpack.c.b16 %v1368, %v1367
      %v1380 = vpack.c.b16 %v1370, %v1369
      %v1381 = vpack.c.b16 %v1372, %v1371
      %v1382 = vpack.c.b16 %v1374, %v1373
      %1391 = vmatpush.bf16.msra.mxu0 %v1382
      %1392 = vmatpush.bf16.msra.mxu0 %v1381
      %1393 = vmatpush.bf16.msra.mxu0 %v1380
      %1394 = vmatpush.bf16.msra.mxu0 %v1379
      %1395 = vmatpush.bf16.msra.mxu0 %v1378
      %1396 = vmatpush.bf16.msra.mxu0 %v1377
      %1397 = vmatpush.bf16.msra.mxu0 %v1376
      %1398 = vmatpush.bf16.msra.mxu0 %v1375
      %1399 = vmatmul.bf16.gmra.mxu0 %v1325
      %v1400 = vpop.f32.mrf.mxu0
      %v1401 = vadd.f32 0.0, %v1400
      %v1402 = vpop.f32.mrf.mxu0
      %v1403 = vadd.f32 0.0, %v1402
      %1404 = vdwg.mxu0
      %v1405 = vadd.f32 %v1298, %v1401
      %v1406 = vadd.f32 %v1299, %v1403
      %s1407 = scalar_lea.vmem %s3, 56
      %v1408 = vld [vmem:[%s1407] sm:$0xf]
      %v1409 = vld [vmem:[%s1407 + $0x4] sm:$0xf]
      %v1412 = vunpack.c.l.b16 %v1408
      %v1413 = vunpack.c.l.b16 %v1409
      %v1414 = vpack.c.b16 %v1413, %v1412
      %v1416 = vsel %vm670, %v1414, 0
      %1418 = vmatpush.bf16.msra.mxu0 0
      %1419 = vmatpush.bf16.msra.mxu0 0
      %1420 = vmatpush.bf16.msra.mxu0 0
      %1421 = vmatpush.bf16.msra.mxu0 0
      %1422 = vmatpush.bf16.msra.mxu0 %v662
      %1423 = vmatpush.bf16.msra.mxu0 %v661
      %1424 = vmatpush.bf16.msra.mxu0 %v660
      %1425 = vmatpush.bf16.msra.mxu0 %v659
      %1426 = vmatmul.bf16.gmra.mxu0 %v1416
      %v1427 = vpop.f32.mrf.mxu0
      %v1428 = vadd.f32 0.0, %v1427
      %v1429 = vpop.f32.mrf.mxu0
      %v1430 = vadd.f32 0.0, %v1429
      %1431 = vdwg.mxu0
      %v1432 = vpack.c.bf16 %v1430, %v1428
      %s1433 = scalar_lea.vmem %s4, 448
      %v1434 = vld [vmem:[%s1433] sm:$0xf]
      %v1435 = vld [vmem:[%s1433 + $0x4] sm:$0xf]
      %v1436 = vld [vmem:[%s1433 + $0x8] sm:$0xf]
      %v1437 = vld [vmem:[%s1433 + $0xc] sm:$0xf]
      %v1438 = vld [vmem:[%s1433 + $0x10] sm:$0xf]
      %v1439 = vld [vmem:[%s1433 + $0x14] sm:$0xf]
      %v1440 = vld [vmem:[%s1433 + $0x18] sm:$0xf]
      %v1441 = vld [vmem:[%s1433 + $0x1c] sm:$0xf]
      %v1442 = vld [vmem:[%s1433 + $0x20] sm:$0xf]
      %v1443 = vld [vmem:[%s1433 + $0x24] sm:$0xf]
      %v1444 = vld [vmem:[%s1433 + $0x28] sm:$0xf]
      %v1445 = vld [vmem:[%s1433 + $0x2c] sm:$0xf]
      %v1446 = vld [vmem:[%s1433 + $0x30] sm:$0xf]
      %v1447 = vld [vmem:[%s1433 + $0x34] sm:$0xf]
      %v1448 = vld [vmem:[%s1433 + $0x38] sm:$0xf]
      %v1449 = vld [vmem:[%s1433 + $0x3c] sm:$0xf]
      %v1466 = vunpack.c.l.b16 %v1434
      %v1467 = vunpack.c.l.b16 %v1435
      %v1468 = vunpack.c.l.b16 %v1436
      %v1469 = vunpack.c.l.b16 %v1437
      %v1470 = vunpack.c.l.b16 %v1438
      %v1471 = vunpack.c.l.b16 %v1439
      %v1472 = vunpack.c.l.b16 %v1440
      %v1473 = vunpack.c.l.b16 %v1441
      %v1474 = vunpack.c.l.b16 %v1442
      %v1475 = vunpack.c.l.b16 %v1443
      %v1476 = vunpack.c.l.b16 %v1444
      %v1477 = vunpack.c.l.b16 %v1445
      %v1478 = vunpack.c.l.b16 %v1446
      %v1479 = vunpack.c.l.b16 %v1447
      %v1480 = vunpack.c.l.b16 %v1448
      %v1481 = vunpack.c.l.b16 %v1449
      %v1482 = vpack.c.b16 %v1467, %v1466
      %v1483 = vpack.c.b16 %v1469, %v1468
      %v1484 = vpack.c.b16 %v1471, %v1470
      %v1485 = vpack.c.b16 %v1473, %v1472
      %v1486 = vpack.c.b16 %v1475, %v1474
      %v1487 = vpack.c.b16 %v1477, %v1476
      %v1488 = vpack.c.b16 %v1479, %v1478
      %v1489 = vpack.c.b16 %v1481, %v1480
      %1498 = vmatpush.bf16.msra.mxu0 %v1489
      %1499 = vmatpush.bf16.msra.mxu0 %v1488
      %1500 = vmatpush.bf16.msra.mxu0 %v1487
      %1501 = vmatpush.bf16.msra.mxu0 %v1486
      %1502 = vmatpush.bf16.msra.mxu0 %v1485
      %1503 = vmatpush.bf16.msra.mxu0 %v1484
      %1504 = vmatpush.bf16.msra.mxu0 %v1483
      %1505 = vmatpush.bf16.msra.mxu0 %v1482
      %1506 = vmatmul.bf16.gmra.mxu0 %v1432
      %v1507 = vpop.f32.mrf.mxu0
      %v1508 = vadd.f32 0.0, %v1507
      %v1509 = vpop.f32.mrf.mxu0
      %v1510 = vadd.f32 0.0, %v1509
      %1511 = vdwg.mxu0
      %v1512 = vadd.f32 %v1405, %v1508
      %v1513 = vadd.f32 %v1406, %v1510
      %s1514 = scalar_lea.vmem %s3, 64
      %v1515 = vld [vmem:[%s1514] sm:$0xf]
      %v1516 = vld [vmem:[%s1514 + $0x4] sm:$0xf]
      %v1519 = vunpack.c.l.b16 %v1515
      %v1520 = vunpack.c.l.b16 %v1516
      %v1521 = vpack.c.b16 %v1520, %v1519
      %v1523 = vsel %vm670, %v1521, 0
      %1525 = vmatpush.bf16.msra.mxu0 0
      %1526 = vmatpush.bf16.msra.mxu0 0
      %1527 = vmatpush.bf16.msra.mxu0 0
      %1528 = vmatpush.bf16.msra.mxu0 0
      %1529 = vmatpush.bf16.msra.mxu0 %v662
      %1530 = vmatpush.bf16.msra.mxu0 %v661
      %1531 = vmatpush.bf16.msra.mxu0 %v660
      %1532 = vmatpush.bf16.msra.mxu0 %v659
      %1533 = vmatmul.bf16.gmra.mxu0 %v1523
      %v1534 = vpop.f32.mrf.mxu0
      %v1535 = vadd.f32 0.0, %v1534
      %v1536 = vpop.f32.mrf.mxu0
      %v1537 = vadd.f32 0.0, %v1536
      %1538 = vdwg.mxu0
      %v1539 = vpack.c.bf16 %v1537, %v1535
      %s1540 = scalar_lea.vmem %s4, 512
      %v1541 = vld [vmem:[%s1540] sm:$0xf]
      %v1542 = vld [vmem:[%s1540 + $0x4] sm:$0xf]
      %v1543 = vld [vmem:[%s1540 + $0x8] sm:$0xf]
      %v1544 = vld [vmem:[%s1540 + $0xc] sm:$0xf]
      %v1545 = vld [vmem:[%s1540 + $0x10] sm:$0xf]
      %v1546 = vld [vmem:[%s1540 + $0x14] sm:$0xf]
      %v1547 = vld [vmem:[%s1540 + $0x18] sm:$0xf]
      %v1548 = vld [vmem:[%s1540 + $0x1c] sm:$0xf]
      %v1549 = vld [vmem:[%s1540 + $0x20] sm:$0xf]
      %v1550 = vld [vmem:[%s1540 + $0x24] sm:$0xf]
      %v1551 = vld [vmem:[%s1540 + $0x28] sm:$0xf]
      %v1552 = vld [vmem:[%s1540 + $0x2c] sm:$0xf]
      %v1553 = vld [vmem:[%s1540 + $0x30] sm:$0xf]
      %v1554 = vld [vmem:[%s1540 + $0x34] sm:$0xf]
      %v1555 = vld [vmem:[%s1540 + $0x38] sm:$0xf]
      %v1556 = vld [vmem:[%s1540 + $0x3c] sm:$0xf]
      %v1573 = vunpack.c.l.b16 %v1541
      %v1574 = vunpack.c.l.b16 %v1542
      %v1575 = vunpack.c.l.b16 %v1543
      %v1576 = vunpack.c.l.b16 %v1544
      %v1577 = vunpack.c.l.b16 %v1545
      %v1578 = vunpack.c.l.b16 %v1546
      %v1579 = vunpack.c.l.b16 %v1547
      %v1580 = vunpack.c.l.b16 %v1548
      %v1581 = vunpack.c.l.b16 %v1549
      %v1582 = vunpack.c.l.b16 %v1550
      %v1583 = vunpack.c.l.b16 %v1551
      %v1584 = vunpack.c.l.b16 %v1552
      %v1585 = vunpack.c.l.b16 %v1553
      %v1586 = vunpack.c.l.b16 %v1554
      %v1587 = vunpack.c.l.b16 %v1555
      %v1588 = vunpack.c.l.b16 %v1556
      %v1589 = vpack.c.b16 %v1574, %v1573
      %v1590 = vpack.c.b16 %v1576, %v1575
      %v1591 = vpack.c.b16 %v1578, %v1577
      %v1592 = vpack.c.b16 %v1580, %v1579
      %v1593 = vpack.c.b16 %v1582, %v1581
      %v1594 = vpack.c.b16 %v1584, %v1583
      %v1595 = vpack.c.b16 %v1586, %v1585
      %v1596 = vpack.c.b16 %v1588, %v1587
      %1605 = vmatpush.bf16.msra.mxu0 %v1596
      %1606 = vmatpush.bf16.msra.mxu0 %v1595
      %1607 = vmatpush.bf16.msra.mxu0 %v1594
      %1608 = vmatpush.bf16.msra.mxu0 %v1593
      %1609 = vmatpush.bf16.msra.mxu0 %v1592
      %1610 = vmatpush.bf16.msra.mxu0 %v1591
      %1611 = vmatpush.bf16.msra.mxu0 %v1590
      %1612 = vmatpush.bf16.msra.mxu0 %v1589
      %1613 = vmatmul.bf16.gmra.mxu0 %v1539
      %v1614 = vpop.f32.mrf.mxu0
      %v1615 = vadd.f32 0.0, %v1614
      %v1616 = vpop.f32.mrf.mxu0
      %v1617 = vadd.f32 0.0, %v1616
      %1618 = vdwg.mxu0
      %v1619 = vadd.f32 %v1512, %v1615
      %v1620 = vadd.f32 %v1513, %v1617
      %v1621 = vld [vmem:[%s5] sm:$0x1]
      %v1623 = vperm.slane %v1621, 0
      %v1625 = vadd.f32 %v1619, %v1623
      %v1626 = vadd.f32 %v1620, %v1623
      %v1627 = vmax.f32 %v1625, 0.0
      %v1628 = vmax.f32 %v1626, 0.0
      %v1629 = vpack.c.bf16 %v1628, %v1627
      %v1630 = vld [vmem:[%s6] sm:$0xf]
      %vm1631 = vcmask 130048
      %v1633 = vsel %vm1631, %v1630, 0
      %1635 = vmatpush.bf16.msra.mxu0 0
      %1636 = vmatpush.bf16.msra.mxu0 0
      %1637 = vmatpush.bf16.msra.mxu0 0
      %1638 = vmatpush.bf16.msra.mxu0 0
      %1639 = vmatpush.bf16.msra.mxu0 0
      %1640 = vmatpush.bf16.msra.mxu0 0
      %1641 = vmatpush.bf16.msra.mxu0 0
      %1642 = vmatpush.bf16.msra.mxu0 %v1629
      %1643 = vmatmul.bf16.gmra.mxu0 %v1633
      %v1644 = vpop.f32.mrf.mxu0
      %v1645 = vadd.f32 0.0, %v1644
      %v1646 = vpop.f32.mrf.mxu0
      %1647 = vdwg.mxu0
      %v1648 = vpack.c.bf16 %v1645, %v1645
      %v1649 = vld [vmem:[%s7] sm:$0xf]
      %v1650 = vld [vmem:[%s7 + $0x4] sm:$0xf]
      %v1651 = vld [vmem:[%s7 + $0x8] sm:$0xf]
      %v1652 = vld [vmem:[%s7 + $0xc] sm:$0xf]
      %v1653 = vld [vmem:[%s7 + $0x10] sm:$0xf]
      %v1654 = vld [vmem:[%s7 + $0x14] sm:$0xf]
      %v1655 = vld [vmem:[%s7 + $0x18] sm:$0xf]
      %v1656 = vld [vmem:[%s7 + $0x1c] sm:$0xf]
      %v1657 = vld [vmem:[%s7 + $0x20] sm:$0xf]
      %v1658 = vld [vmem:[%s7 + $0x24] sm:$0xf]
      %v1659 = vld [vmem:[%s7 + $0x28] sm:$0xf]
      %v1660 = vld [vmem:[%s7 + $0x2c] sm:$0xf]
      %v1661 = vld [vmem:[%s7 + $0x30] sm:$0xf]
      %v1662 = vld [vmem:[%s7 + $0x34] sm:$0xf]
      %v1663 = vld [vmem:[%s7 + $0x38] sm:$0xf]
      %v1664 = vld [vmem:[%s7 + $0x3c] sm:$0xf]
      %s1665 = scalar_lea.vmem %s6, 4
      %v1666 = vld [vmem:[%s1665] sm:$0xf]
      %v1668 = vsel %vm1631, %v1666, 0
      %1670 = vmatpush.bf16.msra.mxu0 0
      %1671 = vmatpush.bf16.msra.mxu0 0
      %1672 = vmatpush.bf16.msra.mxu0 0
      %1673 = vmatpush.bf16.msra.mxu0 0
      %1674 = vmatpush.bf16.msra.mxu0 0
      %1675 = vmatpush.bf16.msra.mxu0 0
      %1676 = vmatpush.bf16.msra.mxu0 0
      %1677 = vmatpush.bf16.msra.mxu0 %v1629
      %1678 = vmatmul.bf16.gmra.mxu0 %v1668
      %v1679 = vpop.f32.mrf.mxu0
      %v1680 = vadd.f32 0.0, %v1679
      %v1681 = vpop.f32.mrf.mxu0
      %1682 = vdwg.mxu0
      %v1683 = vpack.c.bf16 %v1680, %v1680
      %s1684 = scalar_lea.vmem %s7, 64
      %v1685 = vld [vmem:[%s1684] sm:$0xf]
      %v1686 = vld [vmem:[%s1684 + $0x4] sm:$0xf]
      %v1687 = vld [vmem:[%s1684 + $0x8] sm:$0xf]
      %v1688 = vld [vmem:[%s1684 + $0xc] sm:$0xf]
      %v1689 = vld [vmem:[%s1684 + $0x10] sm:$0xf]
      %v1690 = vld [vmem:[%s1684 + $0x14] sm:$0xf]
      %v1691 = vld [vmem:[%s1684 + $0x18] sm:$0xf]
      %v1692 = vld [vmem:[%s1684 + $0x1c] sm:$0xf]
      %v1693 = vld [vmem:[%s1684 + $0x20] sm:$0xf]
      %v1694 = vld [vmem:[%s1684 + $0x24] sm:$0xf]
      %v1695 = vld [vmem:[%s1684 + $0x28] sm:$0xf]
      %v1696 = vld [vmem:[%s1684 + $0x2c] sm:$0xf]
      %v1697 = vld [vmem:[%s1684 + $0x30] sm:$0xf]
      %v1698 = vld [vmem:[%s1684 + $0x34] sm:$0xf]
      %v1699 = vld [vmem:[%s1684 + $0x38] sm:$0xf]
      %v1700 = vld [vmem:[%s1684 + $0x3c] sm:$0xf]
      %v1717 = vunpack.c.l.b16 %v1685
      %v1718 = vunpack.c.l.b16 %v1686
      %v1719 = vunpack.c.l.b16 %v1687
      %v1720 = vunpack.c.l.b16 %v1688
      %v1721 = vunpack.c.l.b16 %v1689
      %v1722 = vunpack.c.l.b16 %v1690
      %v1723 = vunpack.c.l.b16 %v1691
      %v1724 = vunpack.c.l.b16 %v1692
      %v1725 = vunpack.c.l.b16 %v1693
      %v1726 = vunpack.c.l.b16 %v1694
      %v1727 = vunpack.c.l.b16 %v1695
      %v1728 = vunpack.c.l.b16 %v1696
      %v1729 = vunpack.c.l.b16 %v1697
      %v1730 = vunpack.c.l.b16 %v1698
      %v1731 = vunpack.c.l.b16 %v1699
      %v1732 = vunpack.c.l.b16 %v1700
      %v1733 = vpack.c.b16 %v1718, %v1717
      %v1734 = vpack.c.b16 %v1720, %v1719
      %v1735 = vpack.c.b16 %v1722, %v1721
      %v1736 = vpack.c.b16 %v1724, %v1723
      %v1737 = vpack.c.b16 %v1726, %v1725
      %v1738 = vpack.c.b16 %v1728, %v1727
      %v1739 = vpack.c.b16 %v1730, %v1729
      %v1740 = vpack.c.b16 %v1732, %v1731
      %1749 = vmatpush.bf16.msra.mxu0 %v1740
      %1750 = vmatpush.bf16.msra.mxu0 %v1739
      %1751 = vmatpush.bf16.msra.mxu0 %v1738
      %1752 = vmatpush.bf16.msra.mxu0 %v1737
      %1753 = vmatpush.bf16.msra.mxu0 %v1736
      %1754 = vmatpush.bf16.msra.mxu0 %v1735
      %1755 = vmatpush.bf16.msra.mxu0 %v1734
      %1756 = vmatpush.bf16.msra.mxu0 %v1733
      %1757 = vmatmul.bf16.gmra.mxu0 %v1683
      %v1758 = vpop.f32.mrf.mxu0
      %v1759 = vadd.f32 0.0, %v1758
      %v1760 = vpop.f32.mrf.mxu0
      %1761 = vdwg.mxu0
      %v1778 = vunpack.c.l.b16 %v1649
      %v1779 = vunpack.c.l.b16 %v1650
      %v1780 = vunpack.c.l.b16 %v1651
      %v1781 = vunpack.c.l.b16 %v1652
      %v1782 = vunpack.c.l.b16 %v1653
      %v1783 = vunpack.c.l.b16 %v1654
      %v1784 = vunpack.c.l.b16 %v1655
      %v1785 = vunpack.c.l.b16 %v1656
      %v1786 = vunpack.c.l.b16 %v1657
      %v1787 = vunpack.c.l.b16 %v1658
      %v1788 = vunpack.c.l.b16 %v1659
      %v1789 = vunpack.c.l.b16 %v1660
      %v1790 = vunpack.c.l.b16 %v1661
      %v1791 = vunpack.c.l.b16 %v1662
      %v1792 = vunpack.c.l.b16 %v1663
      %v1793 = vunpack.c.l.b16 %v1664
      %v1794 = vpack.c.b16 %v1779, %v1778
      %v1795 = vpack.c.b16 %v1781, %v1780
      %v1796 = vpack.c.b16 %v1783, %v1782
      %v1797 = vpack.c.b16 %v1785, %v1784
      %v1798 = vpack.c.b16 %v1787, %v1786
      %v1799 = vpack.c.b16 %v1789, %v1788
      %v1800 = vpack.c.b16 %v1791, %v1790
      %v1801 = vpack.c.b16 %v1793, %v1792
      %1810 = vmatpush.bf16.msra.mxu0 %v1801
      %1811 = vmatpush.bf16.msra.mxu0 %v1800
      %1812 = vmatpush.bf16.msra.mxu0 %v1799
      %1813 = vmatpush.bf16.msra.mxu0 %v1798
      %1814 = vmatpush.bf16.msra.mxu0 %v1797
      %1815 = vmatpush.bf16.msra.mxu0 %v1796
      %1816 = vmatpush.bf16.msra.mxu0 %v1795
      %1817 = vmatpush.bf16.msra.mxu0 %v1794
      %1818 = vmatmul.bf16.gmra.mxu0 %v1648
      %v1819 = vpop.f32.mrf.mxu0
      %v1820 = vadd.f32 %v1759, %v1819
      %v1821 = vpop.f32.mrf.mxu0
      %1822 = vdwg.mxu0
      %s1823 = scalar_lea.vmem %s6, 8
      %v1824 = vld [vmem:[%s1823] sm:$0xf]
      %v1826 = vsel %vm1631, %v1824, 0
      %1828 = vmatpush.bf16.msra.mxu0 0
      %1829 = vmatpush.bf16.msra.mxu0 0
      %1830 = vmatpush.bf16.msra.mxu0 0
      %1831 = vmatpush.bf16.msra.mxu0 0
      %1832 = vmatpush.bf16.msra.mxu0 0
      %1833 = vmatpush.bf16.msra.mxu0 0
      %1834 = vmatpush.bf16.msra.mxu0 0
      %1835 = vmatpush.bf16.msra.mxu0 %v1629
      %1836 = vmatmul.bf16.gmra.mxu0 %v1826
      %v1837 = vpop.f32.mrf.mxu0
      %v1838 = vadd.f32 0.0, %v1837
      %v1839 = vpop.f32.mrf.mxu0
      %1840 = vdwg.mxu0
      %v1841 = vpack.c.bf16 %v1838, %v1838
      %s1842 = scalar_lea.vmem %s7, 128
      %v1843 = vld [vmem:[%s1842] sm:$0xf]
      %v1844 = vld [vmem:[%s1842 + $0x4] sm:$0xf]
      %v1845 = vld [vmem:[%s1842 + $0x8] sm:$0xf]
      %v1846 = vld [vmem:[%s1842 + $0xc] sm:$0xf]
      %v1847 = vld [vmem:[%s1842 + $0x10] sm:$0xf]
      %v1848 = vld [vmem:[%s1842 + $0x14] sm:$0xf]
      %v1849 = vld [vmem:[%s1842 + $0x18] sm:$0xf]
      %v1850 = vld [vmem:[%s1842 + $0x1c] sm:$0xf]
      %v1851 = vld [vmem:[%s1842 + $0x20] sm:$0xf]
      %v1852 = vld [vmem:[%s1842 + $0x24] sm:$0xf]
      %v1853 = vld [vmem:[%s1842 + $0x28] sm:$0xf]
      %v1854 = vld [vmem:[%s1842 + $0x2c] sm:$0xf]
      %v1855 = vld [vmem:[%s1842 + $0x30] sm:$0xf]
      %v1856 = vld [vmem:[%s1842 + $0x34] sm:$0xf]
      %v1857 = vld [vmem:[%s1842 + $0x38] sm:$0xf]
      %v1858 = vld [vmem:[%s1842 + $0x3c] sm:$0xf]
      %v1875 = vunpack.c.l.b16 %v1843
      %v1876 = vunpack.c.l.b16 %v1844
      %v1877 = vunpack.c.l.b16 %v1845
      %v1878 = vunpack.c.l.b16 %v1846
      %v1879 = vunpack.c.l.b16 %v1847
      %v1880 = vunpack.c.l.b16 %v1848
      %v1881 = vunpack.c.l.b16 %v1849
      %v1882 = vunpack.c.l.b16 %v1850
      %v1883 = vunpack.c.l.b16 %v1851
      %v1884 = vunpack.c.l.b16 %v1852
      %v1885 = vunpack.c.l.b16 %v1853
      %v1886 = vunpack.c.l.b16 %v1854
      %v1887 = vunpack.c.l.b16 %v1855
      %v1888 = vunpack.c.l.b16 %v1856
      %v1889 = vunpack.c.l.b16 %v1857
      %v1890 = vunpack.c.l.b16 %v1858
      %v1891 = vpack.c.b16 %v1876, %v1875
      %v1892 = vpack.c.b16 %v1878, %v1877
      %v1893 = vpack.c.b16 %v1880, %v1879
      %v1894 = vpack.c.b16 %v1882, %v1881
      %v1895 = vpack.c.b16 %v1884, %v1883
      %v1896 = vpack.c.b16 %v1886, %v1885
      %v1897 = vpack.c.b16 %v1888, %v1887
      %v1898 = vpack.c.b16 %v1890, %v1889
      %1907 = vmatpush.bf16.msra.mxu0 %v1898
      %1908 = vmatpush.bf16.msra.mxu0 %v1897
      %1909 = vmatpush.bf16.msra.mxu0 %v1896
      %1910 = vmatpush.bf16.msra.mxu0 %v1895
      %1911 = vmatpush.bf16.msra.mxu0 %v1894
      %1912 = vmatpush.bf16.msra.mxu0 %v1893
      %1913 = vmatpush.bf16.msra.mxu0 %v1892
      %1914 = vmatpush.bf16.msra.mxu0 %v1891
      %1915 = vmatmul.bf16.gmra.mxu0 %v1841
      %v1916 = vpop.f32.mrf.mxu0
      %v1917 = vadd.f32 0.0, %v1916
      %v1918 = vpop.f32.mrf.mxu0
      %1919 = vdwg.mxu0
      %v1920 = vadd.f32 %v1820, %v1917
      %s1921 = scalar_lea.vmem %s6, 12
      %v1922 = vld [vmem:[%s1921] sm:$0xf]
      %v1924 = vsel %vm1631, %v1922, 0
      %1926 = vmatpush.bf16.msra.mxu0 0
      %1927 = vmatpush.bf16.msra.mxu0 0
      %1928 = vmatpush.bf16.msra.mxu0 0
      %1929 = vmatpush.bf16.msra.mxu0 0
      %1930 = vmatpush.bf16.msra.mxu0 0
      %1931 = vmatpush.bf16.msra.mxu0 0
      %1932 = vmatpush.bf16.msra.mxu0 0
      %1933 = vmatpush.bf16.msra.mxu0 %v1629
      %1934 = vmatmul.bf16.gmra.mxu0 %v1924
      %v1935 = vpop.f32.mrf.mxu0
      %v1936 = vadd.f32 0.0, %v1935
      %v1937 = vpop.f32.mrf.mxu0
      %1938 = vdwg.mxu0
      %v1939 = vpack.c.bf16 %v1936, %v1936
      %s1940 = scalar_lea.vmem %s7, 192
      %v1941 = vld [vmem:[%s1940] sm:$0xf]
      %v1942 = vld [vmem:[%s1940 + $0x4] sm:$0xf]
      %v1943 = vld [vmem:[%s1940 + $0x8] sm:$0xf]
      %v1944 = vld [vmem:[%s1940 + $0xc] sm:$0xf]
      %v1945 = vld [vmem:[%s1940 + $0x10] sm:$0xf]
      %v1946 = vld [vmem:[%s1940 + $0x14] sm:$0xf]
      %v1947 = vld [vmem:[%s1940 + $0x18] sm:$0xf]
      %v1948 = vld [vmem:[%s1940 + $0x1c] sm:$0xf]
      %v1949 = vld [vmem:[%s1940 + $0x20] sm:$0xf]
      %v1950 = vld [vmem:[%s1940 + $0x24] sm:$0xf]
      %v1951 = vld [vmem:[%s1940 + $0x28] sm:$0xf]
      %v1952 = vld [vmem:[%s1940 + $0x2c] sm:$0xf]
      %v1953 = vld [vmem:[%s1940 + $0x30] sm:$0xf]
      %v1954 = vld [vmem:[%s1940 + $0x34] sm:$0xf]
      %v1955 = vld [vmem:[%s1940 + $0x38] sm:$0xf]
      %v1956 = vld [vmem:[%s1940 + $0x3c] sm:$0xf]
      %v1973 = vunpack.c.l.b16 %v1941
      %v1974 = vunpack.c.l.b16 %v1942
      %v1975 = vunpack.c.l.b16 %v1943
      %v1976 = vunpack.c.l.b16 %v1944
      %v1977 = vunpack.c.l.b16 %v1945
      %v1978 = vunpack.c.l.b16 %v1946
      %v1979 = vunpack.c.l.b16 %v1947
      %v1980 = vunpack.c.l.b16 %v1948
      %v1981 = vunpack.c.l.b16 %v1949
      %v1982 = vunpack.c.l.b16 %v1950
      %v1983 = vunpack.c.l.b16 %v1951
      %v1984 = vunpack.c.l.b16 %v1952
      %v1985 = vunpack.c.l.b16 %v1953
      %v1986 = vunpack.c.l.b16 %v1954
      %v1987 = vunpack.c.l.b16 %v1955
      %v1988 = vunpack.c.l.b16 %v1956
      %v1989 = vpack.c.b16 %v1974, %v1973
      %v1990 = vpack.c.b16 %v1976, %v1975
      %v1991 = vpack.c.b16 %v1978, %v1977
      %v1992 = vpack.c.b16 %v1980, %v1979
      %v1993 = vpack.c.b16 %v1982, %v1981
      %v1994 = vpack.c.b16 %v1984, %v1983
      %v1995 = vpack.c.b16 %v1986, %v1985
      %v1996 = vpack.c.b16 %v1988, %v1987
      %2005 = vmatpush.bf16.msra.mxu0 %v1996
      %2006 = vmatpush.bf16.msra.mxu0 %v1995
      %2007 = vmatpush.bf16.msra.mxu0 %v1994
      %2008 = vmatpush.bf16.msra.mxu0 %v1993
      %2009 = vmatpush.bf16.msra.mxu0 %v1992
      %2010 = vmatpush.bf16.msra.mxu0 %v1991
      %2011 = vmatpush.bf16.msra.mxu0 %v1990
      %2012 = vmatpush.bf16.msra.mxu0 %v1989
      %2013 = vmatmul.bf16.gmra.mxu0 %v1939
      %v2014 = vpop.f32.mrf.mxu0
      %v2015 = vadd.f32 0.0, %v2014
      %v2016 = vpop.f32.mrf.mxu0
      %2017 = vdwg.mxu0
      %v2018 = vadd.f32 %v1920, %v2015
      %s2019 = scalar_lea.vmem %s6, 16
      %v2020 = vld [vmem:[%s2019] sm:$0xf]
      %v2022 = vsel %vm1631, %v2020, 0
      %2024 = vmatpush.bf16.msra.mxu0 0
      %2025 = vmatpush.bf16.msra.mxu0 0
      %2026 = vmatpush.bf16.msra.mxu0 0
      %2027 = vmatpush.bf16.msra.mxu0 0
      %2028 = vmatpush.bf16.msra.mxu0 0
      %2029 = vmatpush.bf16.msra.mxu0 0
      %2030 = vmatpush.bf16.msra.mxu0 0
      %2031 = vmatpush.bf16.msra.mxu0 %v1629
      %2032 = vmatmul.bf16.gmra.mxu0 %v2022
      %v2033 = vpop.f32.mrf.mxu0
      %v2034 = vadd.f32 0.0, %v2033
      %v2035 = vpop.f32.mrf.mxu0
      %2036 = vdwg.mxu0
      %v2037 = vpack.c.bf16 %v2034, %v2034
      %s2038 = scalar_lea.vmem %s7, 256
      %v2039 = vld [vmem:[%s2038] sm:$0xf]
      %v2040 = vld [vmem:[%s2038 + $0x4] sm:$0xf]
      %v2041 = vld [vmem:[%s2038 + $0x8] sm:$0xf]
      %v2042 = vld [vmem:[%s2038 + $0xc] sm:$0xf]
      %v2043 = vld [vmem:[%s2038 + $0x10] sm:$0xf]
      %v2044 = vld [vmem:[%s2038 + $0x14] sm:$0xf]
      %v2045 = vld [vmem:[%s2038 + $0x18] sm:$0xf]
      %v2046 = vld [vmem:[%s2038 + $0x1c] sm:$0xf]
      %v2047 = vld [vmem:[%s2038 + $0x20] sm:$0xf]
      %v2048 = vld [vmem:[%s2038 + $0x24] sm:$0xf]
      %v2049 = vld [vmem:[%s2038 + $0x28] sm:$0xf]
      %v2050 = vld [vmem:[%s2038 + $0x2c] sm:$0xf]
      %v2051 = vld [vmem:[%s2038 + $0x30] sm:$0xf]
      %v2052 = vld [vmem:[%s2038 + $0x34] sm:$0xf]
      %v2053 = vld [vmem:[%s2038 + $0x38] sm:$0xf]
      %v2054 = vld [vmem:[%s2038 + $0x3c] sm:$0xf]
      %v2071 = vunpack.c.l.b16 %v2039
      %v2072 = vunpack.c.l.b16 %v2040
      %v2073 = vunpack.c.l.b16 %v2041
      %v2074 = vunpack.c.l.b16 %v2042
      %v2075 = vunpack.c.l.b16 %v2043
      %v2076 = vunpack.c.l.b16 %v2044
      %v2077 = vunpack.c.l.b16 %v2045
      %v2078 = vunpack.c.l.b16 %v2046
      %v2079 = vunpack.c.l.b16 %v2047
      %v2080 = vunpack.c.l.b16 %v2048
      %v2081 = vunpack.c.l.b16 %v2049
      %v2082 = vunpack.c.l.b16 %v2050
      %v2083 = vunpack.c.l.b16 %v2051
      %v2084 = vunpack.c.l.b16 %v2052
      %v2085 = vunpack.c.l.b16 %v2053
      %v2086 = vunpack.c.l.b16 %v2054
      %v2087 = vpack.c.b16 %v2072, %v2071
      %v2088 = vpack.c.b16 %v2074, %v2073
      %v2089 = vpack.c.b16 %v2076, %v2075
      %v2090 = vpack.c.b16 %v2078, %v2077
      %v2091 = vpack.c.b16 %v2080, %v2079
      %v2092 = vpack.c.b16 %v2082, %v2081
      %v2093 = vpack.c.b16 %v2084, %v2083
      %v2094 = vpack.c.b16 %v2086, %v2085
      %2103 = vmatpush.bf16.msra.mxu0 %v2094
      %2104 = vmatpush.bf16.msra.mxu0 %v2093
      %2105 = vmatpush.bf16.msra.mxu0 %v2092
      %2106 = vmatpush.bf16.msra.mxu0 %v2091
      %2107 = vmatpush.bf16.msra.mxu0 %v2090
      %2108 = vmatpush.bf16.msra.mxu0 %v2089
      %2109 = vmatpush.bf16.msra.mxu0 %v2088
      %2110 = vmatpush.bf16.msra.mxu0 %v2087
      %2111 = vmatmul.bf16.gmra.mxu0 %v2037
      %v2112 = vpop.f32.mrf.mxu0
      %v2113 = vadd.f32 0.0, %v2112
      %v2114 = vpop.f32.mrf.mxu0
      %2115 = vdwg.mxu0
      %v2116 = vadd.f32 %v2018, %v2113
      %s2117 = scalar_lea.vmem %s6, 20
      %v2118 = vld [vmem:[%s2117] sm:$0xf]
      %v2120 = vsel %vm1631, %v2118, 0
      %2122 = vmatpush.bf16.msra.mxu0 0
      %2123 = vmatpush.bf16.msra.mxu0 0
      %2124 = vmatpush.bf16.msra.mxu0 0
      %2125 = vmatpush.bf16.msra.mxu0 0
      %2126 = vmatpush.bf16.msra.mxu0 0
      %2127 = vmatpush.bf16.msra.mxu0 0
      %2128 = vmatpush.bf16.msra.mxu0 0
      %2129 = vmatpush.bf16.msra.mxu0 %v1629
      %2130 = vmatmul.bf16.gmra.mxu0 %v2120
      %v2131 = vpop.f32.mrf.mxu0
      %v2132 = vadd.f32 0.0, %v2131
      %v2133 = vpop.f32.mrf.mxu0
      %2134 = vdwg.mxu0
      %v2135 = vpack.c.bf16 %v2132, %v2132
      %s2136 = scalar_lea.vmem %s7, 320
      %v2137 = vld [vmem:[%s2136] sm:$0xf]
      %v2138 = vld [vmem:[%s2136 + $0x4] sm:$0xf]
      %v2139 = vld [vmem:[%s2136 + $0x8] sm:$0xf]
      %v2140 = vld [vmem:[%s2136 + $0xc] sm:$0xf]
      %v2141 = vld [vmem:[%s2136 + $0x10] sm:$0xf]
      %v2142 = vld [vmem:[%s2136 + $0x14] sm:$0xf]
      %v2143 = vld [vmem:[%s2136 + $0x18] sm:$0xf]
      %v2144 = vld [vmem:[%s2136 + $0x1c] sm:$0xf]
      %v2145 = vld [vmem:[%s2136 + $0x20] sm:$0xf]
      %v2146 = vld [vmem:[%s2136 + $0x24] sm:$0xf]
      %v2147 = vld [vmem:[%s2136 + $0x28] sm:$0xf]
      %v2148 = vld [vmem:[%s2136 + $0x2c] sm:$0xf]
      %v2149 = vld [vmem:[%s2136 + $0x30] sm:$0xf]
      %v2150 = vld [vmem:[%s2136 + $0x34] sm:$0xf]
      %v2151 = vld [vmem:[%s2136 + $0x38] sm:$0xf]
      %v2152 = vld [vmem:[%s2136 + $0x3c] sm:$0xf]
      %v2169 = vunpack.c.l.b16 %v2137
      %v2170 = vunpack.c.l.b16 %v2138
      %v2171 = vunpack.c.l.b16 %v2139
      %v2172 = vunpack.c.l.b16 %v2140
      %v2173 = vunpack.c.l.b16 %v2141
      %v2174 = vunpack.c.l.b16 %v2142
      %v2175 = vunpack.c.l.b16 %v2143
      %v2176 = vunpack.c.l.b16 %v2144
      %v2177 = vunpack.c.l.b16 %v2145
      %v2178 = vunpack.c.l.b16 %v2146
      %v2179 = vunpack.c.l.b16 %v2147
      %v2180 = vunpack.c.l.b16 %v2148
      %v2181 = vunpack.c.l.b16 %v2149
      %v2182 = vunpack.c.l.b16 %v2150
      %v2183 = vunpack.c.l.b16 %v2151
      %v2184 = vunpack.c.l.b16 %v2152
      %v2185 = vpack.c.b16 %v2170, %v2169
      %v2186 = vpack.c.b16 %v2172, %v2171
      %v2187 = vpack.c.b16 %v2174, %v2173
      %v2188 = vpack.c.b16 %v2176, %v2175
      %v2189 = vpack.c.b16 %v2178, %v2177
      %v2190 = vpack.c.b16 %v2180, %v2179
      %v2191 = vpack.c.b16 %v2182, %v2181
      %v2192 = vpack.c.b16 %v2184, %v2183
      %2201 = vmatpush.bf16.msra.mxu0 %v2192
      %2202 = vmatpush.bf16.msra.mxu0 %v2191
      %2203 = vmatpush.bf16.msra.mxu0 %v2190
      %2204 = vmatpush.bf16.msra.mxu0 %v2189
      %2205 = vmatpush.bf16.msra.mxu0 %v2188
      %2206 = vmatpush.bf16.msra.mxu0 %v2187
      %2207 = vmatpush.bf16.msra.mxu0 %v2186
      %2208 = vmatpush.bf16.msra.mxu0 %v2185
      %2209 = vmatmul.bf16.gmra.mxu0 %v2135
      %v2210 = vpop.f32.mrf.mxu0
      %v2211 = vadd.f32 0.0, %v2210
      %v2212 = vpop.f32.mrf.mxu0
      %2213 = vdwg.mxu0
      %v2214 = vadd.f32 %v2116, %v2211
      %s2215 = scalar_lea.vmem %s6, 24
      %v2216 = vld [vmem:[%s2215] sm:$0xf]
      %v2218 = vsel %vm1631, %v2216, 0
      %2220 = vmatpush.bf16.msra.mxu0 0
      %2221 = vmatpush.bf16.msra.mxu0 0
      %2222 = vmatpush.bf16.msra.mxu0 0
      %2223 = vmatpush.bf16.msra.mxu0 0
      %2224 = vmatpush.bf16.msra.mxu0 0
      %2225 = vmatpush.bf16.msra.mxu0 0
      %2226 = vmatpush.bf16.msra.mxu0 0
      %2227 = vmatpush.bf16.msra.mxu0 %v1629
      %2228 = vmatmul.bf16.gmra.mxu0 %v2218
      %v2229 = vpop.f32.mrf.mxu0
      %v2230 = vadd.f32 0.0, %v2229
      %v2231 = vpop.f32.mrf.mxu0
      %2232 = vdwg.mxu0
      %v2233 = vpack.c.bf16 %v2230, %v2230
      %s2234 = scalar_lea.vmem %s7, 384
      %v2235 = vld [vmem:[%s2234] sm:$0xf]
      %v2236 = vld [vmem:[%s2234 + $0x4] sm:$0xf]
      %v2237 = vld [vmem:[%s2234 + $0x8] sm:$0xf]
      %v2238 = vld [vmem:[%s2234 + $0xc] sm:$0xf]
      %v2239 = vld [vmem:[%s2234 + $0x10] sm:$0xf]
      %v2240 = vld [vmem:[%s2234 + $0x14] sm:$0xf]
      %v2241 = vld [vmem:[%s2234 + $0x18] sm:$0xf]
      %v2242 = vld [vmem:[%s2234 + $0x1c] sm:$0xf]
      %v2243 = vld [vmem:[%s2234 + $0x20] sm:$0xf]
      %v2244 = vld [vmem:[%s2234 + $0x24] sm:$0xf]
      %v2245 = vld [vmem:[%s2234 + $0x28] sm:$0xf]
      %v2246 = vld [vmem:[%s2234 + $0x2c] sm:$0xf]
      %v2247 = vld [vmem:[%s2234 + $0x30] sm:$0xf]
      %v2248 = vld [vmem:[%s2234 + $0x34] sm:$0xf]
      %v2249 = vld [vmem:[%s2234 + $0x38] sm:$0xf]
      %v2250 = vld [vmem:[%s2234 + $0x3c] sm:$0xf]
      %v2267 = vunpack.c.l.b16 %v2235
      %v2268 = vunpack.c.l.b16 %v2236
      %v2269 = vunpack.c.l.b16 %v2237
      %v2270 = vunpack.c.l.b16 %v2238
      %v2271 = vunpack.c.l.b16 %v2239
      %v2272 = vunpack.c.l.b16 %v2240
      %v2273 = vunpack.c.l.b16 %v2241
      %v2274 = vunpack.c.l.b16 %v2242
      %v2275 = vunpack.c.l.b16 %v2243
      %v2276 = vunpack.c.l.b16 %v2244
      %v2277 = vunpack.c.l.b16 %v2245
      %v2278 = vunpack.c.l.b16 %v2246
      %v2279 = vunpack.c.l.b16 %v2247
      %v2280 = vunpack.c.l.b16 %v2248
      %v2281 = vunpack.c.l.b16 %v2249
      %v2282 = vunpack.c.l.b16 %v2250
      %v2283 = vpack.c.b16 %v2268, %v2267
      %v2284 = vpack.c.b16 %v2270, %v2269
      %v2285 = vpack.c.b16 %v2272, %v2271
      %v2286 = vpack.c.b16 %v2274, %v2273
      %v2287 = vpack.c.b16 %v2276, %v2275
      %v2288 = vpack.c.b16 %v2278, %v2277
      %v2289 = vpack.c.b16 %v2280, %v2279
      %v2290 = vpack.c.b16 %v2282, %v2281
      %2299 = vmatpush.bf16.msra.mxu0 %v2290
      %2300 = vmatpush.bf16.msra.mxu0 %v2289
      %2301 = vmatpush.bf16.msra.mxu0 %v2288
      %2302 = vmatpush.bf16.msra.mxu0 %v2287
      %2303 = vmatpush.bf16.msra.mxu0 %v2286
      %2304 = vmatpush.bf16.msra.mxu0 %v2285
      %2305 = vmatpush.bf16.msra.mxu0 %v2284
      %2306 = vmatpush.bf16.msra.mxu0 %v2283
      %2307 = vmatmul.bf16.gmra.mxu0 %v2233
      %v2308 = vpop.f32.mrf.mxu0
      %v2309 = vadd.f32 0.0, %v2308
      %v2310 = vpop.f32.mrf.mxu0
      %2311 = vdwg.mxu0
      %v2312 = vadd.f32 %v2214, %v2309
      %s2313 = scalar_lea.vmem %s6, 28
      %v2314 = vld [vmem:[%s2313] sm:$0xf]
      %v2316 = vsel %vm1631, %v2314, 0
      %2318 = vmatpush.bf16.msra.mxu0 0
      %2319 = vmatpush.bf16.msra.mxu0 0
      %2320 = vmatpush.bf16.msra.mxu0 0
      %2321 = vmatpush.bf16.msra.mxu0 0
      %2322 = vmatpush.bf16.msra.mxu0 0
      %2323 = vmatpush.bf16.msra.mxu0 0
      %2324 = vmatpush.bf16.msra.mxu0 0
      %2325 = vmatpush.bf16.msra.mxu0 %v1629
      %2326 = vmatmul.bf16.gmra.mxu0 %v2316
      %v2327 = vpop.f32.mrf.mxu0
      %v2328 = vadd.f32 0.0, %v2327
      %v2329 = vpop.f32.mrf.mxu0
      %2330 = vdwg.mxu0
      %v2331 = vpack.c.bf16 %v2328, %v2328
      %s2332 = scalar_lea.vmem %s7, 448
      %v2333 = vld [vmem:[%s2332] sm:$0xf]
      %v2334 = vld [vmem:[%s2332 + $0x4] sm:$0xf]
      %v2335 = vld [vmem:[%s2332 + $0x8] sm:$0xf]
      %v2336 = vld [vmem:[%s2332 + $0xc] sm:$0xf]
      %v2337 = vld [vmem:[%s2332 + $0x10] sm:$0xf]
      %v2338 = vld [vmem:[%s2332 + $0x14] sm:$0xf]
      %v2339 = vld [vmem:[%s2332 + $0x18] sm:$0xf]
      %v2340 = vld [vmem:[%s2332 + $0x1c] sm:$0xf]
      %v2341 = vld [vmem:[%s2332 + $0x20] sm:$0xf]
      %v2342 = vld [vmem:[%s2332 + $0x24] sm:$0xf]
      %v2343 = vld [vmem:[%s2332 + $0x28] sm:$0xf]
      %v2344 = vld [vmem:[%s2332 + $0x2c] sm:$0xf]
      %v2345 = vld [vmem:[%s2332 + $0x30] sm:$0xf]
      %v2346 = vld [vmem:[%s2332 + $0x34] sm:$0xf]
      %v2347 = vld [vmem:[%s2332 + $0x38] sm:$0xf]
      %v2348 = vld [vmem:[%s2332 + $0x3c] sm:$0xf]
      %v2365 = vunpack.c.l.b16 %v2333
      %v2366 = vunpack.c.l.b16 %v2334
      %v2367 = vunpack.c.l.b16 %v2335
      %v2368 = vunpack.c.l.b16 %v2336
      %v2369 = vunpack.c.l.b16 %v2337
      %v2370 = vunpack.c.l.b16 %v2338
      %v2371 = vunpack.c.l.b16 %v2339
      %v2372 = vunpack.c.l.b16 %v2340
      %v2373 = vunpack.c.l.b16 %v2341
      %v2374 = vunpack.c.l.b16 %v2342
      %v2375 = vunpack.c.l.b16 %v2343
      %v2376 = vunpack.c.l.b16 %v2344
      %v2377 = vunpack.c.l.b16 %v2345
      %v2378 = vunpack.c.l.b16 %v2346
      %v2379 = vunpack.c.l.b16 %v2347
      %v2380 = vunpack.c.l.b16 %v2348
      %v2381 = vpack.c.b16 %v2366, %v2365
      %v2382 = vpack.c.b16 %v2368, %v2367
      %v2383 = vpack.c.b16 %v2370, %v2369
      %v2384 = vpack.c.b16 %v2372, %v2371
      %v2385 = vpack.c.b16 %v2374, %v2373
      %v2386 = vpack.c.b16 %v2376, %v2375
      %v2387 = vpack.c.b16 %v2378, %v2377
      %v2388 = vpack.c.b16 %v2380, %v2379
      %2397 = vmatpush.bf16.msra.mxu0 %v2388
      %2398 = vmatpush.bf16.msra.mxu0 %v2387
      %2399 = vmatpush.bf16.msra.mxu0 %v2386
      %2400 = vmatpush.bf16.msra.mxu0 %v2385
      %2401 = vmatpush.bf16.msra.mxu0 %v2384
      %2402 = vmatpush.bf16.msra.mxu0 %v2383
      %2403 = vmatpush.bf16.msra.mxu0 %v2382
      %2404 = vmatpush.bf16.msra.mxu0 %v2381
      %2405 = vmatmul.bf16.gmra.mxu0 %v2331
      %v2406 = vpop.f32.mrf.mxu0
      %v2407 = vadd.f32 0.0, %v2406
      %v2408 = vpop.f32.mrf.mxu0
      %2409 = vdwg.mxu0
      %v2410 = vadd.f32 %v2312, %v2407
      %s2411 = scalar_lea.vmem %s6, 32
      %v2412 = vld [vmem:[%s2411] sm:$0xf]
      %v2414 = vsel %vm1631, %v2412, 0
      %2416 = vmatpush.bf16.msra.mxu0 0
      %2417 = vmatpush.bf16.msra.mxu0 0
      %2418 = vmatpush.bf16.msra.mxu0 0
      %2419 = vmatpush.bf16.msra.mxu0 0
      %2420 = vmatpush.bf16.msra.mxu0 0
      %2421 = vmatpush.bf16.msra.mxu0 0
      %2422 = vmatpush.bf16.msra.mxu0 0
      %2423 = vmatpush.bf16.msra.mxu0 %v1629
      %2424 = vmatmul.bf16.gmra.mxu0 %v2414
      %v2425 = vpop.f32.mrf.mxu0
      %v2426 = vadd.f32 0.0, %v2425
      %v2427 = vpop.f32.mrf.mxu0
      %2428 = vdwg.mxu0
      %v2429 = vpack.c.bf16 %v2426, %v2426
      %s2430 = scalar_lea.vmem %s7, 512
      %v2431 = vld [vmem:[%s2430] sm:$0xf]
      %v2432 = vld [vmem:[%s2430 + $0x4] sm:$0xf]
      %v2433 = vld [vmem:[%s2430 + $0x8] sm:$0xf]
      %v2434 = vld [vmem:[%s2430 + $0xc] sm:$0xf]
      %v2435 = vld [vmem:[%s2430 + $0x10] sm:$0xf]
      %v2436 = vld [vmem:[%s2430 + $0x14] sm:$0xf]
      %v2437 = vld [vmem:[%s2430 + $0x18] sm:$0xf]
      %v2438 = vld [vmem:[%s2430 + $0x1c] sm:$0xf]
      %v2439 = vld [vmem:[%s2430 + $0x20] sm:$0xf]
      %v2440 = vld [vmem:[%s2430 + $0x24] sm:$0xf]
      %v2441 = vld [vmem:[%s2430 + $0x28] sm:$0xf]
      %v2442 = vld [vmem:[%s2430 + $0x2c] sm:$0xf]
      %v2443 = vld [vmem:[%s2430 + $0x30] sm:$0xf]
      %v2444 = vld [vmem:[%s2430 + $0x34] sm:$0xf]
      %v2445 = vld [vmem:[%s2430 + $0x38] sm:$0xf]
      %v2446 = vld [vmem:[%s2430 + $0x3c] sm:$0xf]
      %v2463 = vunpack.c.l.b16 %v2431
      %v2464 = vunpack.c.l.b16 %v2432
      %v2465 = vunpack.c.l.b16 %v2433
      %v2466 = vunpack.c.l.b16 %v2434
      %v2467 = vunpack.c.l.b16 %v2435
      %v2468 = vunpack.c.l.b16 %v2436
      %v2469 = vunpack.c.l.b16 %v2437
      %v2470 = vunpack.c.l.b16 %v2438
      %v2471 = vunpack.c.l.b16 %v2439
      %v2472 = vunpack.c.l.b16 %v2440
      %v2473 = vunpack.c.l.b16 %v2441
      %v2474 = vunpack.c.l.b16 %v2442
      %v2475 = vunpack.c.l.b16 %v2443
      %v2476 = vunpack.c.l.b16 %v2444
      %v2477 = vunpack.c.l.b16 %v2445
      %v2478 = vunpack.c.l.b16 %v2446
      %v2479 = vpack.c.b16 %v2464, %v2463
      %v2480 = vpack.c.b16 %v2466, %v2465
      %v2481 = vpack.c.b16 %v2468, %v2467
      %v2482 = vpack.c.b16 %v2470, %v2469
      %v2483 = vpack.c.b16 %v2472, %v2471
      %v2484 = vpack.c.b16 %v2474, %v2473
      %v2485 = vpack.c.b16 %v2476, %v2475
      %v2486 = vpack.c.b16 %v2478, %v2477
      %2495 = vmatpush.bf16.msra.mxu0 %v2486
      %2496 = vmatpush.bf16.msra.mxu0 %v2485
      %2497 = vmatpush.bf16.msra.mxu0 %v2484
      %2498 = vmatpush.bf16.msra.mxu0 %v2483
      %2499 = vmatpush.bf16.msra.mxu0 %v2482
      %2500 = vmatpush.bf16.msra.mxu0 %v2481
      %2501 = vmatpush.bf16.msra.mxu0 %v2480
      %2502 = vmatpush.bf16.msra.mxu0 %v2479
      %2503 = vmatmul.bf16.gmra.mxu0 %v2429
      %v2504 = vpop.f32.mrf.mxu0
      %v2505 = vadd.f32 0.0, %v2504
      %v2506 = vpop.f32.mrf.mxu0
      %2507 = vdwg.mxu0
      %v2508 = vadd.f32 %v2410, %v2505
      %v2509 = vld [vmem:[%s8] sm:$0x1]
      %v2511 = vperm.slane %v2509, 0
      %v2513 = vadd.f32 %v2508, %v2511
      %v2514 = vmax.f32 %v2513, 0.0
      %v2515 = vpack.c.bf16 %v2514, %v2514
      %v2516 = vld [vmem:[%s9] sm:$0xf]
      %vm2517 = vcmask 64512
      %v2519 = vsel %vm2517, %v2516, 0
      %vm2521 = vcmask 1043456
      %v2523 = vsel %vm2521, %v2515, 0
      %2525 = vmatpush.bf16.msra.mxu0 0
      %2526 = vmatpush.bf16.msra.mxu0 0
      %2527 = vmatpush.bf16.msra.mxu0 0
      %2528 = vmatpush.bf16.msra.mxu0 0
      %2529 = vmatpush.bf16.msra.mxu0 0
      %2530 = vmatpush.bf16.msra.mxu0 0
      %2531 = vmatpush.bf16.msra.mxu0 0
      %2532 = vmatpush.bf16.msra.mxu0 %v2523
      %2533 = vmatmul.bf16.gmra.mxu0 %v2519
      %v2534 = vpop.f32.mrf.mxu0
      %v2535 = vadd.f32 0.0, %v2534
      %v2536 = vpop.f32.mrf.mxu0
      %2537 = vdwg.mxu0
      %v2538 = vpack.c.bf16 %v2535, %v2535
      %v2539 = vld [vmem:[%s10] sm:$0xf]
      %v2540 = vld [vmem:[%s10 + $0x4] sm:$0xf]
      %v2541 = vld [vmem:[%s10 + $0x8] sm:$0xf]
      %v2542 = vld [vmem:[%s10 + $0xc] sm:$0xf]
      %v2543 = vld [vmem:[%s10 + $0x10] sm:$0xf]
      %v2544 = vld [vmem:[%s10 + $0x14] sm:$0xf]
      %v2545 = vld [vmem:[%s10 + $0x18] sm:$0xf]
      %v2546 = vld [vmem:[%s10 + $0x1c] sm:$0xf]
      %v2547 = vld [vmem:[%s10 + $0x20] sm:$0xf]
      %v2548 = vld [vmem:[%s10 + $0x24] sm:$0xf]
      %v2549 = vld [vmem:[%s10 + $0x28] sm:$0xf]
      %v2550 = vld [vmem:[%s10 + $0x2c] sm:$0xf]
      %v2551 = vld [vmem:[%s10 + $0x30] sm:$0xf]
      %v2552 = vld [vmem:[%s10 + $0x34] sm:$0xf]
      %v2553 = vld [vmem:[%s10 + $0x38] sm:$0xf]
      %v2554 = vld [vmem:[%s10 + $0x3c] sm:$0xf]
      %s2555 = scalar_lea.vmem %s9, 4
      %v2556 = vld [vmem:[%s2555] sm:$0xf]
      %v2558 = vsel %vm2517, %v2556, 0
      %2560 = vmatpush.bf16.msra.mxu0 0
      %2561 = vmatpush.bf16.msra.mxu0 0
      %2562 = vmatpush.bf16.msra.mxu0 0
      %2563 = vmatpush.bf16.msra.mxu0 0
      %2564 = vmatpush.bf16.msra.mxu0 0
      %2565 = vmatpush.bf16.msra.mxu0 0
      %2566 = vmatpush.bf16.msra.mxu0 0
      %2567 = vmatpush.bf16.msra.mxu0 %v2523
      %2568 = vmatmul.bf16.gmra.mxu0 %v2558
      %v2569 = vpop.f32.mrf.mxu0
      %v2570 = vadd.f32 0.0, %v2569
      %v2571 = vpop.f32.mrf.mxu0
      %2572 = vdwg.mxu0
      %v2573 = vpack.c.bf16 %v2570, %v2570
      %s2574 = scalar_lea.vmem %s10, 64
      %v2575 = vld [vmem:[%s2574] sm:$0xf]
      %v2576 = vld [vmem:[%s2574 + $0x4] sm:$0xf]
      %v2577 = vld [vmem:[%s2574 + $0x8] sm:$0xf]
      %v2578 = vld [vmem:[%s2574 + $0xc] sm:$0xf]
      %v2579 = vld [vmem:[%s2574 + $0x10] sm:$0xf]
      %v2580 = vld [vmem:[%s2574 + $0x14] sm:$0xf]
      %v2581 = vld [vmem:[%s2574 + $0x18] sm:$0xf]
      %v2582 = vld [vmem:[%s2574 + $0x1c] sm:$0xf]
      %v2583 = vld [vmem:[%s2574 + $0x20] sm:$0xf]
      %v2584 = vld [vmem:[%s2574 + $0x24] sm:$0xf]
      %v2585 = vld [vmem:[%s2574 + $0x28] sm:$0xf]
      %v2586 = vld [vmem:[%s2574 + $0x2c] sm:$0xf]
      %v2587 = vld [vmem:[%s2574 + $0x30] sm:$0xf]
      %v2588 = vld [vmem:[%s2574 + $0x34] sm:$0xf]
      %v2589 = vld [vmem:[%s2574 + $0x38] sm:$0xf]
      %v2590 = vld [vmem:[%s2574 + $0x3c] sm:$0xf]
      %v2607 = vunpack.c.l.b16 %v2575
      %v2608 = vunpack.c.l.b16 %v2576
      %v2609 = vunpack.c.l.b16 %v2577
      %v2610 = vunpack.c.l.b16 %v2578
      %v2611 = vunpack.c.l.b16 %v2579
      %v2612 = vunpack.c.l.b16 %v2580
      %v2613 = vunpack.c.l.b16 %v2581
      %v2614 = vunpack.c.l.b16 %v2582
      %v2615 = vunpack.c.l.b16 %v2583
      %v2616 = vunpack.c.l.b16 %v2584
      %v2617 = vunpack.c.l.b16 %v2585
      %v2618 = vunpack.c.l.b16 %v2586
      %v2619 = vunpack.c.l.b16 %v2587
      %v2620 = vunpack.c.l.b16 %v2588
      %v2621 = vunpack.c.l.b16 %v2589
      %v2622 = vunpack.c.l.b16 %v2590
      %v2623 = vpack.c.b16 %v2608, %v2607
      %v2624 = vpack.c.b16 %v2610, %v2609
      %v2625 = vpack.c.b16 %v2612, %v2611
      %v2626 = vpack.c.b16 %v2614, %v2613
      %v2627 = vpack.c.b16 %v2616, %v2615
      %v2628 = vpack.c.b16 %v2618, %v2617
      %v2629 = vpack.c.b16 %v2620, %v2619
      %v2630 = vpack.c.b16 %v2622, %v2621
      %2639 = vmatpush.bf16.msra.mxu0 %v2630
      %2640 = vmatpush.bf16.msra.mxu0 %v2629
      %2641 = vmatpush.bf16.msra.mxu0 %v2628
      %2642 = vmatpush.bf16.msra.mxu0 %v2627
      %2643 = vmatpush.bf16.msra.mxu0 %v2626
      %2644 = vmatpush.bf16.msra.mxu0 %v2625
      %2645 = vmatpush.bf16.msra.mxu0 %v2624
      %2646 = vmatpush.bf16.msra.mxu0 %v2623
      %2647 = vmatmul.bf16.gmra.mxu0 %v2573
      %v2648 = vpop.f32.mrf.mxu0
      %v2649 = vadd.f32 0.0, %v2648
      %v2650 = vpop.f32.mrf.mxu0
      %2651 = vdwg.mxu0
      %v2668 = vunpack.c.l.b16 %v2539
      %v2669 = vunpack.c.l.b16 %v2540
      %v2670 = vunpack.c.l.b16 %v2541
      %v2671 = vunpack.c.l.b16 %v2542
      %v2672 = vunpack.c.l.b16 %v2543
      %v2673 = vunpack.c.l.b16 %v2544
      %v2674 = vunpack.c.l.b16 %v2545
      %v2675 = vunpack.c.l.b16 %v2546
      %v2676 = vunpack.c.l.b16 %v2547
      %v2677 = vunpack.c.l.b16 %v2548
      %v2678 = vunpack.c.l.b16 %v2549
      %v2679 = vunpack.c.l.b16 %v2550
      %v2680 = vunpack.c.l.b16 %v2551
      %v2681 = vunpack.c.l.b16 %v2552
      %v2682 = vunpack.c.l.b16 %v2553
      %v2683 = vunpack.c.l.b16 %v2554
      %v2684 = vpack.c.b16 %v2669, %v2668
      %v2685 = vpack.c.b16 %v2671, %v2670
      %v2686 = vpack.c.b16 %v2673, %v2672
      %v2687 = vpack.c.b16 %v2675, %v2674
      %v2688 = vpack.c.b16 %v2677, %v2676
      %v2689 = vpack.c.b16 %v2679, %v2678
      %v2690 = vpack.c.b16 %v2681, %v2680
      %v2691 = vpack.c.b16 %v2683, %v2682
      %2700 = vmatpush.bf16.msra.mxu0 %v2691
      %2701 = vmatpush.bf16.msra.mxu0 %v2690
      %2702 = vmatpush.bf16.msra.mxu0 %v2689
      %2703 = vmatpush.bf16.msra.mxu0 %v2688
      %2704 = vmatpush.bf16.msra.mxu0 %v2687
      %2705 = vmatpush.bf16.msra.mxu0 %v2686
      %2706 = vmatpush.bf16.msra.mxu0 %v2685
      %2707 = vmatpush.bf16.msra.mxu0 %v2684
      %2708 = vmatmul.bf16.gmra.mxu0 %v2538
      %v2709 = vpop.f32.mrf.mxu0
      %v2710 = vadd.f32 %v2649, %v2709
      %v2711 = vpop.f32.mrf.mxu0
      %2712 = vdwg.mxu0
      %s2713 = scalar_lea.vmem %s9, 8
      %v2714 = vld [vmem:[%s2713] sm:$0xf]
      %v2716 = vsel %vm2517, %v2714, 0
      %2718 = vmatpush.bf16.msra.mxu0 0
      %2719 = vmatpush.bf16.msra.mxu0 0
      %2720 = vmatpush.bf16.msra.mxu0 0
      %2721 = vmatpush.bf16.msra.mxu0 0
      %2722 = vmatpush.bf16.msra.mxu0 0
      %2723 = vmatpush.bf16.msra.mxu0 0
      %2724 = vmatpush.bf16.msra.mxu0 0
      %2725 = vmatpush.bf16.msra.mxu0 %v2523
      %2726 = vmatmul.bf16.gmra.mxu0 %v2716
      %v2727 = vpop.f32.mrf.mxu0
      %v2728 = vadd.f32 0.0, %v2727
      %v2729 = vpop.f32.mrf.mxu0
      %2730 = vdwg.mxu0
      %v2731 = vpack.c.bf16 %v2728, %v2728
      %s2732 = scalar_lea.vmem %s10, 128
      %v2733 = vld [vmem:[%s2732] sm:$0xf]
      %v2734 = vld [vmem:[%s2732 + $0x4] sm:$0xf]
      %v2735 = vld [vmem:[%s2732 + $0x8] sm:$0xf]
      %v2736 = vld [vmem:[%s2732 + $0xc] sm:$0xf]
      %v2737 = vld [vmem:[%s2732 + $0x10] sm:$0xf]
      %v2738 = vld [vmem:[%s2732 + $0x14] sm:$0xf]
      %v2739 = vld [vmem:[%s2732 + $0x18] sm:$0xf]
      %v2740 = vld [vmem:[%s2732 + $0x1c] sm:$0xf]
      %v2741 = vld [vmem:[%s2732 + $0x20] sm:$0xf]
      %v2742 = vld [vmem:[%s2732 + $0x24] sm:$0xf]
      %v2743 = vld [vmem:[%s2732 + $0x28] sm:$0xf]
      %v2744 = vld [vmem:[%s2732 + $0x2c] sm:$0xf]
      %v2745 = vld [vmem:[%s2732 + $0x30] sm:$0xf]
      %v2746 = vld [vmem:[%s2732 + $0x34] sm:$0xf]
      %v2747 = vld [vmem:[%s2732 + $0x38] sm:$0xf]
      %v2748 = vld [vmem:[%s2732 + $0x3c] sm:$0xf]
      %v2765 = vunpack.c.l.b16 %v2733
      %v2766 = vunpack.c.l.b16 %v2734
      %v2767 = vunpack.c.l.b16 %v2735
      %v2768 = vunpack.c.l.b16 %v2736
      %v2769 = vunpack.c.l.b16 %v2737
      %v2770 = vunpack.c.l.b16 %v2738
      %v2771 = vunpack.c.l.b16 %v2739
      %v2772 = vunpack.c.l.b16 %v2740
      %v2773 = vunpack.c.l.b16 %v2741
      %v2774 = vunpack.c.l.b16 %v2742
      %v2775 = vunpack.c.l.b16 %v2743
      %v2776 = vunpack.c.l.b16 %v2744
      %v2777 = vunpack.c.l.b16 %v2745
      %v2778 = vunpack.c.l.b16 %v2746
      %v2779 = vunpack.c.l.b16 %v2747
      %v2780 = vunpack.c.l.b16 %v2748
      %v2781 = vpack.c.b16 %v2766, %v2765
      %v2782 = vpack.c.b16 %v2768, %v2767
      %v2783 = vpack.c.b16 %v2770, %v2769
      %v2784 = vpack.c.b16 %v2772, %v2771
      %v2785 = vpack.c.b16 %v2774, %v2773
      %v2786 = vpack.c.b16 %v2776, %v2775
      %v2787 = vpack.c.b16 %v2778, %v2777
      %v2788 = vpack.c.b16 %v2780, %v2779
      %2797 = vmatpush.bf16.msra.mxu0 %v2788
      %2798 = vmatpush.bf16.msra.mxu0 %v2787
      %2799 = vmatpush.bf16.msra.mxu0 %v2786
      %2800 = vmatpush.bf16.msra.mxu0 %v2785
      %2801 = vmatpush.bf16.msra.mxu0 %v2784
      %2802 = vmatpush.bf16.msra.mxu0 %v2783
      %2803 = vmatpush.bf16.msra.mxu0 %v2782
      %2804 = vmatpush.bf16.msra.mxu0 %v2781
      %2805 = vmatmul.bf16.gmra.mxu0 %v2731
      %v2806 = vpop.f32.mrf.mxu0
      %v2807 = vadd.f32 0.0, %v2806
      %v2808 = vpop.f32.mrf.mxu0
      %2809 = vdwg.mxu0
      %v2810 = vadd.f32 %v2710, %v2807
      %s2811 = scalar_lea.vmem %s9, 12
      %v2812 = vld [vmem:[%s2811] sm:$0xf]
      %v2814 = vsel %vm2517, %v2812, 0
      %2816 = vmatpush.bf16.msra.mxu0 0
      %2817 = vmatpush.bf16.msra.mxu0 0
      %2818 = vmatpush.bf16.msra.mxu0 0
      %2819 = vmatpush.bf16.msra.mxu0 0
      %2820 = vmatpush.bf16.msra.mxu0 0
      %2821 = vmatpush.bf16.msra.mxu0 0
      %2822 = vmatpush.bf16.msra.mxu0 0
      %2823 = vmatpush.bf16.msra.mxu0 %v2523
      %2824 = vmatmul.bf16.gmra.mxu0 %v2814
      %v2825 = vpop.f32.mrf.mxu0
      %v2826 = vadd.f32 0.0, %v2825
      %v2827 = vpop.f32.mrf.mxu0
      %2828 = vdwg.mxu0
      %v2829 = vpack.c.bf16 %v2826, %v2826
      %s2830 = scalar_lea.vmem %s10, 192
      %v2831 = vld [vmem:[%s2830] sm:$0xf]
      %v2832 = vld [vmem:[%s2830 + $0x4] sm:$0xf]
      %v2833 = vld [vmem:[%s2830 + $0x8] sm:$0xf]
      %v2834 = vld [vmem:[%s2830 + $0xc] sm:$0xf]
      %v2835 = vld [vmem:[%s2830 + $0x10] sm:$0xf]
      %v2836 = vld [vmem:[%s2830 + $0x14] sm:$0xf]
      %v2837 = vld [vmem:[%s2830 + $0x18] sm:$0xf]
      %v2838 = vld [vmem:[%s2830 + $0x1c] sm:$0xf]
      %v2839 = vld [vmem:[%s2830 + $0x20] sm:$0xf]
      %v2840 = vld [vmem:[%s2830 + $0x24] sm:$0xf]
      %v2841 = vld [vmem:[%s2830 + $0x28] sm:$0xf]
      %v2842 = vld [vmem:[%s2830 + $0x2c] sm:$0xf]
      %v2843 = vld [vmem:[%s2830 + $0x30] sm:$0xf]
      %v2844 = vld [vmem:[%s2830 + $0x34] sm:$0xf]
      %v2845 = vld [vmem:[%s2830 + $0x38] sm:$0xf]
      %v2846 = vld [vmem:[%s2830 + $0x3c] sm:$0xf]
      %v2863 = vunpack.c.l.b16 %v2831
      %v2864 = vunpack.c.l.b16 %v2832
      %v2865 = vunpack.c.l.b16 %v2833
      %v2866 = vunpack.c.l.b16 %v2834
      %v2867 = vunpack.c.l.b16 %v2835
      %v2868 = vunpack.c.l.b16 %v2836
      %v2869 = vunpack.c.l.b16 %v2837
      %v2870 = vunpack.c.l.b16 %v2838
      %v2871 = vunpack.c.l.b16 %v2839
      %v2872 = vunpack.c.l.b16 %v2840
      %v2873 = vunpack.c.l.b16 %v2841
      %v2874 = vunpack.c.l.b16 %v2842
      %v2875 = vunpack.c.l.b16 %v2843
      %v2876 = vunpack.c.l.b16 %v2844
      %v2877 = vunpack.c.l.b16 %v2845
      %v2878 = vunpack.c.l.b16 %v2846
      %v2879 = vpack.c.b16 %v2864, %v2863
      %v2880 = vpack.c.b16 %v2866, %v2865
      %v2881 = vpack.c.b16 %v2868, %v2867
      %v2882 = vpack.c.b16 %v2870, %v2869
      %v2883 = vpack.c.b16 %v2872, %v2871
      %v2884 = vpack.c.b16 %v2874, %v2873
      %v2885 = vpack.c.b16 %v2876, %v2875
      %v2886 = vpack.c.b16 %v2878, %v2877
      %2895 = vmatpush.bf16.msra.mxu0 %v2886
      %2896 = vmatpush.bf16.msra.mxu0 %v2885
      %2897 = vmatpush.bf16.msra.mxu0 %v2884
      %2898 = vmatpush.bf16.msra.mxu0 %v2883
      %2899 = vmatpush.bf16.msra.mxu0 %v2882
      %2900 = vmatpush.bf16.msra.mxu0 %v2881
      %2901 = vmatpush.bf16.msra.mxu0 %v2880
      %2902 = vmatpush.bf16.msra.mxu0 %v2879
      %2903 = vmatmul.bf16.gmra.mxu0 %v2829
      %v2904 = vpop.f32.mrf.mxu0
      %v2905 = vadd.f32 0.0, %v2904
      %v2906 = vpop.f32.mrf.mxu0
      %2907 = vdwg.mxu0
      %v2908 = vadd.f32 %v2810, %v2905
      %s2909 = scalar_lea.vmem %s9, 16
      %v2910 = vld [vmem:[%s2909] sm:$0xf]
      %v2912 = vsel %vm2517, %v2910, 0
      %2914 = vmatpush.bf16.msra.mxu0 0
      %2915 = vmatpush.bf16.msra.mxu0 0
      %2916 = vmatpush.bf16.msra.mxu0 0
      %2917 = vmatpush.bf16.msra.mxu0 0
      %2918 = vmatpush.bf16.msra.mxu0 0
      %2919 = vmatpush.bf16.msra.mxu0 0
      %2920 = vmatpush.bf16.msra.mxu0 0
      %2921 = vmatpush.bf16.msra.mxu0 %v2523
      %2922 = vmatmul.bf16.gmra.mxu0 %v2912
      %v2923 = vpop.f32.mrf.mxu0
      %v2924 = vadd.f32 0.0, %v2923
      %v2925 = vpop.f32.mrf.mxu0
      %2926 = vdwg.mxu0
      %v2927 = vpack.c.bf16 %v2924, %v2924
      %s2928 = scalar_lea.vmem %s10, 256
      %v2929 = vld [vmem:[%s2928] sm:$0xf]
      %v2930 = vld [vmem:[%s2928 + $0x4] sm:$0xf]
      %v2931 = vld [vmem:[%s2928 + $0x8] sm:$0xf]
      %v2932 = vld [vmem:[%s2928 + $0xc] sm:$0xf]
      %v2933 = vld [vmem:[%s2928 + $0x10] sm:$0xf]
      %v2934 = vld [vmem:[%s2928 + $0x14] sm:$0xf]
      %v2935 = vld [vmem:[%s2928 + $0x18] sm:$0xf]
      %v2936 = vld [vmem:[%s2928 + $0x1c] sm:$0xf]
      %v2937 = vld [vmem:[%s2928 + $0x20] sm:$0xf]
      %v2938 = vld [vmem:[%s2928 + $0x24] sm:$0xf]
      %v2939 = vld [vmem:[%s2928 + $0x28] sm:$0xf]
      %v2940 = vld [vmem:[%s2928 + $0x2c] sm:$0xf]
      %v2941 = vld [vmem:[%s2928 + $0x30] sm:$0xf]
      %v2942 = vld [vmem:[%s2928 + $0x34] sm:$0xf]
      %v2943 = vld [vmem:[%s2928 + $0x38] sm:$0xf]
      %v2944 = vld [vmem:[%s2928 + $0x3c] sm:$0xf]
      %v2961 = vunpack.c.l.b16 %v2929
      %v2962 = vunpack.c.l.b16 %v2930
      %v2963 = vunpack.c.l.b16 %v2931
      %v2964 = vunpack.c.l.b16 %v2932
      %v2965 = vunpack.c.l.b16 %v2933
      %v2966 = vunpack.c.l.b16 %v2934
      %v2967 = vunpack.c.l.b16 %v2935
      %v2968 = vunpack.c.l.b16 %v2936
      %v2969 = vunpack.c.l.b16 %v2937
      %v2970 = vunpack.c.l.b16 %v2938
      %v2971 = vunpack.c.l.b16 %v2939
      %v2972 = vunpack.c.l.b16 %v2940
      %v2973 = vunpack.c.l.b16 %v2941
      %v2974 = vunpack.c.l.b16 %v2942
      %v2975 = vunpack.c.l.b16 %v2943
      %v2976 = vunpack.c.l.b16 %v2944
      %v2977 = vpack.c.b16 %v2962, %v2961
      %v2978 = vpack.c.b16 %v2964, %v2963
      %v2979 = vpack.c.b16 %v2966, %v2965
      %v2980 = vpack.c.b16 %v2968, %v2967
      %v2981 = vpack.c.b16 %v2970, %v2969
      %v2982 = vpack.c.b16 %v2972, %v2971
      %v2983 = vpack.c.b16 %v2974, %v2973
      %v2984 = vpack.c.b16 %v2976, %v2975
      %2993 = vmatpush.bf16.msra.mxu0 %v2984
      %2994 = vmatpush.bf16.msra.mxu0 %v2983
      %2995 = vmatpush.bf16.msra.mxu0 %v2982
      %2996 = vmatpush.bf16.msra.mxu0 %v2981
      %2997 = vmatpush.bf16.msra.mxu0 %v2980
      %2998 = vmatpush.bf16.msra.mxu0 %v2979
      %2999 = vmatpush.bf16.msra.mxu0 %v2978
      %3000 = vmatpush.bf16.msra.mxu0 %v2977
      %3001 = vmatmul.bf16.gmra.mxu0 %v2927
      %v3002 = vpop.f32.mrf.mxu0
      %v3003 = vadd.f32 0.0, %v3002
      %v3004 = vpop.f32.mrf.mxu0
      %3005 = vdwg.mxu0
      %v3006 = vadd.f32 %v2908, %v3003
      %s3007 = scalar_lea.vmem %s9, 20
      %v3008 = vld [vmem:[%s3007] sm:$0xf]
      %v3010 = vsel %vm2517, %v3008, 0
      %3012 = vmatpush.bf16.msra.mxu0 0
      %3013 = vmatpush.bf16.msra.mxu0 0
      %3014 = vmatpush.bf16.msra.mxu0 0
      %3015 = vmatpush.bf16.msra.mxu0 0
      %3016 = vmatpush.bf16.msra.mxu0 0
      %3017 = vmatpush.bf16.msra.mxu0 0
      %3018 = vmatpush.bf16.msra.mxu0 0
      %3019 = vmatpush.bf16.msra.mxu0 %v2523
      %3020 = vmatmul.bf16.gmra.mxu0 %v3010
      %v3021 = vpop.f32.mrf.mxu0
      %v3022 = vadd.f32 0.0, %v3021
      %v3023 = vpop.f32.mrf.mxu0
      %3024 = vdwg.mxu0
      %v3025 = vpack.c.bf16 %v3022, %v3022
      %s3026 = scalar_lea.vmem %s10, 320
      %v3027 = vld [vmem:[%s3026] sm:$0xf]
      %v3028 = vld [vmem:[%s3026 + $0x4] sm:$0xf]
      %v3029 = vld [vmem:[%s3026 + $0x8] sm:$0xf]
      %v3030 = vld [vmem:[%s3026 + $0xc] sm:$0xf]
      %v3031 = vld [vmem:[%s3026 + $0x10] sm:$0xf]
      %v3032 = vld [vmem:[%s3026 + $0x14] sm:$0xf]
      %v3033 = vld [vmem:[%s3026 + $0x18] sm:$0xf]
      %v3034 = vld [vmem:[%s3026 + $0x1c] sm:$0xf]
      %v3035 = vld [vmem:[%s3026 + $0x20] sm:$0xf]
      %v3036 = vld [vmem:[%s3026 + $0x24] sm:$0xf]
      %v3037 = vld [vmem:[%s3026 + $0x28] sm:$0xf]
      %v3038 = vld [vmem:[%s3026 + $0x2c] sm:$0xf]
      %v3039 = vld [vmem:[%s3026 + $0x30] sm:$0xf]
      %v3040 = vld [vmem:[%s3026 + $0x34] sm:$0xf]
      %v3041 = vld [vmem:[%s3026 + $0x38] sm:$0xf]
      %v3042 = vld [vmem:[%s3026 + $0x3c] sm:$0xf]
      %v3059 = vunpack.c.l.b16 %v3027
      %v3060 = vunpack.c.l.b16 %v3028
      %v3061 = vunpack.c.l.b16 %v3029
      %v3062 = vunpack.c.l.b16 %v3030
      %v3063 = vunpack.c.l.b16 %v3031
      %v3064 = vunpack.c.l.b16 %v3032
      %v3065 = vunpack.c.l.b16 %v3033
      %v3066 = vunpack.c.l.b16 %v3034
      %v3067 = vunpack.c.l.b16 %v3035
      %v3068 = vunpack.c.l.b16 %v3036
      %v3069 = vunpack.c.l.b16 %v3037
      %v3070 = vunpack.c.l.b16 %v3038
      %v3071 = vunpack.c.l.b16 %v3039
      %v3072 = vunpack.c.l.b16 %v3040
      %v3073 = vunpack.c.l.b16 %v3041
      %v3074 = vunpack.c.l.b16 %v3042
      %v3075 = vpack.c.b16 %v3060, %v3059
      %v3076 = vpack.c.b16 %v3062, %v3061
      %v3077 = vpack.c.b16 %v3064, %v3063
      %v3078 = vpack.c.b16 %v3066, %v3065
      %v3079 = vpack.c.b16 %v3068, %v3067
      %v3080 = vpack.c.b16 %v3070, %v3069
      %v3081 = vpack.c.b16 %v3072, %v3071
      %v3082 = vpack.c.b16 %v3074, %v3073
      %3091 = vmatpush.bf16.msra.mxu0 %v3082
      %3092 = vmatpush.bf16.msra.mxu0 %v3081
      %3093 = vmatpush.bf16.msra.mxu0 %v3080
      %3094 = vmatpush.bf16.msra.mxu0 %v3079
      %3095 = vmatpush.bf16.msra.mxu0 %v3078
      %3096 = vmatpush.bf16.msra.mxu0 %v3077
      %3097 = vmatpush.bf16.msra.mxu0 %v3076
      %3098 = vmatpush.bf16.msra.mxu0 %v3075
      %3099 = vmatmul.bf16.gmra.mxu0 %v3025
      %v3100 = vpop.f32.mrf.mxu0
      %v3101 = vadd.f32 0.0, %v3100
      %v3102 = vpop.f32.mrf.mxu0
      %3103 = vdwg.mxu0
      %v3104 = vadd.f32 %v3006, %v3101
      %s3105 = scalar_lea.vmem %s9, 24
      %v3106 = vld [vmem:[%s3105] sm:$0xf]
      %v3108 = vsel %vm2517, %v3106, 0
      %3110 = vmatpush.bf16.msra.mxu0 0
      %3111 = vmatpush.bf16.msra.mxu0 0
      %3112 = vmatpush.bf16.msra.mxu0 0
      %3113 = vmatpush.bf16.msra.mxu0 0
      %3114 = vmatpush.bf16.msra.mxu0 0
      %3115 = vmatpush.bf16.msra.mxu0 0
      %3116 = vmatpush.bf16.msra.mxu0 0
      %3117 = vmatpush.bf16.msra.mxu0 %v2523
      %3118 = vmatmul.bf16.gmra.mxu0 %v3108
      %v3119 = vpop.f32.mrf.mxu0
      %v3120 = vadd.f32 0.0, %v3119
      %v3121 = vpop.f32.mrf.mxu0
      %3122 = vdwg.mxu0
      %v3123 = vpack.c.bf16 %v3120, %v3120
      %s3124 = scalar_lea.vmem %s10, 384
      %v3125 = vld [vmem:[%s3124] sm:$0xf]
      %v3126 = vld [vmem:[%s3124 + $0x4] sm:$0xf]
      %v3127 = vld [vmem:[%s3124 + $0x8] sm:$0xf]
      %v3128 = vld [vmem:[%s3124 + $0xc] sm:$0xf]
      %v3129 = vld [vmem:[%s3124 + $0x10] sm:$0xf]
      %v3130 = vld [vmem:[%s3124 + $0x14] sm:$0xf]
      %v3131 = vld [vmem:[%s3124 + $0x18] sm:$0xf]
      %v3132 = vld [vmem:[%s3124 + $0x1c] sm:$0xf]
      %v3133 = vld [vmem:[%s3124 + $0x20] sm:$0xf]
      %v3134 = vld [vmem:[%s3124 + $0x24] sm:$0xf]
      %v3135 = vld [vmem:[%s3124 + $0x28] sm:$0xf]
      %v3136 = vld [vmem:[%s3124 + $0x2c] sm:$0xf]
      %v3137 = vld [vmem:[%s3124 + $0x30] sm:$0xf]
      %v3138 = vld [vmem:[%s3124 + $0x34] sm:$0xf]
      %v3139 = vld [vmem:[%s3124 + $0x38] sm:$0xf]
      %v3140 = vld [vmem:[%s3124 + $0x3c] sm:$0xf]
      %v3157 = vunpack.c.l.b16 %v3125
      %v3158 = vunpack.c.l.b16 %v3126
      %v3159 = vunpack.c.l.b16 %v3127
      %v3160 = vunpack.c.l.b16 %v3128
      %v3161 = vunpack.c.l.b16 %v3129
      %v3162 = vunpack.c.l.b16 %v3130
      %v3163 = vunpack.c.l.b16 %v3131
      %v3164 = vunpack.c.l.b16 %v3132
      %v3165 = vunpack.c.l.b16 %v3133
      %v3166 = vunpack.c.l.b16 %v3134
      %v3167 = vunpack.c.l.b16 %v3135
      %v3168 = vunpack.c.l.b16 %v3136
      %v3169 = vunpack.c.l.b16 %v3137
      %v3170 = vunpack.c.l.b16 %v3138
      %v3171 = vunpack.c.l.b16 %v3139
      %v3172 = vunpack.c.l.b16 %v3140
      %v3173 = vpack.c.b16 %v3158, %v3157
      %v3174 = vpack.c.b16 %v3160, %v3159
      %v3175 = vpack.c.b16 %v3162, %v3161
      %v3176 = vpack.c.b16 %v3164, %v3163
      %v3177 = vpack.c.b16 %v3166, %v3165
      %v3178 = vpack.c.b16 %v3168, %v3167
      %v3179 = vpack.c.b16 %v3170, %v3169
      %v3180 = vpack.c.b16 %v3172, %v3171
      %3189 = vmatpush.bf16.msra.mxu0 %v3180
      %3190 = vmatpush.bf16.msra.mxu0 %v3179
      %3191 = vmatpush.bf16.msra.mxu0 %v3178
      %3192 = vmatpush.bf16.msra.mxu0 %v3177
      %3193 = vmatpush.bf16.msra.mxu0 %v3176
      %3194 = vmatpush.bf16.msra.mxu0 %v3175
      %3195 = vmatpush.bf16.msra.mxu0 %v3174
      %3196 = vmatpush.bf16.msra.mxu0 %v3173
      %3197 = vmatmul.bf16.gmra.mxu0 %v3123
      %v3198 = vpop.f32.mrf.mxu0
      %v3199 = vadd.f32 0.0, %v3198
      %v3200 = vpop.f32.mrf.mxu0
      %3201 = vdwg.mxu0
      %v3202 = vadd.f32 %v3104, %v3199
      %s3203 = scalar_lea.vmem %s9, 28
      %v3204 = vld [vmem:[%s3203] sm:$0xf]
      %v3206 = vsel %vm2517, %v3204, 0
      %3208 = vmatpush.bf16.msra.mxu0 0
      %3209 = vmatpush.bf16.msra.mxu0 0
      %3210 = vmatpush.bf16.msra.mxu0 0
      %3211 = vmatpush.bf16.msra.mxu0 0
      %3212 = vmatpush.bf16.msra.mxu0 0
      %3213 = vmatpush.bf16.msra.mxu0 0
      %3214 = vmatpush.bf16.msra.mxu0 0
      %3215 = vmatpush.bf16.msra.mxu0 %v2523
      %3216 = vmatmul.bf16.gmra.mxu0 %v3206
      %v3217 = vpop.f32.mrf.mxu0
      %v3218 = vadd.f32 0.0, %v3217
      %v3219 = vpop.f32.mrf.mxu0
      %3220 = vdwg.mxu0
      %v3221 = vpack.c.bf16 %v3218, %v3218
      %s3222 = scalar_lea.vmem %s10, 448
      %v3223 = vld [vmem:[%s3222] sm:$0xf]
      %v3224 = vld [vmem:[%s3222 + $0x4] sm:$0xf]
      %v3225 = vld [vmem:[%s3222 + $0x8] sm:$0xf]
      %v3226 = vld [vmem:[%s3222 + $0xc] sm:$0xf]
      %v3227 = vld [vmem:[%s3222 + $0x10] sm:$0xf]
      %v3228 = vld [vmem:[%s3222 + $0x14] sm:$0xf]
      %v3229 = vld [vmem:[%s3222 + $0x18] sm:$0xf]
      %v3230 = vld [vmem:[%s3222 + $0x1c] sm:$0xf]
      %v3231 = vld [vmem:[%s3222 + $0x20] sm:$0xf]
      %v3232 = vld [vmem:[%s3222 + $0x24] sm:$0xf]
      %v3233 = vld [vmem:[%s3222 + $0x28] sm:$0xf]
      %v3234 = vld [vmem:[%s3222 + $0x2c] sm:$0xf]
      %v3235 = vld [vmem:[%s3222 + $0x30] sm:$0xf]
      %v3236 = vld [vmem:[%s3222 + $0x34] sm:$0xf]
      %v3237 = vld [vmem:[%s3222 + $0x38] sm:$0xf]
      %v3238 = vld [vmem:[%s3222 + $0x3c] sm:$0xf]
      %v3255 = vunpack.c.l.b16 %v3223
      %v3256 = vunpack.c.l.b16 %v3224
      %v3257 = vunpack.c.l.b16 %v3225
      %v3258 = vunpack.c.l.b16 %v3226
      %v3259 = vunpack.c.l.b16 %v3227
      %v3260 = vunpack.c.l.b16 %v3228
      %v3261 = vunpack.c.l.b16 %v3229
      %v3262 = vunpack.c.l.b16 %v3230
      %v3263 = vunpack.c.l.b16 %v3231
      %v3264 = vunpack.c.l.b16 %v3232
      %v3265 = vunpack.c.l.b16 %v3233
      %v3266 = vunpack.c.l.b16 %v3234
      %v3267 = vunpack.c.l.b16 %v3235
      %v3268 = vunpack.c.l.b16 %v3236
      %v3269 = vunpack.c.l.b16 %v3237
      %v3270 = vunpack.c.l.b16 %v3238
      %v3271 = vpack.c.b16 %v3256, %v3255
      %v3272 = vpack.c.b16 %v3258, %v3257
      %v3273 = vpack.c.b16 %v3260, %v3259
      %v3274 = vpack.c.b16 %v3262, %v3261
      %v3275 = vpack.c.b16 %v3264, %v3263
      %v3276 = vpack.c.b16 %v3266, %v3265
      %v3277 = vpack.c.b16 %v3268, %v3267
      %v3278 = vpack.c.b16 %v3270, %v3269
      %3287 = vmatpush.bf16.msra.mxu0 %v3278
      %3288 = vmatpush.bf16.msra.mxu0 %v3277
      %3289 = vmatpush.bf16.msra.mxu0 %v3276
      %3290 = vmatpush.bf16.msra.mxu0 %v3275
      %3291 = vmatpush.bf16.msra.mxu0 %v3274
      %3292 = vmatpush.bf16.msra.mxu0 %v3273
      %3293 = vmatpush.bf16.msra.mxu0 %v3272
      %3294 = vmatpush.bf16.msra.mxu0 %v3271
      %3295 = vmatmul.bf16.gmra.mxu0 %v3221
      %v3296 = vpop.f32.mrf.mxu0
      %v3297 = vadd.f32 0.0, %v3296
      %v3298 = vpop.f32.mrf.mxu0
      %3299 = vdwg.mxu0
      %v3300 = vadd.f32 %v3202, %v3297
      %s3301 = scalar_lea.vmem %s9, 32
      %v3302 = vld [vmem:[%s3301] sm:$0xf]
      %v3304 = vsel %vm2517, %v3302, 0
      %3306 = vmatpush.bf16.msra.mxu0 0
      %3307 = vmatpush.bf16.msra.mxu0 0
      %3308 = vmatpush.bf16.msra.mxu0 0
      %3309 = vmatpush.bf16.msra.mxu0 0
      %3310 = vmatpush.bf16.msra.mxu0 0
      %3311 = vmatpush.bf16.msra.mxu0 0
      %3312 = vmatpush.bf16.msra.mxu0 0
      %3313 = vmatpush.bf16.msra.mxu0 %v2523
      %3314 = vmatmul.bf16.gmra.mxu0 %v3304
      %v3315 = vpop.f32.mrf.mxu0
      %v3316 = vadd.f32 0.0, %v3315
      %v3317 = vpop.f32.mrf.mxu0
      %3318 = vdwg.mxu0
      %v3319 = vpack.c.bf16 %v3316, %v3316
      %s3320 = scalar_lea.vmem %s10, 512
      %v3321 = vld [vmem:[%s3320] sm:$0xf]
      %v3322 = vld [vmem:[%s3320 + $0x4] sm:$0xf]
      %v3323 = vld [vmem:[%s3320 + $0x8] sm:$0xf]
      %v3324 = vld [vmem:[%s3320 + $0xc] sm:$0xf]
      %v3325 = vld [vmem:[%s3320 + $0x10] sm:$0xf]
      %v3326 = vld [vmem:[%s3320 + $0x14] sm:$0xf]
      %v3327 = vld [vmem:[%s3320 + $0x18] sm:$0xf]
      %v3328 = vld [vmem:[%s3320 + $0x1c] sm:$0xf]
      %v3329 = vld [vmem:[%s3320 + $0x20] sm:$0xf]
      %v3330 = vld [vmem:[%s3320 + $0x24] sm:$0xf]
      %v3331 = vld [vmem:[%s3320 + $0x28] sm:$0xf]
      %v3332 = vld [vmem:[%s3320 + $0x2c] sm:$0xf]
      %v3333 = vld [vmem:[%s3320 + $0x30] sm:$0xf]
      %v3334 = vld [vmem:[%s3320 + $0x34] sm:$0xf]
      %v3335 = vld [vmem:[%s3320 + $0x38] sm:$0xf]
      %v3336 = vld [vmem:[%s3320 + $0x3c] sm:$0xf]
      %v3353 = vunpack.c.l.b16 %v3321
      %v3354 = vunpack.c.l.b16 %v3322
      %v3355 = vunpack.c.l.b16 %v3323
      %v3356 = vunpack.c.l.b16 %v3324
      %v3357 = vunpack.c.l.b16 %v3325
      %v3358 = vunpack.c.l.b16 %v3326
      %v3359 = vunpack.c.l.b16 %v3327
      %v3360 = vunpack.c.l.b16 %v3328
      %v3361 = vunpack.c.l.b16 %v3329
      %v3362 = vunpack.c.l.b16 %v3330
      %v3363 = vunpack.c.l.b16 %v3331
      %v3364 = vunpack.c.l.b16 %v3332
      %v3365 = vunpack.c.l.b16 %v3333
      %v3366 = vunpack.c.l.b16 %v3334
      %v3367 = vunpack.c.l.b16 %v3335
      %v3368 = vunpack.c.l.b16 %v3336
      %v3369 = vpack.c.b16 %v3354, %v3353
      %v3370 = vpack.c.b16 %v3356, %v3355
      %v3371 = vpack.c.b16 %v3358, %v3357
      %v3372 = vpack.c.b16 %v3360, %v3359
      %v3373 = vpack.c.b16 %v3362, %v3361
      %v3374 = vpack.c.b16 %v3364, %v3363
      %v3375 = vpack.c.b16 %v3366, %v3365
      %v3376 = vpack.c.b16 %v3368, %v3367
      %3385 = vmatpush.bf16.msra.mxu0 %v3376
      %3386 = vmatpush.bf16.msra.mxu0 %v3375
      %3387 = vmatpush.bf16.msra.mxu0 %v3374
      %3388 = vmatpush.bf16.msra.mxu0 %v3373
      %3389 = vmatpush.bf16.msra.mxu0 %v3372
      %3390 = vmatpush.bf16.msra.mxu0 %v3371
      %3391 = vmatpush.bf16.msra.mxu0 %v3370
      %3392 = vmatpush.bf16.msra.mxu0 %v3369
      %3393 = vmatmul.bf16.gmra.mxu0 %v3319
      %v3394 = vpop.f32.mrf.mxu0
      %v3395 = vadd.f32 0.0, %v3394
      %v3396 = vpop.f32.mrf.mxu0
      %3397 = vdwg.mxu0
      %v3398 = vadd.f32 %v3300, %v3395
      %v3399 = vld [vmem:[%s11] sm:$0x1]
      %v3401 = vperm.slane %v3399, 0
      %v3403 = vadd.f32 %v3398, %v3401
      %v3404 = vmax.f32 %v3403, 0.0
      %3405 = vst [vmem:[%s411] sm:$0xff] %v3404
      %p3406 = scmp.lt.s32.totalorder %s23, 1
      %s3407 = scalar_select %p3406, %s23, 1
      %s3408 = smul.addr %s3407, 8
      %s3409 = scalar_lea.vmem %s12, %s3408
      // Predicated region
      $region69: #{input_image_encoder_forward.1} parent=67 // pred_check
        %p3410 = pneg %p298
      $region70: #{input_image_encoder_forward.1} parent=67 // pred_check_branch
        %3412 = sbr.rel (%p3410) target = $region72
      $region71: #{input_image_encoder_forward.1} parent=67 // pred_region
        _
      $region72: #{input_image_encoder_forward.1} parent=67 // pred_fallthru
        _
    $region68: #{input_image_encoder_forward.1} parent=5 // pred_fallthru
      _
    %p3413 = scmp.le.s32.totalorder 2, %s18
    // Predicated region
    $region73: #{input_image_encoder_forward.1} parent=5 // pred_check
      %p3414 = pneg %p3413
    $region74: #{input_image_encoder_forward.1} parent=5 // pred_check_branch
      %3416 = sbr.rel (%p3414) target = $region76
    $region75: #{input_image_encoder_forward.1} parent=5 // pred_region
      %s3417 = ssub.s32 %s18, 2
      // Predicated region
      $region77: #{input_image_encoder_forward.1} parent=75 // pred_check
        %p3418 = pneg %p304
      $region78: #{input_image_encoder_forward.1} parent=75 // pred_check_branch
        %3420 = sbr.rel (%p3418) target = $region80
      $region79: #{input_image_encoder_forward.1} parent=75 // pred_region
        %p3421 = scmp.lt.s32.totalorder %s24, 1
        %s3422 = scalar_select %p3421, %s24, 1
        %s3423 = smul.addr %s3422, 8
        %s3424 = scalar_lea.vmem %s12, %s3423
      $region80: #{input_image_encoder_forward.1} parent=75 // pred_fallthru
        _
    $region76: #{input_image_encoder_forward.1} parent=5 // pred_fallthru
      _
  $region6: #{input_image_encoder_forward.1} parent=0 // loop_footer
    %s22 = sadd.s32 1, %s18
  $region7: #{input_image_encoder_forward.1} parent=0 // loop_footer_branch
    %17 = sbr.rel target = $region3
  $region8: #{input_image_encoder_forward.1} parent=0 // loop_exit
    _

</llo_original>
